<compile_context>
chip_gen: v7x
topology: tpu7x:2x2x1
jax: 0.10.0
libtpu: 0.0.40
codegen_flags: <defaults>
</compile_context>

<pallas_src>
import jax
import jax.numpy as jnp
from jax.experimental import pallas as pl
from jax.experimental.pallas import tpu as pltpu


# ----------------------------- Pallas kernel ------------------------------- #

def _gru_encoder_kernel(x_ref, wih_ref, bih_ref, whh_ref, bhn_ref,
                        wh_ref, bh_ref, enc_ref, ml_ref, gx_scr):
    """Fused bidirectional multi-layer GRU + ReLU heads, time-major.

    x_ref:   (T, B, D)        input sequence (D == 2H for this module)
    wih_ref: (L, 2H, 6H)      input->hidden weights, columns [fwd r|z|n | bwd r|z|n]
    bih_ref: (L, 1, 6H)       b_ih with b_hr/b_hz folded in (n slot keeps only b_in)
    whh_ref: (L, 2, H, 3H)    gate-fused hidden->hidden weights per layer/direction
    bhn_ref: (L, 2, 1, 3H)    [0 | 0 | b_hn] (b_hn stays inside r*(...))
    wh_ref:  (2H, 2H)         heads weight, rows [fwd|bwd], cols [mean|logvar]
    bh_ref:  (1, 2H)          heads bias [mean|logvar]
    enc_ref: (2, T, B, H)     direction-major hidden states; also the inter-layer buffer
                              (valid because this call is gridless and strictly sequential)
    ml_ref:  (T, B, 2H)       relu(enc @ W + b), columns [mean | logvar]
    gx_scr:  (T, B, 6H)       VMEM scratch for the hoisted input projection
    """
    T, B, D = x_ref.shape
    L = wih_ref.shape[0]
    H = whh_ref.shape[-1] // 3
    H3 = 3 * H

    for layer in range(L):
        # ---- hoisted input projection: whole sequence, both directions, one/two matmuls ----
        if layer == 0:
            gx = jnp.dot(x_ref[...].reshape(T * B, D), wih_ref[layer],
                         preferred_element_type=jnp.float32)
        else:
            # previous layer's output is direction-major -> no [fwd|bwd] concat needed
            pf = enc_ref[0].reshape(T * B, H)
            pb = enc_ref[1].reshape(T * B, H)
            gx = (jnp.dot(pf, wih_ref[layer, 0:H, :], preferred_element_type=jnp.float32)
                  + jnp.dot(pb, wih_ref[layer, H:2 * H, :], preferred_element_type=jnp.float32))
        gx_scr[...] = (gx + bih_ref[layer]).reshape(T, B, 6 * H)

        w_f = whh_ref[layer, 0]                    # (H, 3H)  gate-fused (r|z|n)
        w_b = whh_ref[layer, 1]
        bn_f = bhn_ref[layer, 0]                   # (1, 3H)  zeros in r,z slots
        bn_b = bhn_ref[layer, 1]

        h_f = jnp.zeros((B, H), dtype=jnp.float32)
        h_b = jnp.zeros((B, H), dtype=jnp.float32)
        hs_f = []
        hs_b = []
        # Static full unroll: T is a small compile-time constant; fwd/bwd interleaved so the
        # two independent dependency chains hide each other's MXU/EUP latency.
        for i in range(T):
            t_b = T - 1 - i
            g_f = gx_scr[i, :, 0:H3]               # (B, 3H)
            g_b = gx_scr[t_b, :, H3:6 * H]         # (B, 3H)

            gh_f = jnp.dot(h_f, w_f, preferred_element_type=jnp.float32) + bn_f
            gh_b = jnp.dot(h_b, w_b, preferred_element_type=jnp.float32) + bn_b

            r_f = jax.nn.sigmoid(g_f[:, 0:H] + gh_f[:, 0:H])
            z_f = jax.nn.sigmoid(g_f[:, H:2 * H] + gh_f[:, H:2 * H])
            n_f = jnp.tanh(g_f[:, 2 * H:3 * H] + r_f * gh_f[:, 2 * H:3 * H])
            h_f = n_f + z_f * (h_f - n_f)

            r_b = jax.nn.sigmoid(g_b[:, 0:H] + gh_b[:, 0:H])
            z_b = jax.nn.sigmoid(g_b[:, H:2 * H] + gh_b[:, H:2 * H])
            n_b = jnp.tanh(g_b[:, 2 * H:3 * H] + r_b * gh_b[:, 2 * H:3 * H])
            h_b = n_b + z_b * (h_b - n_b)

            hs_f.append(h_f)
            hs_b.append(h_b)

        # ONE batched, contiguous (offset-0) store per direction per layer.
        enc_ref[0] = jnp.stack(hs_f)               # (T, B, H), fwd, time order
        enc_ref[1] = jnp.stack(hs_b[::-1])         # (T, B, H), bwd, time order

    # ---- fused fc_mean / fc_logvar heads on the resident last-layer activations ----
    ef = enc_ref[0].reshape(T * B, H)
    eb = enc_ref[1].reshape(T * B, H)
    y = (jnp.dot(ef, wh_ref[0:H, :], preferred_element_type=jnp.float32)
         + jnp.dot(eb, wh_ref[H:2 * H, :], preferred_element_type=jnp.float32)
         + bh_ref[...])
    ml_ref[...] = jnp.maximum(y, 0.0).reshape(T, B, 2 * H)


# ------------------------------ Wrapper ------------------------------------ #

_VMEM = pl.BlockSpec(memory_space=pltpu.MemorySpace.VMEM)


def gru_encoder_forward(inputs, params):
    """inputs: (B, T, input_size), batch_first=True (PyTorch convention)."""
    B, T, D = inputs.shape
    H = params["whh"].shape[-1] // 3
    assert D == 2 * H, "layer input dim must equal 2 * hidden (input_size even)"

    x_tbd = jnp.transpose(inputs.astype(jnp.float32), (1, 0, 2))   # time-major, once at entry

    enc_dm, ml = pl.pallas_call(
        _gru_encoder_kernel,
        out_shape=(jax.ShapeDtypeStruct((2, T, B, H), jnp.float32),   # direction-major enc
                   jax.ShapeDtypeStruct((T, B, 2 * H), jnp.float32)), # [mean | logvar]
        in_specs=[_VMEM] * 7,
        out_specs=(_VMEM, _VMEM),
        scratch_shapes=[pltpu.VMEM((T, B, 6 * H), jnp.float32)],
        compiler_params=pltpu.CompilerParams(vmem_limit_bytes=32 * 1024 * 1024),
    )(x_tbd, params["wih"], params["bih"], params["whh"], params["bhn"],
      params["w_heads"], params["b_heads"])

    # Single transpose/reshape at exit: (2,T,B,H) -> (B,T,2,H) -> (B,T,2H) == [fwd|bwd]
    enc = jnp.transpose(enc_dm, (2, 1, 0, 3)).reshape(B, T, 2 * H)
    ml_bt = jnp.transpose(ml, (1, 0, 2))                            # (B, T, 2H)
    return ml_bt[..., :H], ml_bt[..., H:], enc


# --------------------------- Parameter creation ----------------------------- #

def init_params(key, input_size, num_layers):
    H = input_size // 2
    assert 2 * H == input_size, "input_size must be even"
    D = input_size
    k_gru = 1.0 / (H ** 0.5)
    k_fc = 1.0 / (input_size ** 0.5)

    def unif(key, shape, k):
        return jax.random.uniform(key, shape, jnp.float32, minval=-k, maxval=k)

    wih_layers, bih_layers, whh_layers, bhn_layers = [], [], [], []
    for _ in range(num_layers):
        wih_l, bih_l, whh_l, bhn_l = [], [], [], []
        for _d in range(2):                               # fwd, bwd
            key, k1, k2, k3, k4 = jax.random.split(key, 5)
            w_ih = unif(k1, (D, 3 * H), k_gru)            # pre-transposed, gates (r,z,n)
            w_hh = unif(k2, (H, 3 * H), k_gru)            # gate-FUSED, pre-transposed
            b_ih = unif(k3, (3 * H,), k_gru)
            b_hh = unif(k4, (3 * H,), k_gru)
            # fold hidden r/z biases into the hoisted projection bias; keep b_hn separate
            b_fold = jnp.concatenate([b_ih[:2 * H] + b_hh[:2 * H], b_ih[2 * H:]])
            bhn3 = jnp.concatenate([jnp.zeros((2 * H,), jnp.float32), b_hh[2 * H:]])
            wih_l.append(w_ih)
            bih_l.append(b_fold)
            whh_l.append(w_hh)
            bhn_l.append(bhn3[None, :])
        wih_layers.append(jnp.concatenate(wih_l, axis=1))     # (2H, 6H)
        bih_layers.append(jnp.concatenate(bih_l)[None, :])    # (1, 6H)
        whh_layers.append(jnp.stack(whh_l))                   # (2, H, 3H)
        bhn_layers.append(jnp.stack(bhn_l))                   # (2, 1, 3H)

    key, k1, k2, k3, k4 = jax.random.split(key, 5)
    w_mean = unif(k1, (D, H), k_fc)
    b_mean = unif(k2, (H,), k_fc)
    w_logv = unif(k3, (D, H), k_fc)
    b_logv = unif(k4, (H,), k_fc)

    return {
        "wih": jnp.stack(wih_layers),                            # (L, 2H, 6H)
        "bih": jnp.stack(bih_layers),                            # (L, 1, 6H)
        "whh": jnp.stack(whh_layers),                            # (L, 2, H, 3H)
        "bhn": jnp.stack(bhn_layers),                            # (L, 2, 1, 3H)
        "w_heads": jnp.concatenate([w_mean, w_logv], axis=1),    # (2H, 2H) = [mean | logvar]
        "b_heads": jnp.concatenate([b_mean, b_logv])[None, :],   # (1, 2H)
    }


# ------------------------- Pure-JAX reference (check) ----------------------- #

def _ref_gru_dir(x_btd, w_ih, b_fold, w_rzn, b_hn3, reverse):
    B, T, _ = x_btd.shape
    H = w_rzn.shape[0]
    xs = jnp.transpose(x_btd, (1, 0, 2))
    if reverse:
        xs = xs[::-1]

    def step(h, x_t):
        gx = x_t @ w_ih + b_fold
        gh = h @ w_rzn + b_hn3
        r = jax.nn.sigmoid(gx[:, :H] + gh[:, :H])
        z = jax.nn.sigmoid(gx[:, H:2 * H] + gh[:, H:2 * H])
        n = jnp.tanh(gx[:, 2 * H:] + r * gh[:, 2 * H:])
        h_new = (1.0 - z) * n + z * h
        return h_new, h_new

    _, ys = jax.lax.scan(step, jnp.zeros((B, H), jnp.float32), xs)
    if reverse:
        ys = ys[::-1]
    return jnp.transpose(ys, (1, 0, 2))


def ref_forward(inputs, params):
    x = inputs.astype(jnp.float32)
    L = params["wih"].shape[0]
    H = params["whh"].shape[-1] // 3
    for layer in range(L):
        wih = params["wih"][layer]
        bih = params["bih"][layer][0]
        dirs = []
        for d in range(2):
            w_ih = wih[:, d * 3 * H:(d + 1) * 3 * H]
            b_fold = bih[d * 3 * H:(d + 1) * 3 * H]
            w_rzn = params["whh"][layer, d]
            b_hn3 = params["bhn"][layer, d][0]
            dirs.append(_ref_gru_dir(x, w_ih, b_fold, w_rzn, b_hn3, reverse=(d == 1)))
        x = jnp.concatenate(dirs, axis=-1)
    y = jax.nn.relu(x @ params["w_heads"] + params["b_heads"][0])
    return y[..., :H], y[..., H:], x


# ---------------------------------- Main ------------------------------------ #

if __name__ == "__main__":
    INPUT_SIZE = 32   # -> hidden_size = 16 per direction
    NUM_LAYERS = 2
    B, T = 2, 8

    key = jax.random.PRNGKey(0)
    key, pkey, xkey = jax.random.split(key, 3)
    params = init_params(pkey, INPUT_SIZE, NUM_LAYERS)
    inputs = jax.random.normal(xkey, (B, T, INPUT_SIZE), dtype=jnp.float32)

    mean, logvar, enc = jax.block_until_ready(gru_encoder_forward(inputs, params))
    mean_r, logvar_r, enc_r = jax.block_until_ready(ref_forward(inputs, params))

    assert mean.shape == (B, T, INPUT_SIZE // 2)
    assert logvar.shape == (B, T, INPUT_SIZE // 2)
    assert enc.shape == (B, T, INPUT_SIZE)
    assert jnp.allclose(enc, enc_r, atol=1e-4, rtol=1e-4)
    assert jnp.allclose(mean, mean_r, atol=1e-4, rtol=1e-4)
    assert jnp.allclose(logvar, logvar_r, atol=1e-4, rtol=1e-4)

    print("KERNEL_OK")
</pallas_src>

<mosaic_0001>
module attributes {stable_mosaic.version = 11 : i64} {
  func.func @_gru_encoder_kernel(%arg0: memref<8x2x32xf32, #tpu.memory_space<vmem>>, %arg1: memref<2x32x96xf32, #tpu.memory_space<vmem>>, %arg2: memref<2x1x96xf32, #tpu.memory_space<vmem>>, %arg3: memref<2x2x16x48xf32, #tpu.memory_space<vmem>>, %arg4: memref<2x2x1x48xf32, #tpu.memory_space<vmem>>, %arg5: memref<32x32xf32, #tpu.memory_space<vmem>>, %arg6: memref<1x32xf32, #tpu.memory_space<vmem>>, %arg7: memref<2x8x2x16xf32, #tpu.memory_space<vmem>>, %arg8: memref<8x2x32xf32, #tpu.memory_space<vmem>>, %arg9: memref<8x2x96xf32, #tpu.memory_space<vmem>>) attributes {dimension_semantics = [], scalar_prefetch = 0 : i64, scratch_operands = 1 : i64, tpu.core_type = #tpu.core_type<tc>} {
    %c0 = arith.constant 0 : index
    %c0_0 = arith.constant 0 : index
    %c0_1 = arith.constant 0 : index
    %0 = vector.load %arg0[%c0, %c0_0, %c0_1] : memref<8x2x32xf32, #tpu.memory_space<vmem>>, vector<8x2x32xf32>
    %1 = vector.shape_cast %0 : vector<8x2x32xf32> to vector<16x32xf32>
    %c0_2 = arith.constant 0 : index
    %c0_3 = arith.constant 0 : index
    %c0_4 = arith.constant 0 : index
    %2 = vector.load %arg1[%c0_2, %c0_3, %c0_4] : memref<2x32x96xf32, #tpu.memory_space<vmem>>, vector<1x32x96xf32>
    %3 = vector.shape_cast %2 : vector<1x32x96xf32> to vector<32x96xf32>
    %cst = arith.constant dense<0.000000e+00> : vector<16x96xf32>
    %4 = tpu.matmul %1, %3, %cst {dimension_numbers = #tpu.dot_dimension_numbers<[1], [0], [0], [1], [0, 0, 1, 1], [], []>} : vector<16x32xf32>, vector<32x96xf32>, vector<16x96xf32> -> vector<16x96xf32>
    %c0_5 = arith.constant 0 : index
    %c0_6 = arith.constant 0 : index
    %c0_7 = arith.constant 0 : index
    %5 = vector.load %arg2[%c0_5, %c0_6, %c0_7] : memref<2x1x96xf32, #tpu.memory_space<vmem>>, vector<1x1x96xf32>
    %6 = vector.shape_cast %5 : vector<1x1x96xf32> to vector<1x96xf32>
    %7 = vector.broadcast %6 : vector<1x96xf32> to vector<16x96xf32>
    %8 = arith.addf %4, %7 : vector<16x96xf32>
    %9 = vector.shape_cast %8 : vector<16x96xf32> to vector<8x2x96xf32>
    %c0_8 = arith.constant 0 : index
    %c0_9 = arith.constant 0 : index
    %c0_10 = arith.constant 0 : index
    %10 = vector.load %arg9[%c0_8, %c0_9, %c0_10] : memref<8x2x96xf32, #tpu.memory_space<vmem>>, vector<8x2x96xf32>
    tpu.vector_store %arg9[%c0_8, %c0_9, %c0_10], %9 {strides = array<i32>} : memref<8x2x96xf32, #tpu.memory_space<vmem>>, vector<8x2x96xf32>,
    %c0_11 = arith.constant 0 : index
    %c0_12 = arith.constant 0 : index
    %c0_13 = arith.constant 0 : index
    %c0_14 = arith.constant 0 : index
    %11 = vector.load %arg3[%c0_11, %c0_12, %c0_13, %c0_14] : memref<2x2x16x48xf32, #tpu.memory_space<vmem>>, vector<1x1x16x48xf32>
    %12 = vector.shape_cast %11 : vector<1x1x16x48xf32> to vector<16x48xf32>
    %c0_15 = arith.constant 0 : index
    %c1 = arith.constant 1 : index
    %c0_16 = arith.constant 0 : index
    %c0_17 = arith.constant 0 : index
    %13 = vector.load %arg3[%c0_15, %c1, %c0_16, %c0_17] : memref<2x2x16x48xf32, #tpu.memory_space<vmem>>, vector<1x1x16x48xf32>
    %14 = vector.shape_cast %13 : vector<1x1x16x48xf32> to vector<16x48xf32>
    %c0_18 = arith.constant 0 : index
    %c0_19 = arith.constant 0 : index
    %c0_20 = arith.constant 0 : index
    %c0_21 = arith.constant 0 : index
    %15 = vector.load %arg4[%c0_18, %c0_19, %c0_20, %c0_21] : memref<2x2x1x48xf32, #tpu.memory_space<vmem>>, vector<1x1x1x48xf32>
    %16 = vector.shape_cast %15 : vector<1x1x1x48xf32> to vector<1x48xf32>
    %c0_22 = arith.constant 0 : index
    %c1_23 = arith.constant 1 : index
    %c0_24 = arith.constant 0 : index
    %c0_25 = arith.constant 0 : index
    %17 = vector.load %arg4[%c0_22, %c1_23, %c0_24, %c0_25] : memref<2x2x1x48xf32, #tpu.memory_space<vmem>>, vector<1x1x1x48xf32>
    %18 = vector.shape_cast %17 : vector<1x1x1x48xf32> to vector<1x48xf32>
    %cst_26 = arith.constant 0.000000e+00 : f32
    %19 = vector.broadcast %cst_26 : f32 to vector<2x16xf32>
    %cst_27 = arith.constant 0.000000e+00 : f32
    %20 = vector.broadcast %cst_27 : f32 to vector<2x16xf32>
    %c0_28 = arith.constant 0 : index
    %c0_29 = arith.constant 0 : index
    %c0_30 = arith.constant 0 : index
    %21 = vector.load %arg9[%c0_28, %c0_29, %c0_30] : memref<8x2x96xf32, #tpu.memory_space<vmem>>, vector<1x2x48xf32>
    %22 = vector.shape_cast %21 : vector<1x2x48xf32> to vector<2x48xf32>
    %c7 = arith.constant 7 : index
    %c0_31 = arith.constant 0 : index
    %c48 = arith.constant 48 : index
    %23 = vector.load %arg9[%c7, %c0_31, %c48] : memref<8x2x96xf32, #tpu.memory_space<vmem>>, vector<1x2x48xf32>
    %24 = vector.shape_cast %23 : vector<1x2x48xf32> to vector<2x48xf32>
    %cst_32 = arith.constant dense<0.000000e+00> : vector<2x48xf32>
    %25 = tpu.matmul %19, %12, %cst_32 {dimension_numbers = #tpu.dot_dimension_numbers<[1], [0], [0], [1], [0, 0, 1, 1], [], []>} : vector<2x16xf32>, vector<16x48xf32>, vector<2x48xf32> -> vector<2x48xf32>
    %26 = vector.broadcast %16 : vector<1x48xf32> to vector<2x48xf32>
    %27 = arith.addf %25, %26 : vector<2x48xf32>
    %cst_33 = arith.constant dense<0.000000e+00> : vector<2x48xf32>
    %28 = tpu.matmul %20, %14, %cst_33 {dimension_numbers = #tpu.dot_dimension_numbers<[1], [0], [0], [1], [0, 0, 1, 1], [], []>} : vector<2x16xf32>, vector<16x48xf32>, vector<2x48xf32> -> vector<2x48xf32>
    %29 = vector.broadcast %18 : vector<1x48xf32> to vector<2x48xf32>
    %30 = arith.addf %28, %29 : vector<2x48xf32>
    %31 = vector.extract_strided_slice %22 {offsets = [0, 0], sizes = [2, 16], strides = [1, 1]} : vector<2x48xf32> to vector<2x16xf32>
    %32 = vector.extract_strided_slice %27 {offsets = [0, 0], sizes = [2, 16], strides = [1, 1]} : vector<2x48xf32> to vector<2x16xf32>
    %33 = arith.addf %31, %32 : vector<2x16xf32>
    %34 = arith.negf %33 : vector<2x16xf32>
    %35 = math.exp %34 : vector<2x16xf32>
    %cst_34 = arith.constant 1.000000e+00 : f32
    %36 = vector.broadcast %cst_34 : f32 to vector<2x16xf32>
    %37 = arith.addf %36, %35 : vector<2x16xf32>
    %38 = arith.divf %36, %37 : vector<2x16xf32>
    %39 = vector.extract_strided_slice %22 {offsets = [0, 16], sizes = [2, 16], strides = [1, 1]} : vector<2x48xf32> to vector<2x16xf32>
    %40 = vector.extract_strided_slice %27 {offsets = [0, 16], sizes = [2, 16], strides = [1, 1]} : vector<2x48xf32> to vector<2x16xf32>
    %41 = arith.addf %39, %40 : vector<2x16xf32>
    %42 = arith.negf %41 : vector<2x16xf32>
    %43 = math.exp %42 : vector<2x16xf32>
    %cst_35 = arith.constant 1.000000e+00 : f32
    %44 = vector.broadcast %cst_35 : f32 to vector<2x16xf32>
    %45 = arith.addf %44, %43 : vector<2x16xf32>
    %46 = arith.divf %44, %45 : vector<2x16xf32>
    %47 = vector.extract_strided_slice %22 {offsets = [0, 32], sizes = [2, 16], strides = [1, 1]} : vector<2x48xf32> to vector<2x16xf32>
    %48 = vector.extract_strided_slice %27 {offsets = [0, 32], sizes = [2, 16], strides = [1, 1]} : vector<2x48xf32> to vector<2x16xf32>
    %49 = arith.mulf %38, %48 : vector<2x16xf32>
    %50 = arith.addf %47, %49 : vector<2x16xf32>
    %51 = math.tanh %50 : vector<2x16xf32>
    %52 = arith.subf %19, %51 : vector<2x16xf32>
    %53 = arith.mulf %46, %52 : vector<2x16xf32>
    %54 = arith.addf %51, %53 : vector<2x16xf32>
    %55 = vector.extract_strided_slice %24 {offsets = [0, 0], sizes = [2, 16], strides = [1, 1]} : vector<2x48xf32> to vector<2x16xf32>
    %56 = vector.extract_strided_slice %30 {offsets = [0, 0], sizes = [2, 16], strides = [1, 1]} : vector<2x48xf32> to vector<2x16xf32>
    %57 = arith.addf %55, %56 : vector<2x16xf32>
    %58 = arith.negf %57 : vector<2x16xf32>
    %59 = math.exp %58 : vector<2x16xf32>
    %cst_36 = arith.constant 1.000000e+00 : f32
    %60 = vector.broadcast %cst_36 : f32 to vector<2x16xf32>
    %61 = arith.addf %60, %59 : vector<2x16xf32>
    %62 = arith.divf %60, %61 : vector<2x16xf32>
    %63 = vector.extract_strided_slice %24 {offsets = [0, 16], sizes = [2, 16], strides = [1, 1]} : vector<2x48xf32> to vector<2x16xf32>
    %64 = vector.extract_strided_slice %30 {offsets = [0, 16], sizes = [2, 16], strides = [1, 1]} : vector<2x48xf32> to vector<2x16xf32>
    %65 = arith.addf %63, %64 : vector<2x16xf32>
    %66 = arith.negf %65 : vector<2x16xf32>
    %67 = math.exp %66 : vector<2x16xf32>
    %cst_37 = arith.constant 1.000000e+00 : f32
    %68 = vector.broadcast %cst_37 : f32 to vector<2x16xf32>
    %69 = arith.addf %68, %67 : vector<2x16xf32>
    %70 = arith.divf %68, %69 : vector<2x16xf32>
    %71 = vector.extract_strided_slice %24 {offsets = [0, 32], sizes = [2, 16], strides = [1, 1]} : vector<2x48xf32> to vector<2x16xf32>
    %72 = vector.extract_strided_slice %30 {offsets = [0, 32], sizes = [2, 16], strides = [1, 1]} : vector<2x48xf32> to vector<2x16xf32>
    %73 = arith.mulf %62, %72 : vector<2x16xf32>
    %74 = arith.addf %71, %73 : vector<2x16xf32>
    %75 = math.tanh %74 : vector<2x16xf32>
    %76 = arith.subf %20, %75 : vector<2x16xf32>
    %77 = arith.mulf %70, %76 : vector<2x16xf32>
    %78 = arith.addf %75, %77 : vector<2x16xf32>
    %c1_38 = arith.constant 1 : index
    %c0_39 = arith.constant 0 : index
    %c0_40 = arith.constant 0 : index
    %79 = vector.load %arg9[%c1_38, %c0_39, %c0_40] : memref<8x2x96xf32, #tpu.memory_space<vmem>>, vector<1x2x48xf32>
    %80 = vector.shape_cast %79 : vector<1x2x48xf32> to vector<2x48xf32>
    %c6 = arith.constant 6 : index
    %c0_41 = arith.constant 0 : index
    %c48_42 = arith.constant 48 : index
    %81 = vector.load %arg9[%c6, %c0_41, %c48_42] : memref<8x2x96xf32, #tpu.memory_space<vmem>>, vector<1x2x48xf32>
    %82 = vector.shape_cast %81 : vector<1x2x48xf32> to vector<2x48xf32>
    %cst_43 = arith.constant dense<0.000000e+00> : vector<2x48xf32>
    %83 = tpu.matmul %54, %12, %cst_43 {dimension_numbers = #tpu.dot_dimension_numbers<[1], [0], [0], [1], [0, 0, 1, 1], [], []>} : vector<2x16xf32>, vector<16x48xf32>, vector<2x48xf32> -> vector<2x48xf32>
    %84 = vector.broadcast %16 : vector<1x48xf32> to vector<2x48xf32>
    %85 = arith.addf %83, %84 : vector<2x48xf32>
    %cst_44 = arith.constant dense<0.000000e+00> : vector<2x48xf32>
    %86 = tpu.matmul %78, %14, %cst_44 {dimension_numbers = #tpu.dot_dimension_numbers<[1], [0], [0], [1], [0, 0, 1, 1], [], []>} : vector<2x16xf32>, vector<16x48xf32>, vector<2x48xf32> -> vector<2x48xf32>
    %87 = vector.broadcast %18 : vector<1x48xf32> to vector<2x48xf32>
    %88 = arith.addf %86, %87 : vector<2x48xf32>
    %89 = vector.extract_strided_slice %80 {offsets = [0, 0], sizes = [2, 16], strides = [1, 1]} : vector<2x48xf32> to vector<2x16xf32>
    %90 = vector.extract_strided_slice %85 {offsets = [0, 0], sizes = [2, 16], strides = [1, 1]} : vector<2x48xf32> to vector<2x16xf32>
    %91 = arith.addf %89, %90 : vector<2x16xf32>
    %92 = arith.negf %91 : vector<2x16xf32>
    %93 = math.exp %92 : vector<2x16xf32>
    %cst_45 = arith.constant 1.000000e+00 : f32
    %94 = vector.broadcast %cst_45 : f32 to vector<2x16xf32>
    %95 = arith.addf %94, %93 : vector<2x16xf32>
    %96 = arith.divf %94, %95 : vector<2x16xf32>
    %97 = vector.extract_strided_slice %80 {offsets = [0, 16], sizes = [2, 16], strides = [1, 1]} : vector<2x48xf32> to vector<2x16xf32>
    %98 = vector.extract_strided_slice %85 {offsets = [0, 16], sizes = [2, 16], strides = [1, 1]} : vector<2x48xf32> to vector<2x16xf32>
    %99 = arith.addf %97, %98 : vector<2x16xf32>
    %100 = arith.negf %99 : vector<2x16xf32>
    %101 = math.exp %100 : vector<2x16xf32>
    %cst_46 = arith.constant 1.000000e+00 : f32
    %102 = vector.broadcast %cst_46 : f32 to vector<2x16xf32>
    %103 = arith.addf %102, %101 : vector<2x16xf32>
    %104 = arith.divf %102, %103 : vector<2x16xf32>
    %105 = vector.extract_strided_slice %80 {offsets = [0, 32], sizes = [2, 16], strides = [1, 1]} : vector<2x48xf32> to vector<2x16xf32>
    %106 = vector.extract_strided_slice %85 {offsets = [0, 32], sizes = [2, 16], strides = [1, 1]} : vector<2x48xf32> to vector<2x16xf32>
    %107 = arith.mulf %96, %106 : vector<2x16xf32>
    %108 = arith.addf %105, %107 : vector<2x16xf32>
    %109 = math.tanh %108 : vector<2x16xf32>
    %110 = arith.subf %54, %109 : vector<2x16xf32>
    %111 = arith.mulf %104, %110 : vector<2x16xf32>
    %112 = arith.addf %109, %111 : vector<2x16xf32>
    %113 = vector.extract_strided_slice %82 {offsets = [0, 0], sizes = [2, 16], strides = [1, 1]} : vector<2x48xf32> to vector<2x16xf32>
    %114 = vector.extract_strided_slice %88 {offsets = [0, 0], sizes = [2, 16], strides = [1, 1]} : vector<2x48xf32> to vector<2x16xf32>
    %115 = arith.addf %113, %114 : vector<2x16xf32>
    %116 = arith.negf %115 : vector<2x16xf32>
    %117 = math.exp %116 : vector<2x16xf32>
    %cst_47 = arith.constant 1.000000e+00 : f32
    %118 = vector.broadcast %cst_47 : f32 to vector<2x16xf32>
    %119 = arith.addf %118, %117 : vector<2x16xf32>
    %120 = arith.divf %118, %119 : vector<2x16xf32>
    %121 = vector.extract_strided_slice %82 {offsets = [0, 16], sizes = [2, 16], strides = [1, 1]} : vector<2x48xf32> to vector<2x16xf32>
    %122 = vector.extract_strided_slice %88 {offsets = [0, 16], sizes = [2, 16], strides = [1, 1]} : vector<2x48xf32> to vector<2x16xf32>
    %123 = arith.addf %121, %122 : vector<2x16xf32>
    %124 = arith.negf %123 : vector<2x16xf32>
    %125 = math.exp %124 : vector<2x16xf32>
    %cst_48 = arith.constant 1.000000e+00 : f32
    %126 = vector.broadcast %cst_48 : f32 to vector<2x16xf32>
    %127 = arith.addf %126, %125 : vector<2x16xf32>
    %128 = arith.divf %126, %127 : vector<2x16xf32>
    %129 = vector.extract_strided_slice %82 {offsets = [0, 32], sizes = [2, 16], strides = [1, 1]} : vector<2x48xf32> to vector<2x16xf32>
    %130 = vector.extract_strided_slice %88 {offsets = [0, 32], sizes = [2, 16], strides = [1, 1]} : vector<2x48xf32> to vector<2x16xf32>
    %131 = arith.mulf %120, %130 : vector<2x16xf32>
    %132 = arith.addf %129, %131 : vector<2x16xf32>
    %133 = math.tanh %132 : vector<2x16xf32>
    %134 = arith.subf %78, %133 : vector<2x16xf32>
    %135 = arith.mulf %128, %134 : vector<2x16xf32>
    %136 = arith.addf %133, %135 : vector<2x16xf32>
    %c2 = arith.constant 2 : index
    %c0_49 = arith.constant 0 : index
    %c0_50 = arith.constant 0 : index
    %137 = vector.load %arg9[%c2, %c0_49, %c0_50] : memref<8x2x96xf32, #tpu.memory_space<vmem>>, vector<1x2x48xf32>
    %138 = vector.shape_cast %137 : vector<1x2x48xf32> to vector<2x48xf32>
    %c5 = arith.constant 5 : index
    %c0_51 = arith.constant 0 : index
    %c48_52 = arith.constant 48 : index
    %139 = vector.load %arg9[%c5, %c0_51, %c48_52] : memref<8x2x96xf32, #tpu.memory_space<vmem>>, vector<1x2x48xf32>
    %140 = vector.shape_cast %139 : vector<1x2x48xf32> to vector<2x48xf32>
    %cst_53 = arith.constant dense<0.000000e+00> : vector<2x48xf32>
    %141 = tpu.matmul %112, %12, %cst_53 {dimension_numbers = #tpu.dot_dimension_numbers<[1], [0], [0], [1], [0, 0, 1, 1], [], []>} : vector<2x16xf32>, vector<16x48xf32>, vector<2x48xf32> -> vector<2x48xf32>
    %142 = vector.broadcast %16 : vector<1x48xf32> to vector<2x48xf32>
    %143 = arith.addf %141, %142 : vector<2x48xf32>
    %cst_54 = arith.constant dense<0.000000e+00> : vector<2x48xf32>
    %144 = tpu.matmul %136, %14, %cst_54 {dimension_numbers = #tpu.dot_dimension_numbers<[1], [0], [0], [1], [0, 0, 1, 1], [], []>} : vector<2x16xf32>, vector<16x48xf32>, vector<2x48xf32> -> vector<2x48xf32>
    %145 = vector.broadcast %18 : vector<1x48xf32> to vector<2x48xf32>
    %146 = arith.addf %144, %145 : vector<2x48xf32>
    %147 = vector.extract_strided_slice %138 {offsets = [0, 0], sizes = [2, 16], strides = [1, 1]} : vector<2x48xf32> to vector<2x16xf32>
    %148 = vector.extract_strided_slice %143 {offsets = [0, 0], sizes = [2, 16], strides = [1, 1]} : vector<2x48xf32> to vector<2x16xf32>
    %149 = arith.addf %147, %148 : vector<2x16xf32>
    %150 = arith.negf %149 : vector<2x16xf32>
    %151 = math.exp %150 : vector<2x16xf32>
    %cst_55 = arith.constant 1.000000e+00 : f32
    %152 = vector.broadcast %cst_55 : f32 to vector<2x16xf32>
    %153 = arith.addf %152, %151 : vector<2x16xf32>
    %154 = arith.divf %152, %153 : vector<2x16xf32>
    %155 = vector.extract_strided_slice %138 {offsets = [0, 16], sizes = [2, 16], strides = [1, 1]} : vector<2x48xf32> to vector<2x16xf32>
    %156 = vector.extract_strided_slice %143 {offsets = [0, 16], sizes = [2, 16], strides = [1, 1]} : vector<2x48xf32> to vector<2x16xf32>
    %157 = arith.addf %155, %156 : vector<2x16xf32>
    %158 = arith.negf %157 : vector<2x16xf32>
    %159 = math.exp %158 : vector<2x16xf32>
    %cst_56 = arith.constant 1.000000e+00 : f32
    %160 = vector.broadcast %cst_56 : f32 to vector<2x16xf32>
    %161 = arith.addf %160, %159 : vector<2x16xf32>
    %162 = arith.divf %160, %161 : vector<2x16xf32>
    %163 = vector.extract_strided_slice %138 {offsets = [0, 32], sizes = [2, 16], strides = [1, 1]} : vector<2x48xf32> to vector<2x16xf32>
    %164 = vector.extract_strided_slice %143 {offsets = [0, 32], sizes = [2, 16], strides = [1, 1]} : vector<2x48xf32> to vector<2x16xf32>
    %165 = arith.mulf %154, %164 : vector<2x16xf32>
    %166 = arith.addf %163, %165 : vector<2x16xf32>
    %167 = math.tanh %166 : vector<2x16xf32>
    %168 = arith.subf %112, %167 : vector<2x16xf32>
    %169 = arith.mulf %162, %168 : vector<2x16xf32>
    %170 = arith.addf %167, %169 : vector<2x16xf32>
    %171 = vector.extract_strided_slice %140 {offsets = [0, 0], sizes = [2, 16], strides = [1, 1]} : vector<2x48xf32> to vector<2x16xf32>
    %172 = vector.extract_strided_slice %146 {offsets = [0, 0], sizes = [2, 16], strides = [1, 1]} : vector<2x48xf32> to vector<2x16xf32>
    %173 = arith.addf %171, %172 : vector<2x16xf32>
    %174 = arith.negf %173 : vector<2x16xf32>
    %175 = math.exp %174 : vector<2x16xf32>
    %cst_57 = arith.constant 1.000000e+00 : f32
    %176 = vector.broadcast %cst_57 : f32 to vector<2x16xf32>
    %177 = arith.addf %176, %175 : vector<2x16xf32>
    %178 = arith.divf %176, %177 : vector<2x16xf32>
    %179 = vector.extract_strided_slice %140 {offsets = [0, 16], sizes = [2, 16], strides = [1, 1]} : vector<2x48xf32> to vector<2x16xf32>
    %180 = vector.extract_strided_slice %146 {offsets = [0, 16], sizes = [2, 16], strides = [1, 1]} : vector<2x48xf32> to vector<2x16xf32>
    %181 = arith.addf %179, %180 : vector<2x16xf32>
    %182 = arith.negf %181 : vector<2x16xf32>
    %183 = math.exp %182 : vector<2x16xf32>
    %cst_58 = arith.constant 1.000000e+00 : f32
    %184 = vector.broadcast %cst_58 : f32 to vector<2x16xf32>
    %185 = arith.addf %184, %183 : vector<2x16xf32>
    %186 = arith.divf %184, %185 : vector<2x16xf32>
    %187 = vector.extract_strided_slice %140 {offsets = [0, 32], sizes = [2, 16], strides = [1, 1]} : vector<2x48xf32> to vector<2x16xf32>
    %188 = vector.extract_strided_slice %146 {offsets = [0, 32], sizes = [2, 16], strides = [1, 1]} : vector<2x48xf32> to vector<2x16xf32>
    %189 = arith.mulf %178, %188 : vector<2x16xf32>
    %190 = arith.addf %187, %189 : vector<2x16xf32>
    %191 = math.tanh %190 : vector<2x16xf32>
    %192 = arith.subf %136, %191 : vector<2x16xf32>
    %193 = arith.mulf %186, %192 : vector<2x16xf32>
    %194 = arith.addf %191, %193 : vector<2x16xf32>
    %c3 = arith.constant 3 : index
    %c0_59 = arith.constant 0 : index
    %c0_60 = arith.constant 0 : index
    %195 = vector.load %arg9[%c3, %c0_59, %c0_60] : memref<8x2x96xf32, #tpu.memory_space<vmem>>, vector<1x2x48xf32>
    %196 = vector.shape_cast %195 : vector<1x2x48xf32> to vector<2x48xf32>
    %c4 = arith.constant 4 : index
    %c0_61 = arith.constant 0 : index
    %c48_62 = arith.constant 48 : index
    %197 = vector.load %arg9[%c4, %c0_61, %c48_62] : memref<8x2x96xf32, #tpu.memory_space<vmem>>, vector<1x2x48xf32>
    %198 = vector.shape_cast %197 : vector<1x2x48xf32> to vector<2x48xf32>
    %cst_63 = arith.constant dense<0.000000e+00> : vector<2x48xf32>
    %199 = tpu.matmul %170, %12, %cst_63 {dimension_numbers = #tpu.dot_dimension_numbers<[1], [0], [0], [1], [0, 0, 1, 1], [], []>} : vector<2x16xf32>, vector<16x48xf32>, vector<2x48xf32> -> vector<2x48xf32>
    %200 = vector.broadcast %16 : vector<1x48xf32> to vector<2x48xf32>
    %201 = arith.addf %199, %200 : vector<2x48xf32>
    %cst_64 = arith.constant dense<0.000000e+00> : vector<2x48xf32>
    %202 = tpu.matmul %194, %14, %cst_64 {dimension_numbers = #tpu.dot_dimension_numbers<[1], [0], [0], [1], [0, 0, 1, 1], [], []>} : vector<2x16xf32>, vector<16x48xf32>, vector<2x48xf32> -> vector<2x48xf32>
    %203 = vector.broadcast %18 : vector<1x48xf32> to vector<2x48xf32>
    %204 = arith.addf %202, %203 : vector<2x48xf32>
    %205 = vector.extract_strided_slice %196 {offsets = [0, 0], sizes = [2, 16], strides = [1, 1]} : vector<2x48xf32> to vector<2x16xf32>
    %206 = vector.extract_strided_slice %201 {offsets = [0, 0], sizes = [2, 16], strides = [1, 1]} : vector<2x48xf32> to vector<2x16xf32>
    %207 = arith.addf %205, %206 : vector<2x16xf32>
    %208 = arith.negf %207 : vector<2x16xf32>
    %209 = math.exp %208 : vector<2x16xf32>
    %cst_65 = arith.constant 1.000000e+00 : f32
    %210 = vector.broadcast %cst_65 : f32 to vector<2x16xf32>
    %211 = arith.addf %210, %209 : vector<2x16xf32>
    %212 = arith.divf %210, %211 : vector<2x16xf32>
    %213 = vector.extract_strided_slice %196 {offsets = [0, 16], sizes = [2, 16], strides = [1, 1]} : vector<2x48xf32> to vector<2x16xf32>
    %214 = vector.extract_strided_slice %201 {offsets = [0, 16], sizes = [2, 16], strides = [1, 1]} : vector<2x48xf32> to vector<2x16xf32>
    %215 = arith.addf %213, %214 : vector<2x16xf32>
    %216 = arith.negf %215 : vector<2x16xf32>
    %217 = math.exp %216 : vector<2x16xf32>
    %cst_66 = arith.constant 1.000000e+00 : f32
    %218 = vector.broadcast %cst_66 : f32 to vector<2x16xf32>
    %219 = arith.addf %218, %217 : vector<2x16xf32>
    %220 = arith.divf %218, %219 : vector<2x16xf32>
    %221 = vector.extract_strided_slice %196 {offsets = [0, 32], sizes = [2, 16], strides = [1, 1]} : vector<2x48xf32> to vector<2x16xf32>
    %222 = vector.extract_strided_slice %201 {offsets = [0, 32], sizes = [2, 16], strides = [1, 1]} : vector<2x48xf32> to vector<2x16xf32>
    %223 = arith.mulf %212, %222 : vector<2x16xf32>
    %224 = arith.addf %221, %223 : vector<2x16xf32>
    %225 = math.tanh %224 : vector<2x16xf32>
    %226 = arith.subf %170, %225 : vector<2x16xf32>
    %227 = arith.mulf %220, %226 : vector<2x16xf32>
    %228 = arith.addf %225, %227 : vector<2x16xf32>
    %229 = vector.extract_strided_slice %198 {offsets = [0, 0], sizes = [2, 16], strides = [1, 1]} : vector<2x48xf32> to vector<2x16xf32>
    %230 = vector.extract_strided_slice %204 {offsets = [0, 0], sizes = [2, 16], strides = [1, 1]} : vector<2x48xf32> to vector<2x16xf32>
    %231 = arith.addf %229, %230 : vector<2x16xf32>
    %232 = arith.negf %231 : vector<2x16xf32>
    %233 = math.exp %232 : vector<2x16xf32>
    %cst_67 = arith.constant 1.000000e+00 : f32
    %234 = vector.broadcast %cst_67 : f32 to vector<2x16xf32>
    %235 = arith.addf %234, %233 : vector<2x16xf32>
    %236 = arith.divf %234, %235 : vector<2x16xf32>
    %237 = vector.extract_strided_slice %198 {offsets = [0, 16], sizes = [2, 16], strides = [1, 1]} : vector<2x48xf32> to vector<2x16xf32>
    %238 = vector.extract_strided_slice %204 {offsets = [0, 16], sizes = [2, 16], strides = [1, 1]} : vector<2x48xf32> to vector<2x16xf32>
    %239 = arith.addf %237, %238 : vector<2x16xf32>
    %240 = arith.negf %239 : vector<2x16xf32>
    %241 = math.exp %240 : vector<2x16xf32>
    %cst_68 = arith.constant 1.000000e+00 : f32
    %242 = vector.broadcast %cst_68 : f32 to vector<2x16xf32>
    %243 = arith.addf %242, %241 : vector<2x16xf32>
    %244 = arith.divf %242, %243 : vector<2x16xf32>
    %245 = vector.extract_strided_slice %198 {offsets = [0, 32], sizes = [2, 16], strides = [1, 1]} : vector<2x48xf32> to vector<2x16xf32>
    %246 = vector.extract_strided_slice %204 {offsets = [0, 32], sizes = [2, 16], strides = [1, 1]} : vector<2x48xf32> to vector<2x16xf32>
    %247 = arith.mulf %236, %246 : vector<2x16xf32>
    %248 = arith.addf %245, %247 : vector<2x16xf32>
    %249 = math.tanh %248 : vector<2x16xf32>
    %250 = arith.subf %194, %249 : vector<2x16xf32>
    %251 = arith.mulf %244, %250 : vector<2x16xf32>
    %252 = arith.addf %249, %251 : vector<2x16xf32>
    %c4_69 = arith.constant 4 : index
    %c0_70 = arith.constant 0 : index
    %c0_71 = arith.constant 0 : index
    %253 = vector.load %arg9[%c4_69, %c0_70, %c0_71] : memref<8x2x96xf32, #tpu.memory_space<vmem>>, vector<1x2x48xf32>
    %254 = vector.shape_cast %253 : vector<1x2x48xf32> to vector<2x48xf32>
    %c3_72 = arith.constant 3 : index
    %c0_73 = arith.constant 0 : index
    %c48_74 = arith.constant 48 : index
    %255 = vector.load %arg9[%c3_72, %c0_73, %c48_74] : memref<8x2x96xf32, #tpu.memory_space<vmem>>, vector<1x2x48xf32>
    %256 = vector.shape_cast %255 : vector<1x2x48xf32> to vector<2x48xf32>
    %cst_75 = arith.constant dense<0.000000e+00> : vector<2x48xf32>
    %257 = tpu.matmul %228, %12, %cst_75 {dimension_numbers = #tpu.dot_dimension_numbers<[1], [0], [0], [1], [0, 0, 1, 1], [], []>} : vector<2x16xf32>, vector<16x48xf32>, vector<2x48xf32> -> vector<2x48xf32>
    %258 = vector.broadcast %16 : vector<1x48xf32> to vector<2x48xf32>
    %259 = arith.addf %257, %258 : vector<2x48xf32>
    %cst_76 = arith.constant dense<0.000000e+00> : vector<2x48xf32>
    %260 = tpu.matmul %252, %14, %cst_76 {dimension_numbers = #tpu.dot_dimension_numbers<[1], [0], [0], [1], [0, 0, 1, 1], [], []>} : vector<2x16xf32>, vector<16x48xf32>, vector<2x48xf32> -> vector<2x48xf32>
    %261 = vector.broadcast %18 : vector<1x48xf32> to vector<2x48xf32>
    %262 = arith.addf %260, %261 : vector<2x48xf32>
    %263 = vector.extract_strided_slice %254 {offsets = [0, 0], sizes = [2, 16], strides = [1, 1]} : vector<2x48xf32> to vector<2x16xf32>
    %264 = vector.extract_strided_slice %259 {offsets = [0, 0], sizes = [2, 16], strides = [1, 1]} : vector<2x48xf32> to vector<2x16xf32>
    %265 = arith.addf %263, %264 : vector<2x16xf32>
    %266 = arith.negf %265 : vector<2x16xf32>
    %267 = math.exp %266 : vector<2x16xf32>
    %cst_77 = arith.constant 1.000000e+00 : f32
    %268 = vector.broadcast %cst_77 : f32 to vector<2x16xf32>
    %269 = arith.addf %268, %267 : vector<2x16xf32>
    %270 = arith.divf %268, %269 : vector<2x16xf32>
    %271 = vector.extract_strided_slice %254 {offsets = [0, 16], sizes = [2, 16], strides = [1, 1]} : vector<2x48xf32> to vector<2x16xf32>
    %272 = vector.extract_strided_slice %259 {offsets = [0, 16], sizes = [2, 16], strides = [1, 1]} : vector<2x48xf32> to vector<2x16xf32>
    %273 = arith.addf %271, %272 : vector<2x16xf32>
    %274 = arith.negf %273 : vector<2x16xf32>
    %275 = math.exp %274 : vector<2x16xf32>
    %cst_78 = arith.constant 1.000000e+00 : f32
    %276 = vector.broadcast %cst_78 : f32 to vector<2x16xf32>
    %277 = arith.addf %276, %275 : vector<2x16xf32>
    %278 = arith.divf %276, %277 : vector<2x16xf32>
    %279 = vector.extract_strided_slice %254 {offsets = [0, 32], sizes = [2, 16], strides = [1, 1]} : vector<2x48xf32> to vector<2x16xf32>
    %280 = vector.extract_strided_slice %259 {offsets = [0, 32], sizes = [2, 16], strides = [1, 1]} : vector<2x48xf32> to vector<2x16xf32>
    %281 = arith.mulf %270, %280 : vector<2x16xf32>
    %282 = arith.addf %279, %281 : vector<2x16xf32>
    %283 = math.tanh %282 : vector<2x16xf32>
    %284 = arith.subf %228, %283 : vector<2x16xf32>
    %285 = arith.mulf %278, %284 : vector<2x16xf32>
    %286 = arith.addf %283, %285 : vector<2x16xf32>
    %287 = vector.extract_strided_slice %256 {offsets = [0, 0], sizes = [2, 16], strides = [1, 1]} : vector<2x48xf32> to vector<2x16xf32>
    %288 = vector.extract_strided_slice %262 {offsets = [0, 0], sizes = [2, 16], strides = [1, 1]} : vector<2x48xf32> to vector<2x16xf32>
    %289 = arith.addf %287, %288 : vector<2x16xf32>
    %290 = arith.negf %289 : vector<2x16xf32>
    %291 = math.exp %290 : vector<2x16xf32>
    %cst_79 = arith.constant 1.000000e+00 : f32
    %292 = vector.broadcast %cst_79 : f32 to vector<2x16xf32>
    %293 = arith.addf %292, %291 : vector<2x16xf32>
    %294 = arith.divf %292, %293 : vector<2x16xf32>
    %295 = vector.extract_strided_slice %256 {offsets = [0, 16], sizes = [2, 16], strides = [1, 1]} : vector<2x48xf32> to vector<2x16xf32>
    %296 = vector.extract_strided_slice %262 {offsets = [0, 16], sizes = [2, 16], strides = [1, 1]} : vector<2x48xf32> to vector<2x16xf32>
    %297 = arith.addf %295, %296 : vector<2x16xf32>
    %298 = arith.negf %297 : vector<2x16xf32>
    %299 = math.exp %298 : vector<2x16xf32>
    %cst_80 = arith.constant 1.000000e+00 : f32
    %300 = vector.broadcast %cst_80 : f32 to vector<2x16xf32>
    %301 = arith.addf %300, %299 : vector<2x16xf32>
    %302 = arith.divf %300, %301 : vector<2x16xf32>
    %303 = vector.extract_strided_slice %256 {offsets = [0, 32], sizes = [2, 16], strides = [1, 1]} : vector<2x48xf32> to vector<2x16xf32>
    %304 = vector.extract_strided_slice %262 {offsets = [0, 32], sizes = [2, 16], strides = [1, 1]} : vector<2x48xf32> to vector<2x16xf32>
    %305 = arith.mulf %294, %304 : vector<2x16xf32>
    %306 = arith.addf %303, %305 : vector<2x16xf32>
    %307 = math.tanh %306 : vector<2x16xf32>
    %308 = arith.subf %252, %307 : vector<2x16xf32>
    %309 = arith.mulf %302, %308 : vector<2x16xf32>
    %310 = arith.addf %307, %309 : vector<2x16xf32>
    %c5_81 = arith.constant 5 : index
    %c0_82 = arith.constant 0 : index
    %c0_83 = arith.constant 0 : index
    %311 = vector.load %arg9[%c5_81, %c0_82, %c0_83] : memref<8x2x96xf32, #tpu.memory_space<vmem>>, vector<1x2x48xf32>
    %312 = vector.shape_cast %311 : vector<1x2x48xf32> to vector<2x48xf32>
    %c2_84 = arith.constant 2 : index
    %c0_85 = arith.constant 0 : index
    %c48_86 = arith.constant 48 : index
    %313 = vector.load %arg9[%c2_84, %c0_85, %c48_86] : memref<8x2x96xf32, #tpu.memory_space<vmem>>, vector<1x2x48xf32>
    %314 = vector.shape_cast %313 : vector<1x2x48xf32> to vector<2x48xf32>
    %cst_87 = arith.constant dense<0.000000e+00> : vector<2x48xf32>
    %315 = tpu.matmul %286, %12, %cst_87 {dimension_numbers = #tpu.dot_dimension_numbers<[1], [0], [0], [1], [0, 0, 1, 1], [], []>} : vector<2x16xf32>, vector<16x48xf32>, vector<2x48xf32> -> vector<2x48xf32>
    %316 = vector.broadcast %16 : vector<1x48xf32> to vector<2x48xf32>
    %317 = arith.addf %315, %316 : vector<2x48xf32>
    %cst_88 = arith.constant dense<0.000000e+00> : vector<2x48xf32>
    %318 = tpu.matmul %310, %14, %cst_88 {dimension_numbers = #tpu.dot_dimension_numbers<[1], [0], [0], [1], [0, 0, 1, 1], [], []>} : vector<2x16xf32>, vector<16x48xf32>, vector<2x48xf32> -> vector<2x48xf32>
    %319 = vector.broadcast %18 : vector<1x48xf32> to vector<2x48xf32>
    %320 = arith.addf %318, %319 : vector<2x48xf32>
    %321 = vector.extract_strided_slice %312 {offsets = [0, 0], sizes = [2, 16], strides = [1, 1]} : vector<2x48xf32> to vector<2x16xf32>
    %322 = vector.extract_strided_slice %317 {offsets = [0, 0], sizes = [2, 16], strides = [1, 1]} : vector<2x48xf32> to vector<2x16xf32>
    %323 = arith.addf %321, %322 : vector<2x16xf32>
    %324 = arith.negf %323 : vector<2x16xf32>
    %325 = math.exp %324 : vector<2x16xf32>
    %cst_89 = arith.constant 1.000000e+00 : f32
    %326 = vector.broadcast %cst_89 : f32 to vector<2x16xf32>
    %327 = arith.addf %326, %325 : vector<2x16xf32>
    %328 = arith.divf %326, %327 : vector<2x16xf32>
    %329 = vector.extract_strided_slice %312 {offsets = [0, 16], sizes = [2, 16], strides = [1, 1]} : vector<2x48xf32> to vector<2x16xf32>
    %330 = vector.extract_strided_slice %317 {offsets = [0, 16], sizes = [2, 16], strides = [1, 1]} : vector<2x48xf32> to vector<2x16xf32>
    %331 = arith.addf %329, %330 : vector<2x16xf32>
    %332 = arith.negf %331 : vector<2x16xf32>
    %333 = math.exp %332 : vector<2x16xf32>
    %cst_90 = arith.constant 1.000000e+00 : f32
    %334 = vector.broadcast %cst_90 : f32 to vector<2x16xf32>
    %335 = arith.addf %334, %333 : vector<2x16xf32>
    %336 = arith.divf %334, %335 : vector<2x16xf32>
    %337 = vector.extract_strided_slice %312 {offsets = [0, 32], sizes = [2, 16], strides = [1, 1]} : vector<2x48xf32> to vector<2x16xf32>
    %338 = vector.extract_strided_slice %317 {offsets = [0, 32], sizes = [2, 16], strides = [1, 1]} : vector<2x48xf32> to vector<2x16xf32>
    %339 = arith.mulf %328, %338 : vector<2x16xf32>
    %340 = arith.addf %337, %339 : vector<2x16xf32>
    %341 = math.tanh %340 : vector<2x16xf32>
    %342 = arith.subf %286, %341 : vector<2x16xf32>
    %343 = arith.mulf %336, %342 : vector<2x16xf32>
    %344 = arith.addf %341, %343 : vector<2x16xf32>
    %345 = vector.extract_strided_slice %314 {offsets = [0, 0], sizes = [2, 16], strides = [1, 1]} : vector<2x48xf32> to vector<2x16xf32>
    %346 = vector.extract_strided_slice %320 {offsets = [0, 0], sizes = [2, 16], strides = [1, 1]} : vector<2x48xf32> to vector<2x16xf32>
    %347 = arith.addf %345, %346 : vector<2x16xf32>
    %348 = arith.negf %347 : vector<2x16xf32>
    %349 = math.exp %348 : vector<2x16xf32>
    %cst_91 = arith.constant 1.000000e+00 : f32
    %350 = vector.broadcast %cst_91 : f32 to vector<2x16xf32>
    %351 = arith.addf %350, %349 : vector<2x16xf32>
    %352 = arith.divf %350, %351 : vector<2x16xf32>
    %353 = vector.extract_strided_slice %314 {offsets = [0, 16], sizes = [2, 16], strides = [1, 1]} : vector<2x48xf32> to vector<2x16xf32>
    %354 = vector.extract_strided_slice %320 {offsets = [0, 16], sizes = [2, 16], strides = [1, 1]} : vector<2x48xf32> to vector<2x16xf32>
    %355 = arith.addf %353, %354 : vector<2x16xf32>
    %356 = arith.negf %355 : vector<2x16xf32>
    %357 = math.exp %356 : vector<2x16xf32>
    %cst_92 = arith.constant 1.000000e+00 : f32
    %358 = vector.broadcast %cst_92 : f32 to vector<2x16xf32>
    %359 = arith.addf %358, %357 : vector<2x16xf32>
    %360 = arith.divf %358, %359 : vector<2x16xf32>
    %361 = vector.extract_strided_slice %314 {offsets = [0, 32], sizes = [2, 16], strides = [1, 1]} : vector<2x48xf32> to vector<2x16xf32>
    %362 = vector.extract_strided_slice %320 {offsets = [0, 32], sizes = [2, 16], strides = [1, 1]} : vector<2x48xf32> to vector<2x16xf32>
    %363 = arith.mulf %352, %362 : vector<2x16xf32>
    %364 = arith.addf %361, %363 : vector<2x16xf32>
    %365 = math.tanh %364 : vector<2x16xf32>
    %366 = arith.subf %310, %365 : vector<2x16xf32>
    %367 = arith.mulf %360, %366 : vector<2x16xf32>
    %368 = arith.addf %365, %367 : vector<2x16xf32>
    %c6_93 = arith.constant 6 : index
    %c0_94 = arith.constant 0 : index
    %c0_95 = arith.constant 0 : index
    %369 = vector.load %arg9[%c6_93, %c0_94, %c0_95] : memref<8x2x96xf32, #tpu.memory_space<vmem>>, vector<1x2x48xf32>
    %370 = vector.shape_cast %369 : vector<1x2x48xf32> to vector<2x48xf32>
    %c1_96 = arith.constant 1 : index
    %c0_97 = arith.constant 0 : index
    %c48_98 = arith.constant 48 : index
    %371 = vector.load %arg9[%c1_96, %c0_97, %c48_98] : memref<8x2x96xf32, #tpu.memory_space<vmem>>, vector<1x2x48xf32>
    %372 = vector.shape_cast %371 : vector<1x2x48xf32> to vector<2x48xf32>
    %cst_99 = arith.constant dense<0.000000e+00> : vector<2x48xf32>
    %373 = tpu.matmul %344, %12, %cst_99 {dimension_numbers = #tpu.dot_dimension_numbers<[1], [0], [0], [1], [0, 0, 1, 1], [], []>} : vector<2x16xf32>, vector<16x48xf32>, vector<2x48xf32> -> vector<2x48xf32>
    %374 = vector.broadcast %16 : vector<1x48xf32> to vector<2x48xf32>
    %375 = arith.addf %373, %374 : vector<2x48xf32>
    %cst_100 = arith.constant dense<0.000000e+00> : vector<2x48xf32>
    %376 = tpu.matmul %368, %14, %cst_100 {dimension_numbers = #tpu.dot_dimension_numbers<[1], [0], [0], [1], [0, 0, 1, 1], [], []>} : vector<2x16xf32>, vector<16x48xf32>, vector<2x48xf32> -> vector<2x48xf32>
    %377 = vector.broadcast %18 : vector<1x48xf32> to vector<2x48xf32>
    %378 = arith.addf %376, %377 : vector<2x48xf32>
    %379 = vector.extract_strided_slice %370 {offsets = [0, 0], sizes = [2, 16], strides = [1, 1]} : vector<2x48xf32> to vector<2x16xf32>
    %380 = vector.extract_strided_slice %375 {offsets = [0, 0], sizes = [2, 16], strides = [1, 1]} : vector<2x48xf32> to vector<2x16xf32>
    %381 = arith.addf %379, %380 : vector<2x16xf32>
    %382 = arith.negf %381 : vector<2x16xf32>
    %383 = math.exp %382 : vector<2x16xf32>
    %cst_101 = arith.constant 1.000000e+00 : f32
    %384 = vector.broadcast %cst_101 : f32 to vector<2x16xf32>
    %385 = arith.addf %384, %383 : vector<2x16xf32>
    %386 = arith.divf %384, %385 : vector<2x16xf32>
    %387 = vector.extract_strided_slice %370 {offsets = [0, 16], sizes = [2, 16], strides = [1, 1]} : vector<2x48xf32> to vector<2x16xf32>
    %388 = vector.extract_strided_slice %375 {offsets = [0, 16], sizes = [2, 16], strides = [1, 1]} : vector<2x48xf32> to vector<2x16xf32>
    %389 = arith.addf %387, %388 : vector<2x16xf32>
    %390 = arith.negf %389 : vector<2x16xf32>
    %391 = math.exp %390 : vector<2x16xf32>
    %cst_102 = arith.constant 1.000000e+00 : f32
    %392 = vector.broadcast %cst_102 : f32 to vector<2x16xf32>
    %393 = arith.addf %392, %391 : vector<2x16xf32>
    %394 = arith.divf %392, %393 : vector<2x16xf32>
    %395 = vector.extract_strided_slice %370 {offsets = [0, 32], sizes = [2, 16], strides = [1, 1]} : vector<2x48xf32> to vector<2x16xf32>
    %396 = vector.extract_strided_slice %375 {offsets = [0, 32], sizes = [2, 16], strides = [1, 1]} : vector<2x48xf32> to vector<2x16xf32>
    %397 = arith.mulf %386, %396 : vector<2x16xf32>
    %398 = arith.addf %395, %397 : vector<2x16xf32>
    %399 = math.tanh %398 : vector<2x16xf32>
    %400 = arith.subf %344, %399 : vector<2x16xf32>
    %401 = arith.mulf %394, %400 : vector<2x16xf32>
    %402 = arith.addf %399, %401 : vector<2x16xf32>
    %403 = vector.extract_strided_slice %372 {offsets = [0, 0], sizes = [2, 16], strides = [1, 1]} : vector<2x48xf32> to vector<2x16xf32>
    %404 = vector.extract_strided_slice %378 {offsets = [0, 0], sizes = [2, 16], strides = [1, 1]} : vector<2x48xf32> to vector<2x16xf32>
    %405 = arith.addf %403, %404 : vector<2x16xf32>
    %406 = arith.negf %405 : vector<2x16xf32>
    %407 = math.exp %406 : vector<2x16xf32>
    %cst_103 = arith.constant 1.000000e+00 : f32
    %408 = vector.broadcast %cst_103 : f32 to vector<2x16xf32>
    %409 = arith.addf %408, %407 : vector<2x16xf32>
    %410 = arith.divf %408, %409 : vector<2x16xf32>
    %411 = vector.extract_strided_slice %372 {offsets = [0, 16], sizes = [2, 16], strides = [1, 1]} : vector<2x48xf32> to vector<2x16xf32>
    %412 = vector.extract_strided_slice %378 {offsets = [0, 16], sizes = [2, 16], strides = [1, 1]} : vector<2x48xf32> to vector<2x16xf32>
    %413 = arith.addf %411, %412 : vector<2x16xf32>
    %414 = arith.negf %413 : vector<2x16xf32>
    %415 = math.exp %414 : vector<2x16xf32>
    %cst_104 = arith.constant 1.000000e+00 : f32
    %416 = vector.broadcast %cst_104 : f32 to vector<2x16xf32>
    %417 = arith.addf %416, %415 : vector<2x16xf32>
    %418 = arith.divf %416, %417 : vector<2x16xf32>
    %419 = vector.extract_strided_slice %372 {offsets = [0, 32], sizes = [2, 16], strides = [1, 1]} : vector<2x48xf32> to vector<2x16xf32>
    %420 = vector.extract_strided_slice %378 {offsets = [0, 32], sizes = [2, 16], strides = [1, 1]} : vector<2x48xf32> to vector<2x16xf32>
    %421 = arith.mulf %410, %420 : vector<2x16xf32>
    %422 = arith.addf %419, %421 : vector<2x16xf32>
    %423 = math.tanh %422 : vector<2x16xf32>
    %424 = arith.subf %368, %423 : vector<2x16xf32>
    %425 = arith.mulf %418, %424 : vector<2x16xf32>
    %426 = arith.addf %423, %425 : vector<2x16xf32>
    %c7_105 = arith.constant 7 : index
    %c0_106 = arith.constant 0 : index
    %c0_107 = arith.constant 0 : index
    %427 = vector.load %arg9[%c7_105, %c0_106, %c0_107] : memref<8x2x96xf32, #tpu.memory_space<vmem>>, vector<1x2x48xf32>
    %428 = vector.shape_cast %427 : vector<1x2x48xf32> to vector<2x48xf32>
    %c0_108 = arith.constant 0 : index
    %c0_109 = arith.constant 0 : index
    %c48_110 = arith.constant 48 : index
    %429 = vector.load %arg9[%c0_108, %c0_109, %c48_110] : memref<8x2x96xf32, #tpu.memory_space<vmem>>, vector<1x2x48xf32>
    %430 = vector.shape_cast %429 : vector<1x2x48xf32> to vector<2x48xf32>
    %cst_111 = arith.constant dense<0.000000e+00> : vector<2x48xf32>
    %431 = tpu.matmul %402, %12, %cst_111 {dimension_numbers = #tpu.dot_dimension_numbers<[1], [0], [0], [1], [0, 0, 1, 1], [], []>} : vector<2x16xf32>, vector<16x48xf32>, vector<2x48xf32> -> vector<2x48xf32>
    %432 = vector.broadcast %16 : vector<1x48xf32> to vector<2x48xf32>
    %433 = arith.addf %431, %432 : vector<2x48xf32>
    %cst_112 = arith.constant dense<0.000000e+00> : vector<2x48xf32>
    %434 = tpu.matmul %426, %14, %cst_112 {dimension_numbers = #tpu.dot_dimension_numbers<[1], [0], [0], [1], [0, 0, 1, 1], [], []>} : vector<2x16xf32>, vector<16x48xf32>, vector<2x48xf32> -> vector<2x48xf32>
    %435 = vector.broadcast %18 : vector<1x48xf32> to vector<2x48xf32>
    %436 = arith.addf %434, %435 : vector<2x48xf32>
    %437 = vector.extract_strided_slice %428 {offsets = [0, 0], sizes = [2, 16], strides = [1, 1]} : vector<2x48xf32> to vector<2x16xf32>
    %438 = vector.extract_strided_slice %433 {offsets = [0, 0], sizes = [2, 16], strides = [1, 1]} : vector<2x48xf32> to vector<2x16xf32>
    %439 = arith.addf %437, %438 : vector<2x16xf32>
    %440 = arith.negf %439 : vector<2x16xf32>
    %441 = math.exp %440 : vector<2x16xf32>
    %cst_113 = arith.constant 1.000000e+00 : f32
    %442 = vector.broadcast %cst_113 : f32 to vector<2x16xf32>
    %443 = arith.addf %442, %441 : vector<2x16xf32>
    %444 = arith.divf %442, %443 : vector<2x16xf32>
    %445 = vector.extract_strided_slice %428 {offsets = [0, 16], sizes = [2, 16], strides = [1, 1]} : vector<2x48xf32> to vector<2x16xf32>
    %446 = vector.extract_strided_slice %433 {offsets = [0, 16], sizes = [2, 16], strides = [1, 1]} : vector<2x48xf32> to vector<2x16xf32>
    %447 = arith.addf %445, %446 : vector<2x16xf32>
    %448 = arith.negf %447 : vector<2x16xf32>
    %449 = math.exp %448 : vector<2x16xf32>
    %cst_114 = arith.constant 1.000000e+00 : f32
    %450 = vector.broadcast %cst_114 : f32 to vector<2x16xf32>
    %451 = arith.addf %450, %449 : vector<2x16xf32>
    %452 = arith.divf %450, %451 : vector<2x16xf32>
    %453 = vector.extract_strided_slice %428 {offsets = [0, 32], sizes = [2, 16], strides = [1, 1]} : vector<2x48xf32> to vector<2x16xf32>
    %454 = vector.extract_strided_slice %433 {offsets = [0, 32], sizes = [2, 16], strides = [1, 1]} : vector<2x48xf32> to vector<2x16xf32>
    %455 = arith.mulf %444, %454 : vector<2x16xf32>
    %456 = arith.addf %453, %455 : vector<2x16xf32>
    %457 = math.tanh %456 : vector<2x16xf32>
    %458 = arith.subf %402, %457 : vector<2x16xf32>
    %459 = arith.mulf %452, %458 : vector<2x16xf32>
    %460 = arith.addf %457, %459 : vector<2x16xf32>
    %461 = vector.extract_strided_slice %430 {offsets = [0, 0], sizes = [2, 16], strides = [1, 1]} : vector<2x48xf32> to vector<2x16xf32>
    %462 = vector.extract_strided_slice %436 {offsets = [0, 0], sizes = [2, 16], strides = [1, 1]} : vector<2x48xf32> to vector<2x16xf32>
    %463 = arith.addf %461, %462 : vector<2x16xf32>
    %464 = arith.negf %463 : vector<2x16xf32>
    %465 = math.exp %464 : vector<2x16xf32>
    %cst_115 = arith.constant 1.000000e+00 : f32
    %466 = vector.broadcast %cst_115 : f32 to vector<2x16xf32>
    %467 = arith.addf %466, %465 : vector<2x16xf32>
    %468 = arith.divf %466, %467 : vector<2x16xf32>
    %469 = vector.extract_strided_slice %430 {offsets = [0, 16], sizes = [2, 16], strides = [1, 1]} : vector<2x48xf32> to vector<2x16xf32>
    %470 = vector.extract_strided_slice %436 {offsets = [0, 16], sizes = [2, 16], strides = [1, 1]} : vector<2x48xf32> to vector<2x16xf32>
    %471 = arith.addf %469, %470 : vector<2x16xf32>
    %472 = arith.negf %471 : vector<2x16xf32>
    %473 = math.exp %472 : vector<2x16xf32>
    %cst_116 = arith.constant 1.000000e+00 : f32
    %474 = vector.broadcast %cst_116 : f32 to vector<2x16xf32>
    %475 = arith.addf %474, %473 : vector<2x16xf32>
    %476 = arith.divf %474, %475 : vector<2x16xf32>
    %477 = vector.extract_strided_slice %430 {offsets = [0, 32], sizes = [2, 16], strides = [1, 1]} : vector<2x48xf32> to vector<2x16xf32>
    %478 = vector.extract_strided_slice %436 {offsets = [0, 32], sizes = [2, 16], strides = [1, 1]} : vector<2x48xf32> to vector<2x16xf32>
    %479 = arith.mulf %468, %478 : vector<2x16xf32>
    %480 = arith.addf %477, %479 : vector<2x16xf32>
    %481 = math.tanh %480 : vector<2x16xf32>
    %482 = arith.subf %426, %481 : vector<2x16xf32>
    %483 = arith.mulf %476, %482 : vector<2x16xf32>
    %484 = arith.addf %481, %483 : vector<2x16xf32>
    %485 = vector.shape_cast %54 : vector<2x16xf32> to vector<1x2x16xf32>
    %486 = vector.shape_cast %112 : vector<2x16xf32> to vector<1x2x16xf32>
    %487 = vector.shape_cast %170 : vector<2x16xf32> to vector<1x2x16xf32>
    %488 = vector.shape_cast %228 : vector<2x16xf32> to vector<1x2x16xf32>
    %489 = vector.shape_cast %286 : vector<2x16xf32> to vector<1x2x16xf32>
    %490 = vector.shape_cast %344 : vector<2x16xf32> to vector<1x2x16xf32>
    %491 = vector.shape_cast %402 : vector<2x16xf32> to vector<1x2x16xf32>
    %492 = vector.shape_cast %460 : vector<2x16xf32> to vector<1x2x16xf32>
    %493 = tpu.concatenate %485, %486, %487, %488, %489, %490, %491, %492 in 0 : vector<1x2x16xf32>, vector<1x2x16xf32>, vector<1x2x16xf32>, vector<1x2x16xf32>, vector<1x2x16xf32>, vector<1x2x16xf32>, vector<1x2x16xf32>, vector<1x2x16xf32> -> vector<8x2x16xf32>
    %c0_117 = arith.constant 0 : index
    %c0_118 = arith.constant 0 : index
    %c0_119 = arith.constant 0 : index
    %c0_120 = arith.constant 0 : index
    %494 = vector.load %arg7[%c0_117, %c0_118, %c0_119, %c0_120] : memref<2x8x2x16xf32, #tpu.memory_space<vmem>>, vector<1x8x2x16xf32>
    %495 = vector.shape_cast %494 : vector<1x8x2x16xf32> to vector<8x2x16xf32>
    %496 = vector.shape_cast %493 : vector<8x2x16xf32> to vector<1x8x2x16xf32>
    tpu.vector_store %arg7[%c0_117, %c0_118, %c0_119, %c0_120], %496 {strides = array<i32>} : memref<2x8x2x16xf32, #tpu.memory_space<vmem>>, vector<1x8x2x16xf32>,
    %497 = vector.shape_cast %484 : vector<2x16xf32> to vector<1x2x16xf32>
    %498 = vector.shape_cast %426 : vector<2x16xf32> to vector<1x2x16xf32>
    %499 = vector.shape_cast %368 : vector<2x16xf32> to vector<1x2x16xf32>
    %500 = vector.shape_cast %310 : vector<2x16xf32> to vector<1x2x16xf32>
    %501 = vector.shape_cast %252 : vector<2x16xf32> to vector<1x2x16xf32>
    %502 = vector.shape_cast %194 : vector<2x16xf32> to vector<1x2x16xf32>
    %503 = vector.shape_cast %136 : vector<2x16xf32> to vector<1x2x16xf32>
    %504 = vector.shape_cast %78 : vector<2x16xf32> to vector<1x2x16xf32>
    %505 = tpu.concatenate %497, %498, %499, %500, %501, %502, %503, %504 in 0 : vector<1x2x16xf32>, vector<1x2x16xf32>, vector<1x2x16xf32>, vector<1x2x16xf32>, vector<1x2x16xf32>, vector<1x2x16xf32>, vector<1x2x16xf32>, vector<1x2x16xf32> -> vector<8x2x16xf32>
    %c1_121 = arith.constant 1 : index
    %c0_122 = arith.constant 0 : index
    %c0_123 = arith.constant 0 : index
    %c0_124 = arith.constant 0 : index
    %506 = vector.load %arg7[%c1_121, %c0_122, %c0_123, %c0_124] : memref<2x8x2x16xf32, #tpu.memory_space<vmem>>, vector<1x8x2x16xf32>
    %507 = vector.shape_cast %506 : vector<1x8x2x16xf32> to vector<8x2x16xf32>
    %508 = vector.shape_cast %505 : vector<8x2x16xf32> to vector<1x8x2x16xf32>
    tpu.vector_store %arg7[%c1_121, %c0_122, %c0_123, %c0_124], %508 {strides = array<i32>} : memref<2x8x2x16xf32, #tpu.memory_space<vmem>>, vector<1x8x2x16xf32>,
    %c0_125 = arith.constant 0 : index
    %c0_126 = arith.constant 0 : index
    %c0_127 = arith.constant 0 : index
    %c0_128 = arith.constant 0 : index
    %509 = vector.load %arg7[%c0_125, %c0_126, %c0_127, %c0_128] : memref<2x8x2x16xf32, #tpu.memory_space<vmem>>, vector<1x8x2x16xf32>
    %510 = vector.shape_cast %509 : vector<1x8x2x16xf32> to vector<8x2x16xf32>
    %511 = vector.shape_cast %510 : vector<8x2x16xf32> to vector<16x16xf32>
    %c1_129 = arith.constant 1 : index
    %c0_130 = arith.constant 0 : index
    %c0_131 = arith.constant 0 : index
    %c0_132 = arith.constant 0 : index
    %512 = vector.load %arg7[%c1_129, %c0_130, %c0_131, %c0_132] : memref<2x8x2x16xf32, #tpu.memory_space<vmem>>, vector<1x8x2x16xf32>
    %513 = vector.shape_cast %512 : vector<1x8x2x16xf32> to vector<8x2x16xf32>
    %514 = vector.shape_cast %513 : vector<8x2x16xf32> to vector<16x16xf32>
    %c1_133 = arith.constant 1 : index
    %c0_134 = arith.constant 0 : index
    %c0_135 = arith.constant 0 : index
    %515 = vector.load %arg1[%c1_133, %c0_134, %c0_135] : memref<2x32x96xf32, #tpu.memory_space<vmem>>, vector<1x16x96xf32>
    %516 = vector.shape_cast %515 : vector<1x16x96xf32> to vector<16x96xf32>
    %cst_136 = arith.constant dense<0.000000e+00> : vector<16x96xf32>
    %517 = tpu.matmul %511, %516, %cst_136 {dimension_numbers = #tpu.dot_dimension_numbers<[1], [0], [0], [1], [0, 0, 1, 1], [], []>} : vector<16x16xf32>, vector<16x96xf32>, vector<16x96xf32> -> vector<16x96xf32>
    %c1_137 = arith.constant 1 : index
    %c16 = arith.constant 16 : index
    %c0_138 = arith.constant 0 : index
    %518 = vector.load %arg1[%c1_137, %c16, %c0_138] : memref<2x32x96xf32, #tpu.memory_space<vmem>>, vector<1x16x96xf32>
    %519 = vector.shape_cast %518 : vector<1x16x96xf32> to vector<16x96xf32>
    %cst_139 = arith.constant dense<0.000000e+00> : vector<16x96xf32>
    %520 = tpu.matmul %514, %519, %cst_139 {dimension_numbers = #tpu.dot_dimension_numbers<[1], [0], [0], [1], [0, 0, 1, 1], [], []>} : vector<16x16xf32>, vector<16x96xf32>, vector<16x96xf32> -> vector<16x96xf32>
    %521 = arith.addf %517, %520 : vector<16x96xf32>
    %c1_140 = arith.constant 1 : index
    %c0_141 = arith.constant 0 : index
    %c0_142 = arith.constant 0 : index
    %522 = vector.load %arg2[%c1_140, %c0_141, %c0_142] : memref<2x1x96xf32, #tpu.memory_space<vmem>>, vector<1x1x96xf32>
    %523 = vector.shape_cast %522 : vector<1x1x96xf32> to vector<1x96xf32>
    %524 = vector.broadcast %523 : vector<1x96xf32> to vector<16x96xf32>
    %525 = arith.addf %521, %524 : vector<16x96xf32>
    %526 = vector.shape_cast %525 : vector<16x96xf32> to vector<8x2x96xf32>
    %c0_143 = arith.constant 0 : index
    %c0_144 = arith.constant 0 : index
    %c0_145 = arith.constant 0 : index
    %527 = vector.load %arg9[%c0_143, %c0_144, %c0_145] : memref<8x2x96xf32, #tpu.memory_space<vmem>>, vector<8x2x96xf32>
    tpu.vector_store %arg9[%c0_143, %c0_144, %c0_145], %526 {strides = array<i32>} : memref<8x2x96xf32, #tpu.memory_space<vmem>>, vector<8x2x96xf32>,
    %c1_146 = arith.constant 1 : index
    %c0_147 = arith.constant 0 : index
    %c0_148 = arith.constant 0 : index
    %c0_149 = arith.constant 0 : index
    %528 = vector.load %arg3[%c1_146, %c0_147, %c0_148, %c0_149] : memref<2x2x16x48xf32, #tpu.memory_space<vmem>>, vector<1x1x16x48xf32>
    %529 = vector.shape_cast %528 : vector<1x1x16x48xf32> to vector<16x48xf32>
    %c1_150 = arith.constant 1 : index
    %c1_151 = arith.constant 1 : index
    %c0_152 = arith.constant 0 : index
    %c0_153 = arith.constant 0 : index
    %530 = vector.load %arg3[%c1_150, %c1_151, %c0_152, %c0_153] : memref<2x2x16x48xf32, #tpu.memory_space<vmem>>, vector<1x1x16x48xf32>
    %531 = vector.shape_cast %530 : vector<1x1x16x48xf32> to vector<16x48xf32>
    %c1_154 = arith.constant 1 : index
    %c0_155 = arith.constant 0 : index
    %c0_156 = arith.constant 0 : index
    %c0_157 = arith.constant 0 : index
    %532 = vector.load %arg4[%c1_154, %c0_155, %c0_156, %c0_157] : memref<2x2x1x48xf32, #tpu.memory_space<vmem>>, vector<1x1x1x48xf32>
    %533 = vector.shape_cast %532 : vector<1x1x1x48xf32> to vector<1x48xf32>
    %c1_158 = arith.constant 1 : index
    %c1_159 = arith.constant 1 : index
    %c0_160 = arith.constant 0 : index
    %c0_161 = arith.constant 0 : index
    %534 = vector.load %arg4[%c1_158, %c1_159, %c0_160, %c0_161] : memref<2x2x1x48xf32, #tpu.memory_space<vmem>>, vector<1x1x1x48xf32>
    %535 = vector.shape_cast %534 : vector<1x1x1x48xf32> to vector<1x48xf32>
    %cst_162 = arith.constant 0.000000e+00 : f32
    %536 = vector.broadcast %cst_162 : f32 to vector<2x16xf32>
    %cst_163 = arith.constant 0.000000e+00 : f32
    %537 = vector.broadcast %cst_163 : f32 to vector<2x16xf32>
    %c0_164 = arith.constant 0 : index
    %c0_165 = arith.constant 0 : index
    %c0_166 = arith.constant 0 : index
    %538 = vector.load %arg9[%c0_164, %c0_165, %c0_166] : memref<8x2x96xf32, #tpu.memory_space<vmem>>, vector<1x2x48xf32>
    %539 = vector.shape_cast %538 : vector<1x2x48xf32> to vector<2x48xf32>
    %c7_167 = arith.constant 7 : index
    %c0_168 = arith.constant 0 : index
    %c48_169 = arith.constant 48 : index
    %540 = vector.load %arg9[%c7_167, %c0_168, %c48_169] : memref<8x2x96xf32, #tpu.memory_space<vmem>>, vector<1x2x48xf32>
    %541 = vector.shape_cast %540 : vector<1x2x48xf32> to vector<2x48xf32>
    %cst_170 = arith.constant dense<0.000000e+00> : vector<2x48xf32>
    %542 = tpu.matmul %536, %529, %cst_170 {dimension_numbers = #tpu.dot_dimension_numbers<[1], [0], [0], [1], [0, 0, 1, 1], [], []>} : vector<2x16xf32>, vector<16x48xf32>, vector<2x48xf32> -> vector<2x48xf32>
    %543 = vector.broadcast %533 : vector<1x48xf32> to vector<2x48xf32>
    %544 = arith.addf %542, %543 : vector<2x48xf32>
    %cst_171 = arith.constant dense<0.000000e+00> : vector<2x48xf32>
    %545 = tpu.matmul %537, %531, %cst_171 {dimension_numbers = #tpu.dot_dimension_numbers<[1], [0], [0], [1], [0, 0, 1, 1], [], []>} : vector<2x16xf32>, vector<16x48xf32>, vector<2x48xf32> -> vector<2x48xf32>
    %546 = vector.broadcast %535 : vector<1x48xf32> to vector<2x48xf32>
    %547 = arith.addf %545, %546 : vector<2x48xf32>
    %548 = vector.extract_strided_slice %539 {offsets = [0, 0], sizes = [2, 16], strides = [1, 1]} : vector<2x48xf32> to vector<2x16xf32>
    %549 = vector.extract_strided_slice %544 {offsets = [0, 0], sizes = [2, 16], strides = [1, 1]} : vector<2x48xf32> to vector<2x16xf32>
    %550 = arith.addf %548, %549 : vector<2x16xf32>
    %551 = arith.negf %550 : vector<2x16xf32>
    %552 = math.exp %551 : vector<2x16xf32>
    %cst_172 = arith.constant 1.000000e+00 : f32
    %553 = vector.broadcast %cst_172 : f32 to vector<2x16xf32>
    %554 = arith.addf %553, %552 : vector<2x16xf32>
    %555 = arith.divf %553, %554 : vector<2x16xf32>
    %556 = vector.extract_strided_slice %539 {offsets = [0, 16], sizes = [2, 16], strides = [1, 1]} : vector<2x48xf32> to vector<2x16xf32>
    %557 = vector.extract_strided_slice %544 {offsets = [0, 16], sizes = [2, 16], strides = [1, 1]} : vector<2x48xf32> to vector<2x16xf32>
    %558 = arith.addf %556, %557 : vector<2x16xf32>
    %559 = arith.negf %558 : vector<2x16xf32>
    %560 = math.exp %559 : vector<2x16xf32>
    %cst_173 = arith.constant 1.000000e+00 : f32
    %561 = vector.broadcast %cst_173 : f32 to vector<2x16xf32>
    %562 = arith.addf %561, %560 : vector<2x16xf32>
    %563 = arith.divf %561, %562 : vector<2x16xf32>
    %564 = vector.extract_strided_slice %539 {offsets = [0, 32], sizes = [2, 16], strides = [1, 1]} : vector<2x48xf32> to vector<2x16xf32>
    %565 = vector.extract_strided_slice %544 {offsets = [0, 32], sizes = [2, 16], strides = [1, 1]} : vector<2x48xf32> to vector<2x16xf32>
    %566 = arith.mulf %555, %565 : vector<2x16xf32>
    %567 = arith.addf %564, %566 : vector<2x16xf32>
    %568 = math.tanh %567 : vector<2x16xf32>
    %569 = arith.subf %536, %568 : vector<2x16xf32>
    %570 = arith.mulf %563, %569 : vector<2x16xf32>
    %571 = arith.addf %568, %570 : vector<2x16xf32>
    %572 = vector.extract_strided_slice %541 {offsets = [0, 0], sizes = [2, 16], strides = [1, 1]} : vector<2x48xf32> to vector<2x16xf32>
    %573 = vector.extract_strided_slice %547 {offsets = [0, 0], sizes = [2, 16], strides = [1, 1]} : vector<2x48xf32> to vector<2x16xf32>
    %574 = arith.addf %572, %573 : vector<2x16xf32>
    %575 = arith.negf %574 : vector<2x16xf32>
    %576 = math.exp %575 : vector<2x16xf32>
    %cst_174 = arith.constant 1.000000e+00 : f32
    %577 = vector.broadcast %cst_174 : f32 to vector<2x16xf32>
    %578 = arith.addf %577, %576 : vector<2x16xf32>
    %579 = arith.divf %577, %578 : vector<2x16xf32>
    %580 = vector.extract_strided_slice %541 {offsets = [0, 16], sizes = [2, 16], strides = [1, 1]} : vector<2x48xf32> to vector<2x16xf32>
    %581 = vector.extract_strided_slice %547 {offsets = [0, 16], sizes = [2, 16], strides = [1, 1]} : vector<2x48xf32> to vector<2x16xf32>
    %582 = arith.addf %580, %581 : vector<2x16xf32>
    %583 = arith.negf %582 : vector<2x16xf32>
    %584 = math.exp %583 : vector<2x16xf32>
    %cst_175 = arith.constant 1.000000e+00 : f32
    %585 = vector.broadcast %cst_175 : f32 to vector<2x16xf32>
    %586 = arith.addf %585, %584 : vector<2x16xf32>
    %587 = arith.divf %585, %586 : vector<2x16xf32>
    %588 = vector.extract_strided_slice %541 {offsets = [0, 32], sizes = [2, 16], strides = [1, 1]} : vector<2x48xf32> to vector<2x16xf32>
    %589 = vector.extract_strided_slice %547 {offsets = [0, 32], sizes = [2, 16], strides = [1, 1]} : vector<2x48xf32> to vector<2x16xf32>
    %590 = arith.mulf %579, %589 : vector<2x16xf32>
    %591 = arith.addf %588, %590 : vector<2x16xf32>
    %592 = math.tanh %591 : vector<2x16xf32>
    %593 = arith.subf %537, %592 : vector<2x16xf32>
    %594 = arith.mulf %587, %593 : vector<2x16xf32>
    %595 = arith.addf %592, %594 : vector<2x16xf32>
    %c1_176 = arith.constant 1 : index
    %c0_177 = arith.constant 0 : index
    %c0_178 = arith.constant 0 : index
    %596 = vector.load %arg9[%c1_176, %c0_177, %c0_178] : memref<8x2x96xf32, #tpu.memory_space<vmem>>, vector<1x2x48xf32>
    %597 = vector.shape_cast %596 : vector<1x2x48xf32> to vector<2x48xf32>
    %c6_179 = arith.constant 6 : index
    %c0_180 = arith.constant 0 : index
    %c48_181 = arith.constant 48 : index
    %598 = vector.load %arg9[%c6_179, %c0_180, %c48_181] : memref<8x2x96xf32, #tpu.memory_space<vmem>>, vector<1x2x48xf32>
    %599 = vector.shape_cast %598 : vector<1x2x48xf32> to vector<2x48xf32>
    %cst_182 = arith.constant dense<0.000000e+00> : vector<2x48xf32>
    %600 = tpu.matmul %571, %529, %cst_182 {dimension_numbers = #tpu.dot_dimension_numbers<[1], [0], [0], [1], [0, 0, 1, 1], [], []>} : vector<2x16xf32>, vector<16x48xf32>, vector<2x48xf32> -> vector<2x48xf32>
    %601 = vector.broadcast %533 : vector<1x48xf32> to vector<2x48xf32>
    %602 = arith.addf %600, %601 : vector<2x48xf32>
    %cst_183 = arith.constant dense<0.000000e+00> : vector<2x48xf32>
    %603 = tpu.matmul %595, %531, %cst_183 {dimension_numbers = #tpu.dot_dimension_numbers<[1], [0], [0], [1], [0, 0, 1, 1], [], []>} : vector<2x16xf32>, vector<16x48xf32>, vector<2x48xf32> -> vector<2x48xf32>
    %604 = vector.broadcast %535 : vector<1x48xf32> to vector<2x48xf32>
    %605 = arith.addf %603, %604 : vector<2x48xf32>
    %606 = vector.extract_strided_slice %597 {offsets = [0, 0], sizes = [2, 16], strides = [1, 1]} : vector<2x48xf32> to vector<2x16xf32>
    %607 = vector.extract_strided_slice %602 {offsets = [0, 0], sizes = [2, 16], strides = [1, 1]} : vector<2x48xf32> to vector<2x16xf32>
    %608 = arith.addf %606, %607 : vector<2x16xf32>
    %609 = arith.negf %608 : vector<2x16xf32>
    %610 = math.exp %609 : vector<2x16xf32>
    %cst_184 = arith.constant 1.000000e+00 : f32
    %611 = vector.broadcast %cst_184 : f32 to vector<2x16xf32>
    %612 = arith.addf %611, %610 : vector<2x16xf32>
    %613 = arith.divf %611, %612 : vector<2x16xf32>
    %614 = vector.extract_strided_slice %597 {offsets = [0, 16], sizes = [2, 16], strides = [1, 1]} : vector<2x48xf32> to vector<2x16xf32>
    %615 = vector.extract_strided_slice %602 {offsets = [0, 16], sizes = [2, 16], strides = [1, 1]} : vector<2x48xf32> to vector<2x16xf32>
    %616 = arith.addf %614, %615 : vector<2x16xf32>
    %617 = arith.negf %616 : vector<2x16xf32>
    %618 = math.exp %617 : vector<2x16xf32>
    %cst_185 = arith.constant 1.000000e+00 : f32
    %619 = vector.broadcast %cst_185 : f32 to vector<2x16xf32>
    %620 = arith.addf %619, %618 : vector<2x16xf32>
    %621 = arith.divf %619, %620 : vector<2x16xf32>
    %622 = vector.extract_strided_slice %597 {offsets = [0, 32], sizes = [2, 16], strides = [1, 1]} : vector<2x48xf32> to vector<2x16xf32>
    %623 = vector.extract_strided_slice %602 {offsets = [0, 32], sizes = [2, 16], strides = [1, 1]} : vector<2x48xf32> to vector<2x16xf32>
    %624 = arith.mulf %613, %623 : vector<2x16xf32>
    %625 = arith.addf %622, %624 : vector<2x16xf32>
    %626 = math.tanh %625 : vector<2x16xf32>
    %627 = arith.subf %571, %626 : vector<2x16xf32>
    %628 = arith.mulf %621, %627 : vector<2x16xf32>
    %629 = arith.addf %626, %628 : vector<2x16xf32>
    %630 = vector.extract_strided_slice %599 {offsets = [0, 0], sizes = [2, 16], strides = [1, 1]} : vector<2x48xf32> to vector<2x16xf32>
    %631 = vector.extract_strided_slice %605 {offsets = [0, 0], sizes = [2, 16], strides = [1, 1]} : vector<2x48xf32> to vector<2x16xf32>
    %632 = arith.addf %630, %631 : vector<2x16xf32>
    %633 = arith.negf %632 : vector<2x16xf32>
    %634 = math.exp %633 : vector<2x16xf32>
    %cst_186 = arith.constant 1.000000e+00 : f32
    %635 = vector.broadcast %cst_186 : f32 to vector<2x16xf32>
    %636 = arith.addf %635, %634 : vector<2x16xf32>
    %637 = arith.divf %635, %636 : vector<2x16xf32>
    %638 = vector.extract_strided_slice %599 {offsets = [0, 16], sizes = [2, 16], strides = [1, 1]} : vector<2x48xf32> to vector<2x16xf32>
    %639 = vector.extract_strided_slice %605 {offsets = [0, 16], sizes = [2, 16], strides = [1, 1]} : vector<2x48xf32> to vector<2x16xf32>
    %640 = arith.addf %638, %639 : vector<2x16xf32>
    %641 = arith.negf %640 : vector<2x16xf32>
    %642 = math.exp %641 : vector<2x16xf32>
    %cst_187 = arith.constant 1.000000e+00 : f32
    %643 = vector.broadcast %cst_187 : f32 to vector<2x16xf32>
    %644 = arith.addf %643, %642 : vector<2x16xf32>
    %645 = arith.divf %643, %644 : vector<2x16xf32>
    %646 = vector.extract_strided_slice %599 {offsets = [0, 32], sizes = [2, 16], strides = [1, 1]} : vector<2x48xf32> to vector<2x16xf32>
    %647 = vector.extract_strided_slice %605 {offsets = [0, 32], sizes = [2, 16], strides = [1, 1]} : vector<2x48xf32> to vector<2x16xf32>
    %648 = arith.mulf %637, %647 : vector<2x16xf32>
    %649 = arith.addf %646, %648 : vector<2x16xf32>
    %650 = math.tanh %649 : vector<2x16xf32>
    %651 = arith.subf %595, %650 : vector<2x16xf32>
    %652 = arith.mulf %645, %651 : vector<2x16xf32>
    %653 = arith.addf %650, %652 : vector<2x16xf32>
    %c2_188 = arith.constant 2 : index
    %c0_189 = arith.constant 0 : index
    %c0_190 = arith.constant 0 : index
    %654 = vector.load %arg9[%c2_188, %c0_189, %c0_190] : memref<8x2x96xf32, #tpu.memory_space<vmem>>, vector<1x2x48xf32>
    %655 = vector.shape_cast %654 : vector<1x2x48xf32> to vector<2x48xf32>
    %c5_191 = arith.constant 5 : index
    %c0_192 = arith.constant 0 : index
    %c48_193 = arith.constant 48 : index
    %656 = vector.load %arg9[%c5_191, %c0_192, %c48_193] : memref<8x2x96xf32, #tpu.memory_space<vmem>>, vector<1x2x48xf32>
    %657 = vector.shape_cast %656 : vector<1x2x48xf32> to vector<2x48xf32>
    %cst_194 = arith.constant dense<0.000000e+00> : vector<2x48xf32>
    %658 = tpu.matmul %629, %529, %cst_194 {dimension_numbers = #tpu.dot_dimension_numbers<[1], [0], [0], [1], [0, 0, 1, 1], [], []>} : vector<2x16xf32>, vector<16x48xf32>, vector<2x48xf32> -> vector<2x48xf32>
    %659 = vector.broadcast %533 : vector<1x48xf32> to vector<2x48xf32>
    %660 = arith.addf %658, %659 : vector<2x48xf32>
    %cst_195 = arith.constant dense<0.000000e+00> : vector<2x48xf32>
    %661 = tpu.matmul %653, %531, %cst_195 {dimension_numbers = #tpu.dot_dimension_numbers<[1], [0], [0], [1], [0, 0, 1, 1], [], []>} : vector<2x16xf32>, vector<16x48xf32>, vector<2x48xf32> -> vector<2x48xf32>
    %662 = vector.broadcast %535 : vector<1x48xf32> to vector<2x48xf32>
    %663 = arith.addf %661, %662 : vector<2x48xf32>
    %664 = vector.extract_strided_slice %655 {offsets = [0, 0], sizes = [2, 16], strides = [1, 1]} : vector<2x48xf32> to vector<2x16xf32>
    %665 = vector.extract_strided_slice %660 {offsets = [0, 0], sizes = [2, 16], strides = [1, 1]} : vector<2x48xf32> to vector<2x16xf32>
    %666 = arith.addf %664, %665 : vector<2x16xf32>
    %667 = arith.negf %666 : vector<2x16xf32>
    %668 = math.exp %667 : vector<2x16xf32>
    %cst_196 = arith.constant 1.000000e+00 : f32
    %669 = vector.broadcast %cst_196 : f32 to vector<2x16xf32>
    %670 = arith.addf %669, %668 : vector<2x16xf32>
    %671 = arith.divf %669, %670 : vector<2x16xf32>
    %672 = vector.extract_strided_slice %655 {offsets = [0, 16], sizes = [2, 16], strides = [1, 1]} : vector<2x48xf32> to vector<2x16xf32>
    %673 = vector.extract_strided_slice %660 {offsets = [0, 16], sizes = [2, 16], strides = [1, 1]} : vector<2x48xf32> to vector<2x16xf32>
    %674 = arith.addf %672, %673 : vector<2x16xf32>
    %675 = arith.negf %674 : vector<2x16xf32>
    %676 = math.exp %675 : vector<2x16xf32>
    %cst_197 = arith.constant 1.000000e+00 : f32
    %677 = vector.broadcast %cst_197 : f32 to vector<2x16xf32>
    %678 = arith.addf %677, %676 : vector<2x16xf32>
    %679 = arith.divf %677, %678 : vector<2x16xf32>
    %680 = vector.extract_strided_slice %655 {offsets = [0, 32], sizes = [2, 16], strides = [1, 1]} : vector<2x48xf32> to vector<2x16xf32>
    %681 = vector.extract_strided_slice %660 {offsets = [0, 32], sizes = [2, 16], strides = [1, 1]} : vector<2x48xf32> to vector<2x16xf32>
    %682 = arith.mulf %671, %681 : vector<2x16xf32>
    %683 = arith.addf %680, %682 : vector<2x16xf32>
    %684 = math.tanh %683 : vector<2x16xf32>
    %685 = arith.subf %629, %684 : vector<2x16xf32>
    %686 = arith.mulf %679, %685 : vector<2x16xf32>
    %687 = arith.addf %684, %686 : vector<2x16xf32>
    %688 = vector.extract_strided_slice %657 {offsets = [0, 0], sizes = [2, 16], strides = [1, 1]} : vector<2x48xf32> to vector<2x16xf32>
    %689 = vector.extract_strided_slice %663 {offsets = [0, 0], sizes = [2, 16], strides = [1, 1]} : vector<2x48xf32> to vector<2x16xf32>
    %690 = arith.addf %688, %689 : vector<2x16xf32>
    %691 = arith.negf %690 : vector<2x16xf32>
    %692 = math.exp %691 : vector<2x16xf32>
    %cst_198 = arith.constant 1.000000e+00 : f32
    %693 = vector.broadcast %cst_198 : f32 to vector<2x16xf32>
    %694 = arith.addf %693, %692 : vector<2x16xf32>
    %695 = arith.divf %693, %694 : vector<2x16xf32>
    %696 = vector.extract_strided_slice %657 {offsets = [0, 16], sizes = [2, 16], strides = [1, 1]} : vector<2x48xf32> to vector<2x16xf32>
    %697 = vector.extract_strided_slice %663 {offsets = [0, 16], sizes = [2, 16], strides = [1, 1]} : vector<2x48xf32> to vector<2x16xf32>
    %698 = arith.addf %696, %697 : vector<2x16xf32>
    %699 = arith.negf %698 : vector<2x16xf32>
    %700 = math.exp %699 : vector<2x16xf32>
    %cst_199 = arith.constant 1.000000e+00 : f32
    %701 = vector.broadcast %cst_199 : f32 to vector<2x16xf32>
    %702 = arith.addf %701, %700 : vector<2x16xf32>
    %703 = arith.divf %701, %702 : vector<2x16xf32>
    %704 = vector.extract_strided_slice %657 {offsets = [0, 32], sizes = [2, 16], strides = [1, 1]} : vector<2x48xf32> to vector<2x16xf32>
    %705 = vector.extract_strided_slice %663 {offsets = [0, 32], sizes = [2, 16], strides = [1, 1]} : vector<2x48xf32> to vector<2x16xf32>
    %706 = arith.mulf %695, %705 : vector<2x16xf32>
    %707 = arith.addf %704, %706 : vector<2x16xf32>
    %708 = math.tanh %707 : vector<2x16xf32>
    %709 = arith.subf %653, %708 : vector<2x16xf32>
    %710 = arith.mulf %703, %709 : vector<2x16xf32>
    %711 = arith.addf %708, %710 : vector<2x16xf32>
    %c3_200 = arith.constant 3 : index
    %c0_201 = arith.constant 0 : index
    %c0_202 = arith.constant 0 : index
    %712 = vector.load %arg9[%c3_200, %c0_201, %c0_202] : memref<8x2x96xf32, #tpu.memory_space<vmem>>, vector<1x2x48xf32>
    %713 = vector.shape_cast %712 : vector<1x2x48xf32> to vector<2x48xf32>
    %c4_203 = arith.constant 4 : index
    %c0_204 = arith.constant 0 : index
    %c48_205 = arith.constant 48 : index
    %714 = vector.load %arg9[%c4_203, %c0_204, %c48_205] : memref<8x2x96xf32, #tpu.memory_space<vmem>>, vector<1x2x48xf32>
    %715 = vector.shape_cast %714 : vector<1x2x48xf32> to vector<2x48xf32>
    %cst_206 = arith.constant dense<0.000000e+00> : vector<2x48xf32>
    %716 = tpu.matmul %687, %529, %cst_206 {dimension_numbers = #tpu.dot_dimension_numbers<[1], [0], [0], [1], [0, 0, 1, 1], [], []>} : vector<2x16xf32>, vector<16x48xf32>, vector<2x48xf32> -> vector<2x48xf32>
    %717 = vector.broadcast %533 : vector<1x48xf32> to vector<2x48xf32>
    %718 = arith.addf %716, %717 : vector<2x48xf32>
    %cst_207 = arith.constant dense<0.000000e+00> : vector<2x48xf32>
    %719 = tpu.matmul %711, %531, %cst_207 {dimension_numbers = #tpu.dot_dimension_numbers<[1], [0], [0], [1], [0, 0, 1, 1], [], []>} : vector<2x16xf32>, vector<16x48xf32>, vector<2x48xf32> -> vector<2x48xf32>
    %720 = vector.broadcast %535 : vector<1x48xf32> to vector<2x48xf32>
    %721 = arith.addf %719, %720 : vector<2x48xf32>
    %722 = vector.extract_strided_slice %713 {offsets = [0, 0], sizes = [2, 16], strides = [1, 1]} : vector<2x48xf32> to vector<2x16xf32>
    %723 = vector.extract_strided_slice %718 {offsets = [0, 0], sizes = [2, 16], strides = [1, 1]} : vector<2x48xf32> to vector<2x16xf32>
    %724 = arith.addf %722, %723 : vector<2x16xf32>
    %725 = arith.negf %724 : vector<2x16xf32>
    %726 = math.exp %725 : vector<2x16xf32>
    %cst_208 = arith.constant 1.000000e+00 : f32
    %727 = vector.broadcast %cst_208 : f32 to vector<2x16xf32>
    %728 = arith.addf %727, %726 : vector<2x16xf32>
    %729 = arith.divf %727, %728 : vector<2x16xf32>
    %730 = vector.extract_strided_slice %713 {offsets = [0, 16], sizes = [2, 16], strides = [1, 1]} : vector<2x48xf32> to vector<2x16xf32>
    %731 = vector.extract_strided_slice %718 {offsets = [0, 16], sizes = [2, 16], strides = [1, 1]} : vector<2x48xf32> to vector<2x16xf32>
    %732 = arith.addf %730, %731 : vector<2x16xf32>
    %733 = arith.negf %732 : vector<2x16xf32>
    %734 = math.exp %733 : vector<2x16xf32>
    %cst_209 = arith.constant 1.000000e+00 : f32
    %735 = vector.broadcast %cst_209 : f32 to vector<2x16xf32>
    %736 = arith.addf %735, %734 : vector<2x16xf32>
    %737 = arith.divf %735, %736 : vector<2x16xf32>
    %738 = vector.extract_strided_slice %713 {offsets = [0, 32], sizes = [2, 16], strides = [1, 1]} : vector<2x48xf32> to vector<2x16xf32>
    %739 = vector.extract_strided_slice %718 {offsets = [0, 32], sizes = [2, 16], strides = [1, 1]} : vector<2x48xf32> to vector<2x16xf32>
    %740 = arith.mulf %729, %739 : vector<2x16xf32>
    %741 = arith.addf %738, %740 : vector<2x16xf32>
    %742 = math.tanh %741 : vector<2x16xf32>
    %743 = arith.subf %687, %742 : vector<2x16xf32>
    %744 = arith.mulf %737, %743 : vector<2x16xf32>
    %745 = arith.addf %742, %744 : vector<2x16xf32>
    %746 = vector.extract_strided_slice %715 {offsets = [0, 0], sizes = [2, 16], strides = [1, 1]} : vector<2x48xf32> to vector<2x16xf32>
    %747 = vector.extract_strided_slice %721 {offsets = [0, 0], sizes = [2, 16], strides = [1, 1]} : vector<2x48xf32> to vector<2x16xf32>
    %748 = arith.addf %746, %747 : vector<2x16xf32>
    %749 = arith.negf %748 : vector<2x16xf32>
    %750 = math.exp %749 : vector<2x16xf32>
    %cst_210 = arith.constant 1.000000e+00 : f32
    %751 = vector.broadcast %cst_210 : f32 to vector<2x16xf32>
    %752 = arith.addf %751, %750 : vector<2x16xf32>
    %753 = arith.divf %751, %752 : vector<2x16xf32>
    %754 = vector.extract_strided_slice %715 {offsets = [0, 16], sizes = [2, 16], strides = [1, 1]} : vector<2x48xf32> to vector<2x16xf32>
    %755 = vector.extract_strided_slice %721 {offsets = [0, 16], sizes = [2, 16], strides = [1, 1]} : vector<2x48xf32> to vector<2x16xf32>
    %756 = arith.addf %754, %755 : vector<2x16xf32>
    %757 = arith.negf %756 : vector<2x16xf32>
    %758 = math.exp %757 : vector<2x16xf32>
    %cst_211 = arith.constant 1.000000e+00 : f32
    %759 = vector.broadcast %cst_211 : f32 to vector<2x16xf32>
    %760 = arith.addf %759, %758 : vector<2x16xf32>
    %761 = arith.divf %759, %760 : vector<2x16xf32>
    %762 = vector.extract_strided_slice %715 {offsets = [0, 32], sizes = [2, 16], strides = [1, 1]} : vector<2x48xf32> to vector<2x16xf32>
    %763 = vector.extract_strided_slice %721 {offsets = [0, 32], sizes = [2, 16], strides = [1, 1]} : vector<2x48xf32> to vector<2x16xf32>
    %764 = arith.mulf %753, %763 : vector<2x16xf32>
    %765 = arith.addf %762, %764 : vector<2x16xf32>
    %766 = math.tanh %765 : vector<2x16xf32>
    %767 = arith.subf %711, %766 : vector<2x16xf32>
    %768 = arith.mulf %761, %767 : vector<2x16xf32>
    %769 = arith.addf %766, %768 : vector<2x16xf32>
    %c4_212 = arith.constant 4 : index
    %c0_213 = arith.constant 0 : index
    %c0_214 = arith.constant 0 : index
    %770 = vector.load %arg9[%c4_212, %c0_213, %c0_214] : memref<8x2x96xf32, #tpu.memory_space<vmem>>, vector<1x2x48xf32>
    %771 = vector.shape_cast %770 : vector<1x2x48xf32> to vector<2x48xf32>
    %c3_215 = arith.constant 3 : index
    %c0_216 = arith.constant 0 : index
    %c48_217 = arith.constant 48 : index
    %772 = vector.load %arg9[%c3_215, %c0_216, %c48_217] : memref<8x2x96xf32, #tpu.memory_space<vmem>>, vector<1x2x48xf32>
    %773 = vector.shape_cast %772 : vector<1x2x48xf32> to vector<2x48xf32>
    %cst_218 = arith.constant dense<0.000000e+00> : vector<2x48xf32>
    %774 = tpu.matmul %745, %529, %cst_218 {dimension_numbers = #tpu.dot_dimension_numbers<[1], [0], [0], [1], [0, 0, 1, 1], [], []>} : vector<2x16xf32>, vector<16x48xf32>, vector<2x48xf32> -> vector<2x48xf32>
    %775 = vector.broadcast %533 : vector<1x48xf32> to vector<2x48xf32>
    %776 = arith.addf %774, %775 : vector<2x48xf32>
    %cst_219 = arith.constant dense<0.000000e+00> : vector<2x48xf32>
    %777 = tpu.matmul %769, %531, %cst_219 {dimension_numbers = #tpu.dot_dimension_numbers<[1], [0], [0], [1], [0, 0, 1, 1], [], []>} : vector<2x16xf32>, vector<16x48xf32>, vector<2x48xf32> -> vector<2x48xf32>
    %778 = vector.broadcast %535 : vector<1x48xf32> to vector<2x48xf32>
    %779 = arith.addf %777, %778 : vector<2x48xf32>
    %780 = vector.extract_strided_slice %771 {offsets = [0, 0], sizes = [2, 16], strides = [1, 1]} : vector<2x48xf32> to vector<2x16xf32>
    %781 = vector.extract_strided_slice %776 {offsets = [0, 0], sizes = [2, 16], strides = [1, 1]} : vector<2x48xf32> to vector<2x16xf32>
    %782 = arith.addf %780, %781 : vector<2x16xf32>
    %783 = arith.negf %782 : vector<2x16xf32>
    %784 = math.exp %783 : vector<2x16xf32>
    %cst_220 = arith.constant 1.000000e+00 : f32
    %785 = vector.broadcast %cst_220 : f32 to vector<2x16xf32>
    %786 = arith.addf %785, %784 : vector<2x16xf32>
    %787 = arith.divf %785, %786 : vector<2x16xf32>
    %788 = vector.extract_strided_slice %771 {offsets = [0, 16], sizes = [2, 16], strides = [1, 1]} : vector<2x48xf32> to vector<2x16xf32>
    %789 = vector.extract_strided_slice %776 {offsets = [0, 16], sizes = [2, 16], strides = [1, 1]} : vector<2x48xf32> to vector<2x16xf32>
    %790 = arith.addf %788, %789 : vector<2x16xf32>
    %791 = arith.negf %790 : vector<2x16xf32>
    %792 = math.exp %791 : vector<2x16xf32>
    %cst_221 = arith.constant 1.000000e+00 : f32
    %793 = vector.broadcast %cst_221 : f32 to vector<2x16xf32>
    %794 = arith.addf %793, %792 : vector<2x16xf32>
    %795 = arith.divf %793, %794 : vector<2x16xf32>
    %796 = vector.extract_strided_slice %771 {offsets = [0, 32], sizes = [2, 16], strides = [1, 1]} : vector<2x48xf32> to vector<2x16xf32>
    %797 = vector.extract_strided_slice %776 {offsets = [0, 32], sizes = [2, 16], strides = [1, 1]} : vector<2x48xf32> to vector<2x16xf32>
    %798 = arith.mulf %787, %797 : vector<2x16xf32>
    %799 = arith.addf %796, %798 : vector<2x16xf32>
    %800 = math.tanh %799 : vector<2x16xf32>
    %801 = arith.subf %745, %800 : vector<2x16xf32>
    %802 = arith.mulf %795, %801 : vector<2x16xf32>
    %803 = arith.addf %800, %802 : vector<2x16xf32>
    %804 = vector.extract_strided_slice %773 {offsets = [0, 0], sizes = [2, 16], strides = [1, 1]} : vector<2x48xf32> to vector<2x16xf32>
    %805 = vector.extract_strided_slice %779 {offsets = [0, 0], sizes = [2, 16], strides = [1, 1]} : vector<2x48xf32> to vector<2x16xf32>
    %806 = arith.addf %804, %805 : vector<2x16xf32>
    %807 = arith.negf %806 : vector<2x16xf32>
    %808 = math.exp %807 : vector<2x16xf32>
    %cst_222 = arith.constant 1.000000e+00 : f32
    %809 = vector.broadcast %cst_222 : f32 to vector<2x16xf32>
    %810 = arith.addf %809, %808 : vector<2x16xf32>
    %811 = arith.divf %809, %810 : vector<2x16xf32>
    %812 = vector.extract_strided_slice %773 {offsets = [0, 16], sizes = [2, 16], strides = [1, 1]} : vector<2x48xf32> to vector<2x16xf32>
    %813 = vector.extract_strided_slice %779 {offsets = [0, 16], sizes = [2, 16], strides = [1, 1]} : vector<2x48xf32> to vector<2x16xf32>
    %814 = arith.addf %812, %813 : vector<2x16xf32>
    %815 = arith.negf %814 : vector<2x16xf32>
    %816 = math.exp %815 : vector<2x16xf32>
    %cst_223 = arith.constant 1.000000e+00 : f32
    %817 = vector.broadcast %cst_223 : f32 to vector<2x16xf32>
    %818 = arith.addf %817, %816 : vector<2x16xf32>
    %819 = arith.divf %817, %818 : vector<2x16xf32>
    %820 = vector.extract_strided_slice %773 {offsets = [0, 32], sizes = [2, 16], strides = [1, 1]} : vector<2x48xf32> to vector<2x16xf32>
    %821 = vector.extract_strided_slice %779 {offsets = [0, 32], sizes = [2, 16], strides = [1, 1]} : vector<2x48xf32> to vector<2x16xf32>
    %822 = arith.mulf %811, %821 : vector<2x16xf32>
    %823 = arith.addf %820, %822 : vector<2x16xf32>
    %824 = math.tanh %823 : vector<2x16xf32>
    %825 = arith.subf %769, %824 : vector<2x16xf32>
    %826 = arith.mulf %819, %825 : vector<2x16xf32>
    %827 = arith.addf %824, %826 : vector<2x16xf32>
    %c5_224 = arith.constant 5 : index
    %c0_225 = arith.constant 0 : index
    %c0_226 = arith.constant 0 : index
    %828 = vector.load %arg9[%c5_224, %c0_225, %c0_226] : memref<8x2x96xf32, #tpu.memory_space<vmem>>, vector<1x2x48xf32>
    %829 = vector.shape_cast %828 : vector<1x2x48xf32> to vector<2x48xf32>
    %c2_227 = arith.constant 2 : index
    %c0_228 = arith.constant 0 : index
    %c48_229 = arith.constant 48 : index
    %830 = vector.load %arg9[%c2_227, %c0_228, %c48_229] : memref<8x2x96xf32, #tpu.memory_space<vmem>>, vector<1x2x48xf32>
    %831 = vector.shape_cast %830 : vector<1x2x48xf32> to vector<2x48xf32>
    %cst_230 = arith.constant dense<0.000000e+00> : vector<2x48xf32>
    %832 = tpu.matmul %803, %529, %cst_230 {dimension_numbers = #tpu.dot_dimension_numbers<[1], [0], [0], [1], [0, 0, 1, 1], [], []>} : vector<2x16xf32>, vector<16x48xf32>, vector<2x48xf32> -> vector<2x48xf32>
    %833 = vector.broadcast %533 : vector<1x48xf32> to vector<2x48xf32>
    %834 = arith.addf %832, %833 : vector<2x48xf32>
    %cst_231 = arith.constant dense<0.000000e+00> : vector<2x48xf32>
    %835 = tpu.matmul %827, %531, %cst_231 {dimension_numbers = #tpu.dot_dimension_numbers<[1], [0], [0], [1], [0, 0, 1, 1], [], []>} : vector<2x16xf32>, vector<16x48xf32>, vector<2x48xf32> -> vector<2x48xf32>
    %836 = vector.broadcast %535 : vector<1x48xf32> to vector<2x48xf32>
    %837 = arith.addf %835, %836 : vector<2x48xf32>
    %838 = vector.extract_strided_slice %829 {offsets = [0, 0], sizes = [2, 16], strides = [1, 1]} : vector<2x48xf32> to vector<2x16xf32>
    %839 = vector.extract_strided_slice %834 {offsets = [0, 0], sizes = [2, 16], strides = [1, 1]} : vector<2x48xf32> to vector<2x16xf32>
    %840 = arith.addf %838, %839 : vector<2x16xf32>
    %841 = arith.negf %840 : vector<2x16xf32>
    %842 = math.exp %841 : vector<2x16xf32>
    %cst_232 = arith.constant 1.000000e+00 : f32
    %843 = vector.broadcast %cst_232 : f32 to vector<2x16xf32>
    %844 = arith.addf %843, %842 : vector<2x16xf32>
    %845 = arith.divf %843, %844 : vector<2x16xf32>
    %846 = vector.extract_strided_slice %829 {offsets = [0, 16], sizes = [2, 16], strides = [1, 1]} : vector<2x48xf32> to vector<2x16xf32>
    %847 = vector.extract_strided_slice %834 {offsets = [0, 16], sizes = [2, 16], strides = [1, 1]} : vector<2x48xf32> to vector<2x16xf32>
    %848 = arith.addf %846, %847 : vector<2x16xf32>
    %849 = arith.negf %848 : vector<2x16xf32>
    %850 = math.exp %849 : vector<2x16xf32>
    %cst_233 = arith.constant 1.000000e+00 : f32
    %851 = vector.broadcast %cst_233 : f32 to vector<2x16xf32>
    %852 = arith.addf %851, %850 : vector<2x16xf32>
    %853 = arith.divf %851, %852 : vector<2x16xf32>
    %854 = vector.extract_strided_slice %829 {offsets = [0, 32], sizes = [2, 16], strides = [1, 1]} : vector<2x48xf32> to vector<2x16xf32>
    %855 = vector.extract_strided_slice %834 {offsets = [0, 32], sizes = [2, 16], strides = [1, 1]} : vector<2x48xf32> to vector<2x16xf32>
    %856 = arith.mulf %845, %855 : vector<2x16xf32>
    %857 = arith.addf %854, %856 : vector<2x16xf32>
    %858 = math.tanh %857 : vector<2x16xf32>
    %859 = arith.subf %803, %858 : vector<2x16xf32>
    %860 = arith.mulf %853, %859 : vector<2x16xf32>
    %861 = arith.addf %858, %860 : vector<2x16xf32>
    %862 = vector.extract_strided_slice %831 {offsets = [0, 0], sizes = [2, 16], strides = [1, 1]} : vector<2x48xf32> to vector<2x16xf32>
    %863 = vector.extract_strided_slice %837 {offsets = [0, 0], sizes = [2, 16], strides = [1, 1]} : vector<2x48xf32> to vector<2x16xf32>
    %864 = arith.addf %862, %863 : vector<2x16xf32>
    %865 = arith.negf %864 : vector<2x16xf32>
    %866 = math.exp %865 : vector<2x16xf32>
    %cst_234 = arith.constant 1.000000e+00 : f32
    %867 = vector.broadcast %cst_234 : f32 to vector<2x16xf32>
    %868 = arith.addf %867, %866 : vector<2x16xf32>
    %869 = arith.divf %867, %868 : vector<2x16xf32>
    %870 = vector.extract_strided_slice %831 {offsets = [0, 16], sizes = [2, 16], strides = [1, 1]} : vector<2x48xf32> to vector<2x16xf32>
    %871 = vector.extract_strided_slice %837 {offsets = [0, 16], sizes = [2, 16], strides = [1, 1]} : vector<2x48xf32> to vector<2x16xf32>
    %872 = arith.addf %870, %871 : vector<2x16xf32>
    %873 = arith.negf %872 : vector<2x16xf32>
    %874 = math.exp %873 : vector<2x16xf32>
    %cst_235 = arith.constant 1.000000e+00 : f32
    %875 = vector.broadcast %cst_235 : f32 to vector<2x16xf32>
    %876 = arith.addf %875, %874 : vector<2x16xf32>
    %877 = arith.divf %875, %876 : vector<2x16xf32>
    %878 = vector.extract_strided_slice %831 {offsets = [0, 32], sizes = [2, 16], strides = [1, 1]} : vector<2x48xf32> to vector<2x16xf32>
    %879 = vector.extract_strided_slice %837 {offsets = [0, 32], sizes = [2, 16], strides = [1, 1]} : vector<2x48xf32> to vector<2x16xf32>
    %880 = arith.mulf %869, %879 : vector<2x16xf32>
    %881 = arith.addf %878, %880 : vector<2x16xf32>
    %882 = math.tanh %881 : vector<2x16xf32>
    %883 = arith.subf %827, %882 : vector<2x16xf32>
    %884 = arith.mulf %877, %883 : vector<2x16xf32>
    %885 = arith.addf %882, %884 : vector<2x16xf32>
    %c6_236 = arith.constant 6 : index
    %c0_237 = arith.constant 0 : index
    %c0_238 = arith.constant 0 : index
    %886 = vector.load %arg9[%c6_236, %c0_237, %c0_238] : memref<8x2x96xf32, #tpu.memory_space<vmem>>, vector<1x2x48xf32>
    %887 = vector.shape_cast %886 : vector<1x2x48xf32> to vector<2x48xf32>
    %c1_239 = arith.constant 1 : index
    %c0_240 = arith.constant 0 : index
    %c48_241 = arith.constant 48 : index
    %888 = vector.load %arg9[%c1_239, %c0_240, %c48_241] : memref<8x2x96xf32, #tpu.memory_space<vmem>>, vector<1x2x48xf32>
    %889 = vector.shape_cast %888 : vector<1x2x48xf32> to vector<2x48xf32>
    %cst_242 = arith.constant dense<0.000000e+00> : vector<2x48xf32>
    %890 = tpu.matmul %861, %529, %cst_242 {dimension_numbers = #tpu.dot_dimension_numbers<[1], [0], [0], [1], [0, 0, 1, 1], [], []>} : vector<2x16xf32>, vector<16x48xf32>, vector<2x48xf32> -> vector<2x48xf32>
    %891 = vector.broadcast %533 : vector<1x48xf32> to vector<2x48xf32>
    %892 = arith.addf %890, %891 : vector<2x48xf32>
    %cst_243 = arith.constant dense<0.000000e+00> : vector<2x48xf32>
    %893 = tpu.matmul %885, %531, %cst_243 {dimension_numbers = #tpu.dot_dimension_numbers<[1], [0], [0], [1], [0, 0, 1, 1], [], []>} : vector<2x16xf32>, vector<16x48xf32>, vector<2x48xf32> -> vector<2x48xf32>
    %894 = vector.broadcast %535 : vector<1x48xf32> to vector<2x48xf32>
    %895 = arith.addf %893, %894 : vector<2x48xf32>
    %896 = vector.extract_strided_slice %887 {offsets = [0, 0], sizes = [2, 16], strides = [1, 1]} : vector<2x48xf32> to vector<2x16xf32>
    %897 = vector.extract_strided_slice %892 {offsets = [0, 0], sizes = [2, 16], strides = [1, 1]} : vector<2x48xf32> to vector<2x16xf32>
    %898 = arith.addf %896, %897 : vector<2x16xf32>
    %899 = arith.negf %898 : vector<2x16xf32>
    %900 = math.exp %899 : vector<2x16xf32>
    %cst_244 = arith.constant 1.000000e+00 : f32
    %901 = vector.broadcast %cst_244 : f32 to vector<2x16xf32>
    %902 = arith.addf %901, %900 : vector<2x16xf32>
    %903 = arith.divf %901, %902 : vector<2x16xf32>
    %904 = vector.extract_strided_slice %887 {offsets = [0, 16], sizes = [2, 16], strides = [1, 1]} : vector<2x48xf32> to vector<2x16xf32>
    %905 = vector.extract_strided_slice %892 {offsets = [0, 16], sizes = [2, 16], strides = [1, 1]} : vector<2x48xf32> to vector<2x16xf32>
    %906 = arith.addf %904, %905 : vector<2x16xf32>
    %907 = arith.negf %906 : vector<2x16xf32>
    %908 = math.exp %907 : vector<2x16xf32>
    %cst_245 = arith.constant 1.000000e+00 : f32
    %909 = vector.broadcast %cst_245 : f32 to vector<2x16xf32>
    %910 = arith.addf %909, %908 : vector<2x16xf32>
    %911 = arith.divf %909, %910 : vector<2x16xf32>
    %912 = vector.extract_strided_slice %887 {offsets = [0, 32], sizes = [2, 16], strides = [1, 1]} : vector<2x48xf32> to vector<2x16xf32>
    %913 = vector.extract_strided_slice %892 {offsets = [0, 32], sizes = [2, 16], strides = [1, 1]} : vector<2x48xf32> to vector<2x16xf32>
    %914 = arith.mulf %903, %913 : vector<2x16xf32>
    %915 = arith.addf %912, %914 : vector<2x16xf32>
    %916 = math.tanh %915 : vector<2x16xf32>
    %917 = arith.subf %861, %916 : vector<2x16xf32>
    %918 = arith.mulf %911, %917 : vector<2x16xf32>
    %919 = arith.addf %916, %918 : vector<2x16xf32>
    %920 = vector.extract_strided_slice %889 {offsets = [0, 0], sizes = [2, 16], strides = [1, 1]} : vector<2x48xf32> to vector<2x16xf32>
    %921 = vector.extract_strided_slice %895 {offsets = [0, 0], sizes = [2, 16], strides = [1, 1]} : vector<2x48xf32> to vector<2x16xf32>
    %922 = arith.addf %920, %921 : vector<2x16xf32>
    %923 = arith.negf %922 : vector<2x16xf32>
    %924 = math.exp %923 : vector<2x16xf32>
    %cst_246 = arith.constant 1.000000e+00 : f32
    %925 = vector.broadcast %cst_246 : f32 to vector<2x16xf32>
    %926 = arith.addf %925, %924 : vector<2x16xf32>
    %927 = arith.divf %925, %926 : vector<2x16xf32>
    %928 = vector.extract_strided_slice %889 {offsets = [0, 16], sizes = [2, 16], strides = [1, 1]} : vector<2x48xf32> to vector<2x16xf32>
    %929 = vector.extract_strided_slice %895 {offsets = [0, 16], sizes = [2, 16], strides = [1, 1]} : vector<2x48xf32> to vector<2x16xf32>
    %930 = arith.addf %928, %929 : vector<2x16xf32>
    %931 = arith.negf %930 : vector<2x16xf32>
    %932 = math.exp %931 : vector<2x16xf32>
    %cst_247 = arith.constant 1.000000e+00 : f32
    %933 = vector.broadcast %cst_247 : f32 to vector<2x16xf32>
    %934 = arith.addf %933, %932 : vector<2x16xf32>
    %935 = arith.divf %933, %934 : vector<2x16xf32>
    %936 = vector.extract_strided_slice %889 {offsets = [0, 32], sizes = [2, 16], strides = [1, 1]} : vector<2x48xf32> to vector<2x16xf32>
    %937 = vector.extract_strided_slice %895 {offsets = [0, 32], sizes = [2, 16], strides = [1, 1]} : vector<2x48xf32> to vector<2x16xf32>
    %938 = arith.mulf %927, %937 : vector<2x16xf32>
    %939 = arith.addf %936, %938 : vector<2x16xf32>
    %940 = math.tanh %939 : vector<2x16xf32>
    %941 = arith.subf %885, %940 : vector<2x16xf32>
    %942 = arith.mulf %935, %941 : vector<2x16xf32>
    %943 = arith.addf %940, %942 : vector<2x16xf32>
    %c7_248 = arith.constant 7 : index
    %c0_249 = arith.constant 0 : index
    %c0_250 = arith.constant 0 : index
    %944 = vector.load %arg9[%c7_248, %c0_249, %c0_250] : memref<8x2x96xf32, #tpu.memory_space<vmem>>, vector<1x2x48xf32>
    %945 = vector.shape_cast %944 : vector<1x2x48xf32> to vector<2x48xf32>
    %c0_251 = arith.constant 0 : index
    %c0_252 = arith.constant 0 : index
    %c48_253 = arith.constant 48 : index
    %946 = vector.load %arg9[%c0_251, %c0_252, %c48_253] : memref<8x2x96xf32, #tpu.memory_space<vmem>>, vector<1x2x48xf32>
    %947 = vector.shape_cast %946 : vector<1x2x48xf32> to vector<2x48xf32>
    %cst_254 = arith.constant dense<0.000000e+00> : vector<2x48xf32>
    %948 = tpu.matmul %919, %529, %cst_254 {dimension_numbers = #tpu.dot_dimension_numbers<[1], [0], [0], [1], [0, 0, 1, 1], [], []>} : vector<2x16xf32>, vector<16x48xf32>, vector<2x48xf32> -> vector<2x48xf32>
    %949 = vector.broadcast %533 : vector<1x48xf32> to vector<2x48xf32>
    %950 = arith.addf %948, %949 : vector<2x48xf32>
    %cst_255 = arith.constant dense<0.000000e+00> : vector<2x48xf32>
    %951 = tpu.matmul %943, %531, %cst_255 {dimension_numbers = #tpu.dot_dimension_numbers<[1], [0], [0], [1], [0, 0, 1, 1], [], []>} : vector<2x16xf32>, vector<16x48xf32>, vector<2x48xf32> -> vector<2x48xf32>
    %952 = vector.broadcast %535 : vector<1x48xf32> to vector<2x48xf32>
    %953 = arith.addf %951, %952 : vector<2x48xf32>
    %954 = vector.extract_strided_slice %945 {offsets = [0, 0], sizes = [2, 16], strides = [1, 1]} : vector<2x48xf32> to vector<2x16xf32>
    %955 = vector.extract_strided_slice %950 {offsets = [0, 0], sizes = [2, 16], strides = [1, 1]} : vector<2x48xf32> to vector<2x16xf32>
    %956 = arith.addf %954, %955 : vector<2x16xf32>
    %957 = arith.negf %956 : vector<2x16xf32>
    %958 = math.exp %957 : vector<2x16xf32>
    %cst_256 = arith.constant 1.000000e+00 : f32
    %959 = vector.broadcast %cst_256 : f32 to vector<2x16xf32>
    %960 = arith.addf %959, %958 : vector<2x16xf32>
    %961 = arith.divf %959, %960 : vector<2x16xf32>
    %962 = vector.extract_strided_slice %945 {offsets = [0, 16], sizes = [2, 16], strides = [1, 1]} : vector<2x48xf32> to vector<2x16xf32>
    %963 = vector.extract_strided_slice %950 {offsets = [0, 16], sizes = [2, 16], strides = [1, 1]} : vector<2x48xf32> to vector<2x16xf32>
    %964 = arith.addf %962, %963 : vector<2x16xf32>
    %965 = arith.negf %964 : vector<2x16xf32>
    %966 = math.exp %965 : vector<2x16xf32>
    %cst_257 = arith.constant 1.000000e+00 : f32
    %967 = vector.broadcast %cst_257 : f32 to vector<2x16xf32>
    %968 = arith.addf %967, %966 : vector<2x16xf32>
    %969 = arith.divf %967, %968 : vector<2x16xf32>
    %970 = vector.extract_strided_slice %945 {offsets = [0, 32], sizes = [2, 16], strides = [1, 1]} : vector<2x48xf32> to vector<2x16xf32>
    %971 = vector.extract_strided_slice %950 {offsets = [0, 32], sizes = [2, 16], strides = [1, 1]} : vector<2x48xf32> to vector<2x16xf32>
    %972 = arith.mulf %961, %971 : vector<2x16xf32>
    %973 = arith.addf %970, %972 : vector<2x16xf32>
    %974 = math.tanh %973 : vector<2x16xf32>
    %975 = arith.subf %919, %974 : vector<2x16xf32>
    %976 = arith.mulf %969, %975 : vector<2x16xf32>
    %977 = arith.addf %974, %976 : vector<2x16xf32>
    %978 = vector.extract_strided_slice %947 {offsets = [0, 0], sizes = [2, 16], strides = [1, 1]} : vector<2x48xf32> to vector<2x16xf32>
    %979 = vector.extract_strided_slice %953 {offsets = [0, 0], sizes = [2, 16], strides = [1, 1]} : vector<2x48xf32> to vector<2x16xf32>
    %980 = arith.addf %978, %979 : vector<2x16xf32>
    %981 = arith.negf %980 : vector<2x16xf32>
    %982 = math.exp %981 : vector<2x16xf32>
    %cst_258 = arith.constant 1.000000e+00 : f32
    %983 = vector.broadcast %cst_258 : f32 to vector<2x16xf32>
    %984 = arith.addf %983, %982 : vector<2x16xf32>
    %985 = arith.divf %983, %984 : vector<2x16xf32>
    %986 = vector.extract_strided_slice %947 {offsets = [0, 16], sizes = [2, 16], strides = [1, 1]} : vector<2x48xf32> to vector<2x16xf32>
    %987 = vector.extract_strided_slice %953 {offsets = [0, 16], sizes = [2, 16], strides = [1, 1]} : vector<2x48xf32> to vector<2x16xf32>
    %988 = arith.addf %986, %987 : vector<2x16xf32>
    %989 = arith.negf %988 : vector<2x16xf32>
    %990 = math.exp %989 : vector<2x16xf32>
    %cst_259 = arith.constant 1.000000e+00 : f32
    %991 = vector.broadcast %cst_259 : f32 to vector<2x16xf32>
    %992 = arith.addf %991, %990 : vector<2x16xf32>
    %993 = arith.divf %991, %992 : vector<2x16xf32>
    %994 = vector.extract_strided_slice %947 {offsets = [0, 32], sizes = [2, 16], strides = [1, 1]} : vector<2x48xf32> to vector<2x16xf32>
    %995 = vector.extract_strided_slice %953 {offsets = [0, 32], sizes = [2, 16], strides = [1, 1]} : vector<2x48xf32> to vector<2x16xf32>
    %996 = arith.mulf %985, %995 : vector<2x16xf32>
    %997 = arith.addf %994, %996 : vector<2x16xf32>
    %998 = math.tanh %997 : vector<2x16xf32>
    %999 = arith.subf %943, %998 : vector<2x16xf32>
    %1000 = arith.mulf %993, %999 : vector<2x16xf32>
    %1001 = arith.addf %998, %1000 : vector<2x16xf32>
    %1002 = vector.shape_cast %571 : vector<2x16xf32> to vector<1x2x16xf32>
    %1003 = vector.shape_cast %629 : vector<2x16xf32> to vector<1x2x16xf32>
    %1004 = vector.shape_cast %687 : vector<2x16xf32> to vector<1x2x16xf32>
    %1005 = vector.shape_cast %745 : vector<2x16xf32> to vector<1x2x16xf32>
    %1006 = vector.shape_cast %803 : vector<2x16xf32> to vector<1x2x16xf32>
    %1007 = vector.shape_cast %861 : vector<2x16xf32> to vector<1x2x16xf32>
    %1008 = vector.shape_cast %919 : vector<2x16xf32> to vector<1x2x16xf32>
    %1009 = vector.shape_cast %977 : vector<2x16xf32> to vector<1x2x16xf32>
    %1010 = tpu.concatenate %1002, %1003, %1004, %1005, %1006, %1007, %1008, %1009 in 0 : vector<1x2x16xf32>, vector<1x2x16xf32>, vector<1x2x16xf32>, vector<1x2x16xf32>, vector<1x2x16xf32>, vector<1x2x16xf32>, vector<1x2x16xf32>, vector<1x2x16xf32> -> vector<8x2x16xf32>
    %c0_260 = arith.constant 0 : index
    %c0_261 = arith.constant 0 : index
    %c0_262 = arith.constant 0 : index
    %c0_263 = arith.constant 0 : index
    %1011 = vector.load %arg7[%c0_260, %c0_261, %c0_262, %c0_263] : memref<2x8x2x16xf32, #tpu.memory_space<vmem>>, vector<1x8x2x16xf32>
    %1012 = vector.shape_cast %1011 : vector<1x8x2x16xf32> to vector<8x2x16xf32>
    %1013 = vector.shape_cast %1010 : vector<8x2x16xf32> to vector<1x8x2x16xf32>
    tpu.vector_store %arg7[%c0_260, %c0_261, %c0_262, %c0_263], %1013 {strides = array<i32>} : memref<2x8x2x16xf32, #tpu.memory_space<vmem>>, vector<1x8x2x16xf32>,
    %1014 = vector.shape_cast %1001 : vector<2x16xf32> to vector<1x2x16xf32>
    %1015 = vector.shape_cast %943 : vector<2x16xf32> to vector<1x2x16xf32>
    %1016 = vector.shape_cast %885 : vector<2x16xf32> to vector<1x2x16xf32>
    %1017 = vector.shape_cast %827 : vector<2x16xf32> to vector<1x2x16xf32>
    %1018 = vector.shape_cast %769 : vector<2x16xf32> to vector<1x2x16xf32>
    %1019 = vector.shape_cast %711 : vector<2x16xf32> to vector<1x2x16xf32>
    %1020 = vector.shape_cast %653 : vector<2x16xf32> to vector<1x2x16xf32>
    %1021 = vector.shape_cast %595 : vector<2x16xf32> to vector<1x2x16xf32>
    %1022 = tpu.concatenate %1014, %1015, %1016, %1017, %1018, %1019, %1020, %1021 in 0 : vector<1x2x16xf32>, vector<1x2x16xf32>, vector<1x2x16xf32>, vector<1x2x16xf32>, vector<1x2x16xf32>, vector<1x2x16xf32>, vector<1x2x16xf32>, vector<1x2x16xf32> -> vector<8x2x16xf32>
    %c1_264 = arith.constant 1 : index
    %c0_265 = arith.constant 0 : index
    %c0_266 = arith.constant 0 : index
    %c0_267 = arith.constant 0 : index
    %1023 = vector.load %arg7[%c1_264, %c0_265, %c0_266, %c0_267] : memref<2x8x2x16xf32, #tpu.memory_space<vmem>>, vector<1x8x2x16xf32>
    %1024 = vector.shape_cast %1023 : vector<1x8x2x16xf32> to vector<8x2x16xf32>
    %1025 = vector.shape_cast %1022 : vector<8x2x16xf32> to vector<1x8x2x16xf32>
    tpu.vector_store %arg7[%c1_264, %c0_265, %c0_266, %c0_267], %1025 {strides = array<i32>} : memref<2x8x2x16xf32, #tpu.memory_space<vmem>>, vector<1x8x2x16xf32>,
    %c0_268 = arith.constant 0 : index
    %c0_269 = arith.constant 0 : index
    %c0_270 = arith.constant 0 : index
    %c0_271 = arith.constant 0 : index
    %1026 = vector.load %arg7[%c0_268, %c0_269, %c0_270, %c0_271] : memref<2x8x2x16xf32, #tpu.memory_space<vmem>>, vector<1x8x2x16xf32>
    %1027 = vector.shape_cast %1026 : vector<1x8x2x16xf32> to vector<8x2x16xf32>
    %1028 = vector.shape_cast %1027 : vector<8x2x16xf32> to vector<16x16xf32>
    %c1_272 = arith.constant 1 : index
    %c0_273 = arith.constant 0 : index
    %c0_274 = arith.constant 0 : index
    %c0_275 = arith.constant 0 : index
    %1029 = vector.load %arg7[%c1_272, %c0_273, %c0_274, %c0_275] : memref<2x8x2x16xf32, #tpu.memory_space<vmem>>, vector<1x8x2x16xf32>
    %1030 = vector.shape_cast %1029 : vector<1x8x2x16xf32> to vector<8x2x16xf32>
    %1031 = vector.shape_cast %1030 : vector<8x2x16xf32> to vector<16x16xf32>
    %c0_276 = arith.constant 0 : index
    %c0_277 = arith.constant 0 : index
    %1032 = vector.load %arg5[%c0_276, %c0_277] : memref<32x32xf32, #tpu.memory_space<vmem>>, vector<16x32xf32>
    %cst_278 = arith.constant dense<0.000000e+00> : vector<16x32xf32>
    %1033 = tpu.matmul %1028, %1032, %cst_278 {dimension_numbers = #tpu.dot_dimension_numbers<[1], [0], [0], [1], [0, 0, 1, 1], [], []>} : vector<16x16xf32>, vector<16x32xf32>, vector<16x32xf32> -> vector<16x32xf32>
    %c16_279 = arith.constant 16 : index
    %c0_280 = arith.constant 0 : index
    %1034 = vector.load %arg5[%c16_279, %c0_280] : memref<32x32xf32, #tpu.memory_space<vmem>>, vector<16x32xf32>
    %cst_281 = arith.constant dense<0.000000e+00> : vector<16x32xf32>
    %1035 = tpu.matmul %1031, %1034, %cst_281 {dimension_numbers = #tpu.dot_dimension_numbers<[1], [0], [0], [1], [0, 0, 1, 1], [], []>} : vector<16x16xf32>, vector<16x32xf32>, vector<16x32xf32> -> vector<16x32xf32>
    %1036 = arith.addf %1033, %1035 : vector<16x32xf32>
    %c0_282 = arith.constant 0 : index
    %c0_283 = arith.constant 0 : index
    %1037 = vector.load %arg6[%c0_282, %c0_283] : memref<1x32xf32, #tpu.memory_space<vmem>>, vector<1x32xf32>
    %1038 = vector.broadcast %1037 : vector<1x32xf32> to vector<16x32xf32>
    %1039 = arith.addf %1036, %1038 : vector<16x32xf32>
    %cst_284 = arith.constant 0.000000e+00 : f32
    %1040 = vector.broadcast %cst_284 : f32 to vector<16x32xf32>
    %1041 = arith.maximumf %1039, %1040 : vector<16x32xf32>
    %1042 = vector.shape_cast %1041 : vector<16x32xf32> to vector<8x2x32xf32>
    %c0_285 = arith.constant 0 : index
    %c0_286 = arith.constant 0 : index
    %c0_287 = arith.constant 0 : index
    %1043 = vector.load %arg8[%c0_285, %c0_286, %c0_287] : memref<8x2x32xf32, #tpu.memory_space<vmem>>, vector<8x2x32xf32>
    tpu.vector_store %arg8[%c0_285, %c0_286, %c0_287], %1042 {strides = array<i32>} : memref<8x2x32xf32, #tpu.memory_space<vmem>>, vector<8x2x32xf32>,
    return
  }
}

</mosaic_0001>

<llo_original>
// kernel: tpu_custom_call.1
$region0: #{tpu_custom_call.1}
  #allocation0 [shape = 'u32[]', space=smem, size = 0x4, offset = 0x4, fixed_abs, tag = 'smem constant byte address 0x4 - core index']
  #allocation1 [shape = 'u32[144,128]{1,0:T(1,128)}', space=vmem, size = 0x12000, scoped, tag = 'internal scratch']
  #allocation2 [shape = 'f32[8,2,96]{2,1,0:T(2,128)}', space=vmem, size = 0x2000, scoped, tag = 'scratch operand']
  %s0 = inlined_call_operand.hbm [shape: f32[8,2,32], index: 0, kind: input, shape index: {}]
  %s1 = inlined_call_operand.hbm [shape: f32[2,32,96], index: 1, kind: input, shape index: {}]
  %s2 = inlined_call_operand.vmem [shape: f32[2,1,96], index: 2, kind: input, shape index: {}]
  %s3 = inlined_call_operand.hbm [shape: f32[2,2,16,48], index: 3, kind: input, shape index: {}]
  %s4 = inlined_call_operand.vmem [shape: f32[2,2,1,48], index: 4, kind: input, shape index: {}]
  %s5 = inlined_call_operand.hbm [shape: f32[32,32], index: 5, kind: input, shape index: {}]
  %s6 = inlined_call_operand.vmem [shape: f32[1,32], index: 6, kind: input, shape index: {}]
  %s7 = inlined_call_operand.hbm [shape: f32[2,8,2,16], index: 7, kind: output, shape index: {0}]
  %s8 = inlined_call_operand.hbm [shape: f32[8,2,32], index: 8, kind: output, shape index: {1}]
  %9 = xla_tuple %s7, %s8
  %s10 = sld [smem:[#allocation0]]
  $region62: #{tpu_custom_call.1} parent=0
    _
  %s12 = ssub.s32 1, %s10
  %s13 = scalar_select 0, %s12, %s10
  $region1: #{tpu_custom_call.1} parent=0
    #allocation3 [shape = 'u8[8192]{0}', space=vmem, size = 0x2000, scoped, tag = 'input window, operand 0, single buffered']
    #allocation4 [shape = 's32[1]{0}', space=sflag, size = 0x4, scoped, tag = 'scoped memory for tpu_custom_call.1']
    #allocation5 [shape = 's32[1]{0}', space=sflag, size = 0x4, scoped, tag = 'scoped memory for tpu_custom_call.1']
    #allocation6 [shape = 'u8[32768]{0}', space=vmem, size = 0x8000, scoped, tag = 'input window, operand 1, single buffered']
    #allocation7 [shape = 's32[1]{0}', space=sflag, size = 0x4, scoped, tag = 'scoped memory for tpu_custom_call.1']
    #allocation8 [shape = 'u8[32768]{0}', space=vmem, size = 0x8000, scoped, tag = 'input window, operand 3, single buffered']
    #allocation9 [shape = 'u8[16384]{0}', space=vmem, size = 0x4000, scoped, tag = 'input window, operand 5, single buffered']
    #allocation10 [shape = 's32[1]{0}', space=sflag, size = 0x4, scoped, tag = 'scoped memory for tpu_custom_call.1']
    #allocation11 [shape = 'u8[16384]{0}', space=vmem, size = 0x4000, scoped, tag = 'output window, operand 0, single buffered']
    #allocation12 [shape = 'u8[8192]{0}', space=vmem, size = 0x2000, scoped, tag = 'output window, operand 1, single buffered']
    #allocation13 [shape = 's32[1]{0}', space=sflag, size = 0x4, scoped, tag = 'scoped memory for tpu_custom_call.1']
    %14 = vsyncpa [#allocation4], 0
    %15 = vsyncpa [#allocation7], 0
    %16 = vsyncpa [#allocation10], 0
    %17 = vsyncpa [#allocation5], 0
    %18 = vsyncpa [#allocation13], 0
    // Predicated region
    $region2: #{tpu_custom_call.1} parent=1 // pred_check
      _
    $region3: #{tpu_custom_call.1} parent=1 // pred_check_branch
      %20 = sbr.rel (0) target = $region5
    $region4: #{tpu_custom_call.1} parent=1 // pred_region
      %s22 = ssub.s32 256, 256
      %23 = vsyncadd [#allocation4], %s22
      %s24 = sshll.u32 [#allocation3], 4
      %s25 = int_to_ptr.vmem [resolvable:$true] %s24
      %30 = dma.hbm_to_vmem [thread:$0]  %s0, 256, %s25, [#allocation4], 32, 32, 2
    $region5: #{tpu_custom_call.1} parent=1 // pred_fallthru
      _
    // Predicated region
    $region6: #{tpu_custom_call.1} parent=1 // pred_check
      _
    $region7: #{tpu_custom_call.1} parent=1 // pred_check_branch
      %32 = sbr.rel (0) target = $region9
    $region8: #{tpu_custom_call.1} parent=1 // pred_region
      %s34 = ssub.s32 1024, 1024
      %35 = vsyncadd [#allocation7], %s34
      %s36 = sshll.u32 [#allocation6], 4
      %s37 = int_to_ptr.vmem [resolvable:$true] %s36
      %42 = dma.hbm_to_vmem [thread:$0]  %s1, 1024, %s37, [#allocation7], 128, 128, 8
    $region9: #{tpu_custom_call.1} parent=1 // pred_fallthru
      _
    // Predicated region
    $region10: #{tpu_custom_call.1} parent=1 // pred_check
      _
    $region11: #{tpu_custom_call.1} parent=1 // pred_check_branch
      %44 = sbr.rel (0) target = $region13
    $region12: #{tpu_custom_call.1} parent=1 // pred_region
      _
    $region13: #{tpu_custom_call.1} parent=1 // pred_fallthru
      _
    // Predicated region
    $region14: #{tpu_custom_call.1} parent=1 // pred_check
      _
    $region15: #{tpu_custom_call.1} parent=1 // pred_check_branch
      %46 = sbr.rel (0) target = $region17
    $region16: #{tpu_custom_call.1} parent=1 // pred_region
      %s48 = ssub.s32 1024, 1024
      %49 = vsyncadd [#allocation7], %s48
      %s50 = sshll.u32 [#allocation8], 4
      %s51 = int_to_ptr.vmem [resolvable:$true] %s50
      %56 = dma.hbm_to_vmem [thread:$0]  %s3, 1024, %s51, [#allocation7], 128, 128, 8
    $region17: #{tpu_custom_call.1} parent=1 // pred_fallthru
      _
    // Predicated region
    $region18: #{tpu_custom_call.1} parent=1 // pred_check
      _
    $region19: #{tpu_custom_call.1} parent=1 // pred_check_branch
      %58 = sbr.rel (0) target = $region21
    $region20: #{tpu_custom_call.1} parent=1 // pred_region
      _
    $region21: #{tpu_custom_call.1} parent=1 // pred_fallthru
      _
    // Predicated region
    $region22: #{tpu_custom_call.1} parent=1 // pred_check
      _
    $region23: #{tpu_custom_call.1} parent=1 // pred_check_branch
      %60 = sbr.rel (0) target = $region25
    $region24: #{tpu_custom_call.1} parent=1 // pred_region
      %s62 = ssub.s32 512, 512
      %63 = vsyncadd [#allocation10], %s62
      %s64 = sshll.u32 [#allocation9], 4
      %s65 = int_to_ptr.vmem [resolvable:$true] %s64
      %70 = dma.hbm_to_vmem [thread:$0]  %s5, 512, %s65, [#allocation10], 128, 128, 8
    $region25: #{tpu_custom_call.1} parent=1 // pred_fallthru
      _
    // Predicated region
    $region26: #{tpu_custom_call.1} parent=1 // pred_check
      _
    $region27: #{tpu_custom_call.1} parent=1 // pred_check_branch
      %72 = sbr.rel (0) target = $region29
    $region28: #{tpu_custom_call.1} parent=1 // pred_region
      _
    $region29: #{tpu_custom_call.1} parent=1 // pred_fallthru
      _
    // Predicated region
    $region30: #{tpu_custom_call.1} parent=1 // pred_check
      _
    $region31: #{tpu_custom_call.1} parent=1 // pred_check_branch
      %74 = sbr.rel (0) target = $region33
    $region32: #{tpu_custom_call.1} parent=1 // pred_region
      %75 = dma.done [#allocation4], 256
    $region33: #{tpu_custom_call.1} parent=1 // pred_fallthru
      _
    // Predicated region
    $region34: #{tpu_custom_call.1} parent=1 // pred_check
      _
    $region35: #{tpu_custom_call.1} parent=1 // pred_check_branch
      %77 = sbr.rel (0) target = $region37
    $region36: #{tpu_custom_call.1} parent=1 // pred_region
      %78 = dma.done [#allocation7], 1024
    $region37: #{tpu_custom_call.1} parent=1 // pred_fallthru
      _
    // Predicated region
    $region38: #{tpu_custom_call.1} parent=1 // pred_check
      _
    $region39: #{tpu_custom_call.1} parent=1 // pred_check_branch
      %80 = sbr.rel (0) target = $region41
    $region40: #{tpu_custom_call.1} parent=1 // pred_region
      %81 = dma.done [#allocation7], 1024
    $region41: #{tpu_custom_call.1} parent=1 // pred_fallthru
      _
    // Predicated region
    $region42: #{tpu_custom_call.1} parent=1 // pred_check
      _
    $region43: #{tpu_custom_call.1} parent=1 // pred_check_branch
      %83 = sbr.rel (0) target = $region45
    $region44: #{tpu_custom_call.1} parent=1 // pred_region
      %84 = dma.done [#allocation10], 512
    $region45: #{tpu_custom_call.1} parent=1 // pred_fallthru
      _
    %v85 = vld [vmem:[#allocation3] sm:$0x3]
    %v86 = vld [vmem:[#allocation3 + $0x2] sm:$0x3]
    %v87 = vld [vmem:[#allocation3 + $0x4] sm:$0x3]
    %v88 = vld [vmem:[#allocation3 + $0x6] sm:$0x3]
    %v89 = vld [vmem:[#allocation3 + $0x8] sm:$0x3]
    %v90 = vld [vmem:[#allocation3 + $0xa] sm:$0x3]
    %v91 = vld [vmem:[#allocation3 + $0xc] sm:$0x3]
    %v92 = vld [vmem:[#allocation3 + $0xe] sm:$0x3]
    %v93 = vld [vmem:[#allocation6] sm:$0xff]
    %v94 = vld [vmem:[#allocation6 + $0x8] sm:$0xff]
    %v95 = vld [vmem:[#allocation6 + $0x10] sm:$0xff]
    %v96 = vld [vmem:[#allocation6 + $0x18] sm:$0xff]
    %v97 = vld [vmem:[%s2] sm:$0x1]
    %v99 = vlaneseq
    %v100 = vshrl.u32 %v99, 7
    %v101 = vsub.s32 0, %v100
    %v102 = vrot.slane %v97, %v101
    %v112 = vcombine.low %v85, %v86
    %v113 = vcombine.low %v87, %v88
    %v115 = vunpack.c.l.s4 1983009808
    %v116 = vunpack.c.0.s8 %v115
    %v117 = vlaneseq
    %v118 = vshrl.u32 %v117, 7
    %v119 = vsub.s32 %v116, %v118
    %v120 = vrot.slane %v112, %v119
    %v122 = vunpack.c.l.s4 1983009808
    %v123 = vunpack.c.0.s8 %v122
    %v124 = vlaneseq
    %v125 = vshrl.u32 %v124, 7
    %v126 = vsub.s32 %v123, %v125
    %v127 = vrot.slane %v113, %v126
    %v128 = vcombine.low %v120, %v127
    %v129 = vcombine.low %v89, %v90
    %v130 = vcombine.low %v91, %v92
    %v132 = vunpack.c.l.s4 1983009808
    %v133 = vunpack.c.0.s8 %v132
    %v134 = vlaneseq
    %v135 = vshrl.u32 %v134, 7
    %v136 = vsub.s32 %v133, %v135
    %v137 = vrot.slane %v129, %v136
    %v139 = vunpack.c.l.s4 1983009808
    %v140 = vunpack.c.0.s8 %v139
    %v141 = vlaneseq
    %v142 = vshrl.u32 %v141, 7
    %v143 = vsub.s32 %v140, %v142
    %v144 = vrot.slane %v130, %v143
    %v145 = vcombine.low %v137, %v144
    %vm146 = vcmask 261120
    %v147 = vsel %vm146, %v128, 0
    %v149 = vsel %vm146, %v145, 0
    %151 = vmatprep.subr.mxu0 0.0
    %152 = vmatpush1.msra.mxu0 %v93
    %153 = vmatprep.subr.mxu0 0.0
    %154 = vmatpush1.msra.mxu0 %v94
    %155 = vmatprep.subr.mxu0 0.0
    %156 = vmatpush1.msra.mxu0 %v95
    %157 = vmatprep.subr.mxu0 0.0
    %158 = vmatpush1.msra.mxu0 %v96
    %159 = vmatprep.subr.mxu0 0.0
    %160 = vmatpush1.msra.mxu0 0.0
    %161 = vmatprep.subr.mxu0 0.0
    %162 = vmatpush1.msra.mxu0 0.0
    %163 = vmatprep.subr.mxu0 0.0
    %164 = vmatpush1.msra.mxu0 0.0
    %165 = vmatprep.subr.mxu0 0.0
    %166 = vmatpush1.msra.mxu0 0.0
    %167 = vmatprep.subr.mxu0 0.0
    %168 = vmatpush1.msra.mxu0 0.0
    %169 = vmatprep.subr.mxu0 0.0
    %170 = vmatpush1.msra.mxu0 0.0
    %171 = vmatprep.subr.mxu0 0.0
    %172 = vmatpush1.msra.mxu0 0.0
    %173 = vmatprep.subr.mxu0 0.0
    %174 = vmatpush1.msra.mxu0 0.0
    %175 = vmatprep.subr.mxu0 0.0
    %176 = vmatpush1.msra.mxu0 0.0
    %177 = vmatprep.subr.mxu0 0.0
    %178 = vmatpush1.msra.mxu0 0.0
    %179 = vmatprep.subr.mxu0 0.0
    %180 = vmatpush1.msra.mxu0 0.0
    %181 = vmatprep.subr.mxu0 0.0
    %182 = vmatpush1.msra.mxu0 0.0
    %183 = vmatprep.subr.mxu0 0.0
    %184 = vmatpush1.msra.mxu0 0.0
    %185 = vmatprep.subr.mxu0 0.0
    %186 = vmatpush1.msra.mxu0 0.0
    %187 = vmatprep.subr.mxu0 0.0
    %188 = vmatpush1.msra.mxu0 0.0
    %189 = vmatprep.subr.mxu0 0.0
    %190 = vmatpush1.msra.mxu0 0.0
    %191 = vmatprep.subr.mxu0 0.0
    %192 = vmatpush1.msra.mxu0 0.0
    %193 = vmatprep.subr.mxu0 0.0
    %194 = vmatpush1.msra.mxu0 0.0
    %195 = vmatprep.subr.mxu0 0.0
    %196 = vmatpush1.msra.mxu0 0.0
    %197 = vmatprep.subr.mxu0 0.0
    %198 = vmatpush1.msra.mxu0 0.0
    %199 = vmatprep.subr.mxu0 0.0
    %200 = vmatpush1.msra.mxu0 0.0
    %201 = vmatprep.subr.mxu0 0.0
    %202 = vmatpush1.msra.mxu0 0.0
    %203 = vmatprep.subr.mxu0 0.0
    %204 = vmatpush1.msra.mxu0 0.0
    %205 = vmatprep.subr.mxu0 0.0
    %206 = vmatpush1.msra.mxu0 0.0
    %207 = vmatprep.subr.mxu0 0.0
    %208 = vmatpush1.msra.mxu0 0.0
    %209 = vmatprep.subr.mxu0 0.0
    %210 = vmatpush1.msra.mxu0 0.0
    %211 = vmatprep.subr.mxu0 0.0
    %212 = vmatpush1.msra.mxu0 0.0
    %213 = vmatprep.subr.mxu0 0.0
    %214 = vmatpush1.msra.mxu0 0.0
    %215 = vmatprep.mubr.f32.mxu0 0.0
    %216 = vmatmul.mubr.f32.gmra.mrb[0].mxu0 %v147
    %v217 = vpop.f32.mrb[0].mxu0
    %v218 = vadd.f32 %v102, %v217
    %v219 = vpop.f32.mrb[0].mxu0
    %220 = vmatprep.mubr.f32.mxu0 0.0
    %221 = vmatmul.mubr.f32.gmra.mrb[0].mxu0 %v149
    %v222 = vpop.f32.mrb[0].mxu0
    %v223 = vadd.f32 %v102, %v222
    %v224 = vpop.f32.mrb[0].mxu0
    %225 = vdwg.mxu0
    %v228 = vcombine.high %v218, %v218
    %v230 = vunpack.c.l.s4 1983009808
    %v231 = vunpack.c.0.s8 %v230
    %v232 = vlaneseq
    %v233 = vshrl.u32 %v232, 7
    %v234 = vsub.s32 %v231, %v233
    %v235 = vrot.slane %v218, %v234
    %v237 = vunpack.c.l.s4 1983009808
    %v238 = vunpack.c.0.s8 %v237
    %v239 = vlaneseq
    %v240 = vshrl.u32 %v239, 7
    %v241 = vsub.s32 %v238, %v240
    %v242 = vrot.slane %v228, %v241
    %v243 = vcombine.high %v235, %v235
    %v244 = vcombine.high %v242, %v242
    %v245 = vcombine.high %v223, %v223
    %v247 = vunpack.c.l.s4 1983009808
    %v248 = vunpack.c.0.s8 %v247
    %v249 = vlaneseq
    %v250 = vshrl.u32 %v249, 7
    %v251 = vsub.s32 %v248, %v250
    %v252 = vrot.slane %v223, %v251
    %v254 = vunpack.c.l.s4 1983009808
    %v255 = vunpack.c.0.s8 %v254
    %v256 = vlaneseq
    %v257 = vshrl.u32 %v256, 7
    %v258 = vsub.s32 %v255, %v257
    %v259 = vrot.slane %v245, %v258
    %v260 = vcombine.high %v252, %v252
    %v261 = vcombine.high %v259, %v259
    %vm270 = vcmask 779264
    %271 = vst.msk [vmem:[#allocation2] sm:$0x3] %vm270, %v235
    %272 = vst.msk [vmem:[#allocation2 + $0x2] sm:$0x3] %vm270, %v243
    %273 = vst.msk [vmem:[#allocation2 + $0x4] sm:$0x3] %vm270, %v242
    %274 = vst.msk [vmem:[#allocation2 + $0x6] sm:$0x3] %vm270, %v244
    %275 = vst.msk [vmem:[#allocation2 + $0x8] sm:$0x3] %vm270, %v252
    %276 = vst.msk [vmem:[#allocation2 + $0xa] sm:$0x3] %vm270, %v260
    %277 = vst.msk [vmem:[#allocation2 + $0xc] sm:$0x3] %vm270, %v259
    %278 = vst.msk [vmem:[#allocation2 + $0xe] sm:$0x3] %vm270, %v261
    %v279 = vld [vmem:[#allocation8] sm:$0xff]
    %v280 = vld [vmem:[#allocation8 + $0x8] sm:$0xff]
    %s281 = scalar_lea.vmem [#allocation8], 16
    %v282 = vld [vmem:[%s281] sm:$0xff]
    %v283 = vld [vmem:[%s281 + $0x8] sm:$0xff]
    %v284 = vld [vmem:[%s4] sm:$0x1]
    %s285 = scalar_lea.vmem %s4, 1
    %v286 = vld [vmem:[%s285] sm:$0x1]
    %v287 = vld [vmem:[#allocation2] sm:$0x3]
    %s288 = scalar_lea.vmem [#allocation2], 14
    %v289 = vld [vmem:[%s288] sm:$0x3]
    %v291 = vlaneseq
    %v292 = vshrl.u32 %v291, 7
    %v293 = vsub.s32 0, %v292
    %v294 = vrot.slane %v284, %v293
    %vm296 = vcmask 130048
    %v298 = vsel %vm296, 0.0, 0
    %300 = vmatprep.subr.mxu0 0.0
    %301 = vmatpush1.msra.mxu0 %v279
    %302 = vmatprep.subr.mxu0 0.0
    %303 = vmatpush1.msra.mxu0 %v280
    %304 = vmatprep.subr.mxu0 0.0
    %305 = vmatpush1.msra.mxu0 0.0
    %306 = vmatprep.subr.mxu0 0.0
    %307 = vmatpush1.msra.mxu0 0.0
    %308 = vmatprep.subr.mxu0 0.0
    %309 = vmatpush1.msra.mxu0 0.0
    %310 = vmatprep.subr.mxu0 0.0
    %311 = vmatpush1.msra.mxu0 0.0
    %312 = vmatprep.subr.mxu0 0.0
    %313 = vmatpush1.msra.mxu0 0.0
    %314 = vmatprep.subr.mxu0 0.0
    %315 = vmatpush1.msra.mxu0 0.0
    %316 = vmatprep.subr.mxu0 0.0
    %317 = vmatpush1.msra.mxu0 0.0
    %318 = vmatprep.subr.mxu0 0.0
    %319 = vmatpush1.msra.mxu0 0.0
    %320 = vmatprep.subr.mxu0 0.0
    %321 = vmatpush1.msra.mxu0 0.0
    %322 = vmatprep.subr.mxu0 0.0
    %323 = vmatpush1.msra.mxu0 0.0
    %324 = vmatprep.subr.mxu0 0.0
    %325 = vmatpush1.msra.mxu0 0.0
    %326 = vmatprep.subr.mxu0 0.0
    %327 = vmatpush1.msra.mxu0 0.0
    %328 = vmatprep.subr.mxu0 0.0
    %329 = vmatpush1.msra.mxu0 0.0
    %330 = vmatprep.subr.mxu0 0.0
    %331 = vmatpush1.msra.mxu0 0.0
    %332 = vmatprep.subr.mxu0 0.0
    %333 = vmatpush1.msra.mxu0 0.0
    %334 = vmatprep.subr.mxu0 0.0
    %335 = vmatpush1.msra.mxu0 0.0
    %336 = vmatprep.subr.mxu0 0.0
    %337 = vmatpush1.msra.mxu0 0.0
    %338 = vmatprep.subr.mxu0 0.0
    %339 = vmatpush1.msra.mxu0 0.0
    %340 = vmatprep.subr.mxu0 0.0
    %341 = vmatpush1.msra.mxu0 0.0
    %342 = vmatprep.subr.mxu0 0.0
    %343 = vmatpush1.msra.mxu0 0.0
    %344 = vmatprep.subr.mxu0 0.0
    %345 = vmatpush1.msra.mxu0 0.0
    %346 = vmatprep.subr.mxu0 0.0
    %347 = vmatpush1.msra.mxu0 0.0
    %348 = vmatprep.subr.mxu0 0.0
    %349 = vmatpush1.msra.mxu0 0.0
    %350 = vmatprep.subr.mxu0 0.0
    %351 = vmatpush1.msra.mxu0 0.0
    %352 = vmatprep.subr.mxu0 0.0
    %353 = vmatpush1.msra.mxu0 0.0
    %354 = vmatprep.subr.mxu0 0.0
    %355 = vmatpush1.msra.mxu0 0.0
    %356 = vmatprep.subr.mxu0 0.0
    %357 = vmatpush1.msra.mxu0 0.0
    %358 = vmatprep.subr.mxu0 0.0
    %359 = vmatpush1.msra.mxu0 0.0
    %360 = vmatprep.subr.mxu0 0.0
    %361 = vmatpush1.msra.mxu0 0.0
    %362 = vmatprep.subr.mxu0 0.0
    %363 = vmatpush1.msra.mxu0 0.0
    %364 = vmatprep.mubr.f32.mxu0 0.0
    %365 = vmatmul.mubr.f32.gmra.mrb[0].mxu0 %v298
    %v366 = vpop.f32.mrb[0].mxu0
    %v367 = vadd.f32 %v294, %v366
    %v368 = vpop.f32.mrb[0].mxu0
    %369 = vdwg.mxu0
    %v371 = vlaneseq
    %v372 = vshrl.u32 %v371, 7
    %v373 = vsub.s32 0, %v372
    %v374 = vrot.slane %v286, %v373
    %376 = vmatprep.subr.mxu0 0.0
    %377 = vmatpush1.msra.mxu0 %v282
    %378 = vmatprep.subr.mxu0 0.0
    %379 = vmatpush1.msra.mxu0 %v283
    %380 = vmatprep.subr.mxu0 0.0
    %381 = vmatpush1.msra.mxu0 0.0
    %382 = vmatprep.subr.mxu0 0.0
    %383 = vmatpush1.msra.mxu0 0.0
    %384 = vmatprep.subr.mxu0 0.0
    %385 = vmatpush1.msra.mxu0 0.0
    %386 = vmatprep.subr.mxu0 0.0
    %387 = vmatpush1.msra.mxu0 0.0
    %388 = vmatprep.subr.mxu0 0.0
    %389 = vmatpush1.msra.mxu0 0.0
    %390 = vmatprep.subr.mxu0 0.0
    %391 = vmatpush1.msra.mxu0 0.0
    %392 = vmatprep.subr.mxu0 0.0
    %393 = vmatpush1.msra.mxu0 0.0
    %394 = vmatprep.subr.mxu0 0.0
    %395 = vmatpush1.msra.mxu0 0.0
    %396 = vmatprep.subr.mxu0 0.0
    %397 = vmatpush1.msra.mxu0 0.0
    %398 = vmatprep.subr.mxu0 0.0
    %399 = vmatpush1.msra.mxu0 0.0
    %400 = vmatprep.subr.mxu0 0.0
    %401 = vmatpush1.msra.mxu0 0.0
    %402 = vmatprep.subr.mxu0 0.0
    %403 = vmatpush1.msra.mxu0 0.0
    %404 = vmatprep.subr.mxu0 0.0
    %405 = vmatpush1.msra.mxu0 0.0
    %406 = vmatprep.subr.mxu0 0.0
    %407 = vmatpush1.msra.mxu0 0.0
    %408 = vmatprep.subr.mxu0 0.0
    %409 = vmatpush1.msra.mxu0 0.0
    %410 = vmatprep.subr.mxu0 0.0
    %411 = vmatpush1.msra.mxu0 0.0
    %412 = vmatprep.subr.mxu0 0.0
    %413 = vmatpush1.msra.mxu0 0.0
    %414 = vmatprep.subr.mxu0 0.0
    %415 = vmatpush1.msra.mxu0 0.0
    %416 = vmatprep.subr.mxu0 0.0
    %417 = vmatpush1.msra.mxu0 0.0
    %418 = vmatprep.subr.mxu0 0.0
    %419 = vmatpush1.msra.mxu0 0.0
    %420 = vmatprep.subr.mxu0 0.0
    %421 = vmatpush1.msra.mxu0 0.0
    %422 = vmatprep.subr.mxu0 0.0
    %423 = vmatpush1.msra.mxu0 0.0
    %424 = vmatprep.subr.mxu0 0.0
    %425 = vmatpush1.msra.mxu0 0.0
    %426 = vmatprep.subr.mxu0 0.0
    %427 = vmatpush1.msra.mxu0 0.0
    %428 = vmatprep.subr.mxu0 0.0
    %429 = vmatpush1.msra.mxu0 0.0
    %430 = vmatprep.subr.mxu0 0.0
    %431 = vmatpush1.msra.mxu0 0.0
    %432 = vmatprep.subr.mxu0 0.0
    %433 = vmatpush1.msra.mxu0 0.0
    %434 = vmatprep.subr.mxu0 0.0
    %435 = vmatpush1.msra.mxu0 0.0
    %436 = vmatprep.subr.mxu0 0.0
    %437 = vmatpush1.msra.mxu0 0.0
    %438 = vmatprep.subr.mxu0 0.0
    %439 = vmatpush1.msra.mxu0 0.0
    %440 = vmatprep.mubr.f32.mxu0 0.0
    %441 = vmatmul.mubr.f32.gmra.mrb[0].mxu0 %v298
    %v442 = vpop.f32.mrb[0].mxu0
    %v443 = vadd.f32 %v374, %v442
    %v444 = vpop.f32.mrb[0].mxu0
    %445 = vdwg.mxu0
    %v446 = vadd.f32 %v287, %v367
    %v447 = vxor.u32 %v446, 2147483648
    %v448 = vmul.f32 %v447, 1.442695
    %v449 = vpow.pop %v448
    %v450 = vadd.f32 %v449, 1.0
    %v451 = vrcp.pop %v450
    %v452 = vmul.f32 1.0, %v451
    %454 = vrot.lane.b32.xlu0 %v367, 96
    %v455 = vpop.permute.xlu0 %454
    %v457 = vmul.f32 %v452, %v455
    %459 = vrot.lane.b32.xlu0 %v457, 32
    %v460 = vpop.permute.xlu0 %459
    %v462 = vadd.f32 %v287, %v460
    %v463 = vtanh.pop %v462
    %v464 = vsub.f32 0.0, %v463
    %466 = vrot.lane.b32.xlu0 %v464, 112
    %v467 = vpop.permute.xlu0 %466
    %v469 = vmul.f32 %v452, %v467
    %471 = vrot.lane.b32.xlu0 %v469, 16
    %v472 = vpop.permute.xlu0 %471
    %v474 = vadd.f32 %v463, %v472
    %476 = vrot.lane.b32.xlu0 %v443, 48
    %v477 = vpop.permute.xlu0 %476
    %v479 = vadd.f32 %v289, %v477
    %v480 = vxor.u32 %v479, 2147483648
    %v481 = vmul.f32 %v480, 1.442695
    %v482 = vpow.pop %v481
    %v483 = vadd.f32 %v482, 1.0
    %v484 = vrcp.pop %v483
    %v485 = vmul.f32 1.0, %v484
    %486 = vrot.lane.b32.xlu0 %v443, 16
    %v487 = vpop.permute.xlu0 %486
    %v489 = vmul.f32 %v485, %v487
    %491 = vrot.lane.b32.xlu0 %v489, 32
    %v492 = vpop.permute.xlu0 %491
    %v494 = vadd.f32 %v289, %v492
    %v495 = vtanh.pop %v494
    %v496 = vsub.f32 0.0, %v495
    %498 = vrot.lane.b32.xlu0 %v496, 112
    %v499 = vpop.permute.xlu0 %498
    %v501 = vmul.f32 %v485, %v499
    %503 = vrot.lane.b32.xlu0 %v501, 16
    %v504 = vpop.permute.xlu0 %503
    %v506 = vadd.f32 %v495, %v504
    %s507 = scalar_lea.vmem [#allocation2], 2
    %v508 = vld [vmem:[%s507] sm:$0x3]
    %s509 = scalar_lea.vmem [#allocation2], 12
    %v510 = vld [vmem:[%s509] sm:$0x3]
    %512 = vrot.lane.b32.xlu0 %v474, 96
    %v513 = vpop.permute.xlu0 %512
    %v514 = vsel %vm296, %v513, 0
    %516 = vmatprep.subr.mxu0 0.0
    %517 = vmatpush1.msra.mxu0 %v279
    %518 = vmatprep.subr.mxu0 0.0
    %519 = vmatpush1.msra.mxu0 %v280
    %520 = vmatprep.subr.mxu0 0.0
    %521 = vmatpush1.msra.mxu0 0.0
    %522 = vmatprep.subr.mxu0 0.0
    %523 = vmatpush1.msra.mxu0 0.0
    %524 = vmatprep.subr.mxu0 0.0
    %525 = vmatpush1.msra.mxu0 0.0
    %526 = vmatprep.subr.mxu0 0.0
    %527 = vmatpush1.msra.mxu0 0.0
    %528 = vmatprep.subr.mxu0 0.0
    %529 = vmatpush1.msra.mxu0 0.0
    %530 = vmatprep.subr.mxu0 0.0
    %531 = vmatpush1.msra.mxu0 0.0
    %532 = vmatprep.subr.mxu0 0.0
    %533 = vmatpush1.msra.mxu0 0.0
    %534 = vmatprep.subr.mxu0 0.0
    %535 = vmatpush1.msra.mxu0 0.0
    %536 = vmatprep.subr.mxu0 0.0
    %537 = vmatpush1.msra.mxu0 0.0
    %538 = vmatprep.subr.mxu0 0.0
    %539 = vmatpush1.msra.mxu0 0.0
    %540 = vmatprep.subr.mxu0 0.0
    %541 = vmatpush1.msra.mxu0 0.0
    %542 = vmatprep.subr.mxu0 0.0
    %543 = vmatpush1.msra.mxu0 0.0
    %544 = vmatprep.subr.mxu0 0.0
    %545 = vmatpush1.msra.mxu0 0.0
    %546 = vmatprep.subr.mxu0 0.0
    %547 = vmatpush1.msra.mxu0 0.0
    %548 = vmatprep.subr.mxu0 0.0
    %549 = vmatpush1.msra.mxu0 0.0
    %550 = vmatprep.subr.mxu0 0.0
    %551 = vmatpush1.msra.mxu0 0.0
    %552 = vmatprep.subr.mxu0 0.0
    %553 = vmatpush1.msra.mxu0 0.0
    %554 = vmatprep.subr.mxu0 0.0
    %555 = vmatpush1.msra.mxu0 0.0
    %556 = vmatprep.subr.mxu0 0.0
    %557 = vmatpush1.msra.mxu0 0.0
    %558 = vmatprep.subr.mxu0 0.0
    %559 = vmatpush1.msra.mxu0 0.0
    %560 = vmatprep.subr.mxu0 0.0
    %561 = vmatpush1.msra.mxu0 0.0
    %562 = vmatprep.subr.mxu0 0.0
    %563 = vmatpush1.msra.mxu0 0.0
    %564 = vmatprep.subr.mxu0 0.0
    %565 = vmatpush1.msra.mxu0 0.0
    %566 = vmatprep.subr.mxu0 0.0
    %567 = vmatpush1.msra.mxu0 0.0
    %568 = vmatprep.subr.mxu0 0.0
    %569 = vmatpush1.msra.mxu0 0.0
    %570 = vmatprep.subr.mxu0 0.0
    %571 = vmatpush1.msra.mxu0 0.0
    %572 = vmatprep.subr.mxu0 0.0
    %573 = vmatpush1.msra.mxu0 0.0
    %574 = vmatprep.subr.mxu0 0.0
    %575 = vmatpush1.msra.mxu0 0.0
    %576 = vmatprep.subr.mxu0 0.0
    %577 = vmatpush1.msra.mxu0 0.0
    %578 = vmatprep.subr.mxu0 0.0
    %579 = vmatpush1.msra.mxu0 0.0
    %580 = vmatprep.mubr.f32.mxu0 0.0
    %581 = vmatmul.mubr.f32.gmra.mrb[0].mxu0 %v514
    %v582 = vpop.f32.mrb[0].mxu0
    %v583 = vadd.f32 %v294, %v582
    %v584 = vpop.f32.mrb[0].mxu0
    %585 = vdwg.mxu0
    %587 = vrot.lane.b32.xlu0 %v506, 48
    %v588 = vpop.permute.xlu0 %587
    %v589 = vsel %vm296, %v588, 0
    %591 = vmatprep.subr.mxu0 0.0
    %592 = vmatpush1.msra.mxu0 %v282
    %593 = vmatprep.subr.mxu0 0.0
    %594 = vmatpush1.msra.mxu0 %v283
    %595 = vmatprep.subr.mxu0 0.0
    %596 = vmatpush1.msra.mxu0 0.0
    %597 = vmatprep.subr.mxu0 0.0
    %598 = vmatpush1.msra.mxu0 0.0
    %599 = vmatprep.subr.mxu0 0.0
    %600 = vmatpush1.msra.mxu0 0.0
    %601 = vmatprep.subr.mxu0 0.0
    %602 = vmatpush1.msra.mxu0 0.0
    %603 = vmatprep.subr.mxu0 0.0
    %604 = vmatpush1.msra.mxu0 0.0
    %605 = vmatprep.subr.mxu0 0.0
    %606 = vmatpush1.msra.mxu0 0.0
    %607 = vmatprep.subr.mxu0 0.0
    %608 = vmatpush1.msra.mxu0 0.0
    %609 = vmatprep.subr.mxu0 0.0
    %610 = vmatpush1.msra.mxu0 0.0
    %611 = vmatprep.subr.mxu0 0.0
    %612 = vmatpush1.msra.mxu0 0.0
    %613 = vmatprep.subr.mxu0 0.0
    %614 = vmatpush1.msra.mxu0 0.0
    %615 = vmatprep.subr.mxu0 0.0
    %616 = vmatpush1.msra.mxu0 0.0
    %617 = vmatprep.subr.mxu0 0.0
    %618 = vmatpush1.msra.mxu0 0.0
    %619 = vmatprep.subr.mxu0 0.0
    %620 = vmatpush1.msra.mxu0 0.0
    %621 = vmatprep.subr.mxu0 0.0
    %622 = vmatpush1.msra.mxu0 0.0
    %623 = vmatprep.subr.mxu0 0.0
    %624 = vmatpush1.msra.mxu0 0.0
    %625 = vmatprep.subr.mxu0 0.0
    %626 = vmatpush1.msra.mxu0 0.0
    %627 = vmatprep.subr.mxu0 0.0
    %628 = vmatpush1.msra.mxu0 0.0
    %629 = vmatprep.subr.mxu0 0.0
    %630 = vmatpush1.msra.mxu0 0.0
    %631 = vmatprep.subr.mxu0 0.0
    %632 = vmatpush1.msra.mxu0 0.0
    %633 = vmatprep.subr.mxu0 0.0
    %634 = vmatpush1.msra.mxu0 0.0
    %635 = vmatprep.subr.mxu0 0.0
    %636 = vmatpush1.msra.mxu0 0.0
    %637 = vmatprep.subr.mxu0 0.0
    %638 = vmatpush1.msra.mxu0 0.0
    %639 = vmatprep.subr.mxu0 0.0
    %640 = vmatpush1.msra.mxu0 0.0
    %641 = vmatprep.subr.mxu0 0.0
    %642 = vmatpush1.msra.mxu0 0.0
    %643 = vmatprep.subr.mxu0 0.0
    %644 = vmatpush1.msra.mxu0 0.0
    %645 = vmatprep.subr.mxu0 0.0
    %646 = vmatpush1.msra.mxu0 0.0
    %647 = vmatprep.subr.mxu0 0.0
    %648 = vmatpush1.msra.mxu0 0.0
    %649 = vmatprep.subr.mxu0 0.0
    %650 = vmatpush1.msra.mxu0 0.0
    %651 = vmatprep.subr.mxu0 0.0
    %652 = vmatpush1.msra.mxu0 0.0
    %653 = vmatprep.subr.mxu0 0.0
    %654 = vmatpush1.msra.mxu0 0.0
    %655 = vmatprep.mubr.f32.mxu0 0.0
    %656 = vmatmul.mubr.f32.gmra.mrb[0].mxu0 %v589
    %v657 = vpop.f32.mrb[0].mxu0
    %v658 = vadd.f32 %v374, %v657
    %v659 = vpop.f32.mrb[0].mxu0
    %660 = vdwg.mxu0
    %v661 = vadd.f32 %v508, %v583
    %v662 = vxor.u32 %v661, 2147483648
    %v663 = vmul.f32 %v662, 1.442695
    %v664 = vpow.pop %v663
    %v665 = vadd.f32 %v664, 1.0
    %v666 = vrcp.pop %v665
    %v667 = vmul.f32 1.0, %v666
    %669 = vrot.lane.b32.xlu0 %v583, 96
    %v670 = vpop.permute.xlu0 %669
    %v672 = vmul.f32 %v667, %v670
    %674 = vrot.lane.b32.xlu0 %v672, 32
    %v675 = vpop.permute.xlu0 %674
    %v677 = vadd.f32 %v508, %v675
    %v678 = vtanh.pop %v677
    %v679 = vsub.f32 %v474, %v678
    %681 = vrot.lane.b32.xlu0 %v679, 112
    %v682 = vpop.permute.xlu0 %681
    %v684 = vmul.f32 %v667, %v682
    %686 = vrot.lane.b32.xlu0 %v684, 16
    %v687 = vpop.permute.xlu0 %686
    %v689 = vadd.f32 %v678, %v687
    %691 = vrot.lane.b32.xlu0 %v658, 48
    %v692 = vpop.permute.xlu0 %691
    %v694 = vadd.f32 %v510, %v692
    %v695 = vxor.u32 %v694, 2147483648
    %v696 = vmul.f32 %v695, 1.442695
    %v697 = vpow.pop %v696
    %v698 = vadd.f32 %v697, 1.0
    %v699 = vrcp.pop %v698
    %v700 = vmul.f32 1.0, %v699
    %701 = vrot.lane.b32.xlu0 %v658, 16
    %v702 = vpop.permute.xlu0 %701
    %v704 = vmul.f32 %v700, %v702
    %706 = vrot.lane.b32.xlu0 %v704, 32
    %v707 = vpop.permute.xlu0 %706
    %v709 = vadd.f32 %v510, %v707
    %v710 = vtanh.pop %v709
    %v711 = vsub.f32 %v506, %v710
    %713 = vrot.lane.b32.xlu0 %v711, 112
    %v714 = vpop.permute.xlu0 %713
    %v716 = vmul.f32 %v700, %v714
    %718 = vrot.lane.b32.xlu0 %v716, 16
    %v719 = vpop.permute.xlu0 %718
    %v721 = vadd.f32 %v710, %v719
    %s722 = scalar_lea.vmem [#allocation2], 4
    %v723 = vld [vmem:[%s722] sm:$0x3]
    %s724 = scalar_lea.vmem [#allocation2], 10
    %v725 = vld [vmem:[%s724] sm:$0x3]
    %727 = vrot.lane.b32.xlu0 %v689, 96
    %v728 = vpop.permute.xlu0 %727
    %v729 = vsel %vm296, %v728, 0
    %731 = vmatprep.subr.mxu0 0.0
    %732 = vmatpush1.msra.mxu0 %v279
    %733 = vmatprep.subr.mxu0 0.0
    %734 = vmatpush1.msra.mxu0 %v280
    %735 = vmatprep.subr.mxu0 0.0
    %736 = vmatpush1.msra.mxu0 0.0
    %737 = vmatprep.subr.mxu0 0.0
    %738 = vmatpush1.msra.mxu0 0.0
    %739 = vmatprep.subr.mxu0 0.0
    %740 = vmatpush1.msra.mxu0 0.0
    %741 = vmatprep.subr.mxu0 0.0
    %742 = vmatpush1.msra.mxu0 0.0
    %743 = vmatprep.subr.mxu0 0.0
    %744 = vmatpush1.msra.mxu0 0.0
    %745 = vmatprep.subr.mxu0 0.0
    %746 = vmatpush1.msra.mxu0 0.0
    %747 = vmatprep.subr.mxu0 0.0
    %748 = vmatpush1.msra.mxu0 0.0
    %749 = vmatprep.subr.mxu0 0.0
    %750 = vmatpush1.msra.mxu0 0.0
    %751 = vmatprep.subr.mxu0 0.0
    %752 = vmatpush1.msra.mxu0 0.0
    %753 = vmatprep.subr.mxu0 0.0
    %754 = vmatpush1.msra.mxu0 0.0
    %755 = vmatprep.subr.mxu0 0.0
    %756 = vmatpush1.msra.mxu0 0.0
    %757 = vmatprep.subr.mxu0 0.0
    %758 = vmatpush1.msra.mxu0 0.0
    %759 = vmatprep.subr.mxu0 0.0
    %760 = vmatpush1.msra.mxu0 0.0
    %761 = vmatprep.subr.mxu0 0.0
    %762 = vmatpush1.msra.mxu0 0.0
    %763 = vmatprep.subr.mxu0 0.0
    %764 = vmatpush1.msra.mxu0 0.0
    %765 = vmatprep.subr.mxu0 0.0
    %766 = vmatpush1.msra.mxu0 0.0
    %767 = vmatprep.subr.mxu0 0.0
    %768 = vmatpush1.msra.mxu0 0.0
    %769 = vmatprep.subr.mxu0 0.0
    %770 = vmatpush1.msra.mxu0 0.0
    %771 = vmatprep.subr.mxu0 0.0
    %772 = vmatpush1.msra.mxu0 0.0
    %773 = vmatprep.subr.mxu0 0.0
    %774 = vmatpush1.msra.mxu0 0.0
    %775 = vmatprep.subr.mxu0 0.0
    %776 = vmatpush1.msra.mxu0 0.0
    %777 = vmatprep.subr.mxu0 0.0
    %778 = vmatpush1.msra.mxu0 0.0
    %779 = vmatprep.subr.mxu0 0.0
    %780 = vmatpush1.msra.mxu0 0.0
    %781 = vmatprep.subr.mxu0 0.0
    %782 = vmatpush1.msra.mxu0 0.0
    %783 = vmatprep.subr.mxu0 0.0
    %784 = vmatpush1.msra.mxu0 0.0
    %785 = vmatprep.subr.mxu0 0.0
    %786 = vmatpush1.msra.mxu0 0.0
    %787 = vmatprep.subr.mxu0 0.0
    %788 = vmatpush1.msra.mxu0 0.0
    %789 = vmatprep.subr.mxu0 0.0
    %790 = vmatpush1.msra.mxu0 0.0
    %791 = vmatprep.subr.mxu0 0.0
    %792 = vmatpush1.msra.mxu0 0.0
    %793 = vmatprep.subr.mxu0 0.0
    %794 = vmatpush1.msra.mxu0 0.0
    %795 = vmatprep.mubr.f32.mxu0 0.0
    %796 = vmatmul.mubr.f32.gmra.mrb[0].mxu0 %v729
    %v797 = vpop.f32.mrb[0].mxu0
    %v798 = vadd.f32 %v294, %v797
    %v799 = vpop.f32.mrb[0].mxu0
    %800 = vdwg.mxu0
    %802 = vrot.lane.b32.xlu0 %v721, 48
    %v803 = vpop.permute.xlu0 %802
    %v804 = vsel %vm296, %v803, 0
    %806 = vmatprep.subr.mxu0 0.0
    %807 = vmatpush1.msra.mxu0 %v282
    %808 = vmatprep.subr.mxu0 0.0
    %809 = vmatpush1.msra.mxu0 %v283
    %810 = vmatprep.subr.mxu0 0.0
    %811 = vmatpush1.msra.mxu0 0.0
    %812 = vmatprep.subr.mxu0 0.0
    %813 = vmatpush1.msra.mxu0 0.0
    %814 = vmatprep.subr.mxu0 0.0
    %815 = vmatpush1.msra.mxu0 0.0
    %816 = vmatprep.subr.mxu0 0.0
    %817 = vmatpush1.msra.mxu0 0.0
    %818 = vmatprep.subr.mxu0 0.0
    %819 = vmatpush1.msra.mxu0 0.0
    %820 = vmatprep.subr.mxu0 0.0
    %821 = vmatpush1.msra.mxu0 0.0
    %822 = vmatprep.subr.mxu0 0.0
    %823 = vmatpush1.msra.mxu0 0.0
    %824 = vmatprep.subr.mxu0 0.0
    %825 = vmatpush1.msra.mxu0 0.0
    %826 = vmatprep.subr.mxu0 0.0
    %827 = vmatpush1.msra.mxu0 0.0
    %828 = vmatprep.subr.mxu0 0.0
    %829 = vmatpush1.msra.mxu0 0.0
    %830 = vmatprep.subr.mxu0 0.0
    %831 = vmatpush1.msra.mxu0 0.0
    %832 = vmatprep.subr.mxu0 0.0
    %833 = vmatpush1.msra.mxu0 0.0
    %834 = vmatprep.subr.mxu0 0.0
    %835 = vmatpush1.msra.mxu0 0.0
    %836 = vmatprep.subr.mxu0 0.0
    %837 = vmatpush1.msra.mxu0 0.0
    %838 = vmatprep.subr.mxu0 0.0
    %839 = vmatpush1.msra.mxu0 0.0
    %840 = vmatprep.subr.mxu0 0.0
    %841 = vmatpush1.msra.mxu0 0.0
    %842 = vmatprep.subr.mxu0 0.0
    %843 = vmatpush1.msra.mxu0 0.0
    %844 = vmatprep.subr.mxu0 0.0
    %845 = vmatpush1.msra.mxu0 0.0
    %846 = vmatprep.subr.mxu0 0.0
    %847 = vmatpush1.msra.mxu0 0.0
    %848 = vmatprep.subr.mxu0 0.0
    %849 = vmatpush1.msra.mxu0 0.0
    %850 = vmatprep.subr.mxu0 0.0
    %851 = vmatpush1.msra.mxu0 0.0
    %852 = vmatprep.subr.mxu0 0.0
    %853 = vmatpush1.msra.mxu0 0.0
    %854 = vmatprep.subr.mxu0 0.0
    %855 = vmatpush1.msra.mxu0 0.0
    %856 = vmatprep.subr.mxu0 0.0
    %857 = vmatpush1.msra.mxu0 0.0
    %858 = vmatprep.subr.mxu0 0.0
    %859 = vmatpush1.msra.mxu0 0.0
    %860 = vmatprep.subr.mxu0 0.0
    %861 = vmatpush1.msra.mxu0 0.0
    %862 = vmatprep.subr.mxu0 0.0
    %863 = vmatpush1.msra.mxu0 0.0
    %864 = vmatprep.subr.mxu0 0.0
    %865 = vmatpush1.msra.mxu0 0.0
    %866 = vmatprep.subr.mxu0 0.0
    %867 = vmatpush1.msra.mxu0 0.0
    %868 = vmatprep.subr.mxu0 0.0
    %869 = vmatpush1.msra.mxu0 0.0
    %870 = vmatprep.mubr.f32.mxu0 0.0
    %871 = vmatmul.mubr.f32.gmra.mrb[0].mxu0 %v804
    %v872 = vpop.f32.mrb[0].mxu0
    %v873 = vadd.f32 %v374, %v872
    %v874 = vpop.f32.mrb[0].mxu0
    %875 = vdwg.mxu0
    %v876 = vadd.f32 %v723, %v798
    %v877 = vxor.u32 %v876, 2147483648
    %v878 = vmul.f32 %v877, 1.442695
    %v879 = vpow.pop %v878
    %v880 = vadd.f32 %v879, 1.0
    %v881 = vrcp.pop %v880
    %v882 = vmul.f32 1.0, %v881
    %884 = vrot.lane.b32.xlu0 %v798, 96
    %v885 = vpop.permute.xlu0 %884
    %v887 = vmul.f32 %v882, %v885
    %889 = vrot.lane.b32.xlu0 %v887, 32
    %v890 = vpop.permute.xlu0 %889
    %v892 = vadd.f32 %v723, %v890
    %v893 = vtanh.pop %v892
    %v894 = vsub.f32 %v689, %v893
    %896 = vrot.lane.b32.xlu0 %v894, 112
    %v897 = vpop.permute.xlu0 %896
    %v899 = vmul.f32 %v882, %v897
    %901 = vrot.lane.b32.xlu0 %v899, 16
    %v902 = vpop.permute.xlu0 %901
    %v904 = vadd.f32 %v893, %v902
    %906 = vrot.lane.b32.xlu0 %v873, 48
    %v907 = vpop.permute.xlu0 %906
    %v909 = vadd.f32 %v725, %v907
    %v910 = vxor.u32 %v909, 2147483648
    %v911 = vmul.f32 %v910, 1.442695
    %v912 = vpow.pop %v911
    %v913 = vadd.f32 %v912, 1.0
    %v914 = vrcp.pop %v913
    %v915 = vmul.f32 1.0, %v914
    %916 = vrot.lane.b32.xlu0 %v873, 16
    %v917 = vpop.permute.xlu0 %916
    %v919 = vmul.f32 %v915, %v917
    %921 = vrot.lane.b32.xlu0 %v919, 32
    %v922 = vpop.permute.xlu0 %921
    %v924 = vadd.f32 %v725, %v922
    %v925 = vtanh.pop %v924
    %v926 = vsub.f32 %v721, %v925
    %928 = vrot.lane.b32.xlu0 %v926, 112
    %v929 = vpop.permute.xlu0 %928
    %v931 = vmul.f32 %v915, %v929
    %933 = vrot.lane.b32.xlu0 %v931, 16
    %v934 = vpop.permute.xlu0 %933
    %v936 = vadd.f32 %v925, %v934
    %s937 = scalar_lea.vmem [#allocation2], 6
    %v938 = vld [vmem:[%s937] sm:$0x3]
    %s939 = scalar_lea.vmem [#allocation2], 8
    %v940 = vld [vmem:[%s939] sm:$0x3]
    %942 = vrot.lane.b32.xlu0 %v904, 96
    %v943 = vpop.permute.xlu0 %942
    %v944 = vsel %vm296, %v943, 0
    %946 = vmatprep.subr.mxu0 0.0
    %947 = vmatpush1.msra.mxu0 %v279
    %948 = vmatprep.subr.mxu0 0.0
    %949 = vmatpush1.msra.mxu0 %v280
    %950 = vmatprep.subr.mxu0 0.0
    %951 = vmatpush1.msra.mxu0 0.0
    %952 = vmatprep.subr.mxu0 0.0
    %953 = vmatpush1.msra.mxu0 0.0
    %954 = vmatprep.subr.mxu0 0.0
    %955 = vmatpush1.msra.mxu0 0.0
    %956 = vmatprep.subr.mxu0 0.0
    %957 = vmatpush1.msra.mxu0 0.0
    %958 = vmatprep.subr.mxu0 0.0
    %959 = vmatpush1.msra.mxu0 0.0
    %960 = vmatprep.subr.mxu0 0.0
    %961 = vmatpush1.msra.mxu0 0.0
    %962 = vmatprep.subr.mxu0 0.0
    %963 = vmatpush1.msra.mxu0 0.0
    %964 = vmatprep.subr.mxu0 0.0
    %965 = vmatpush1.msra.mxu0 0.0
    %966 = vmatprep.subr.mxu0 0.0
    %967 = vmatpush1.msra.mxu0 0.0
    %968 = vmatprep.subr.mxu0 0.0
    %969 = vmatpush1.msra.mxu0 0.0
    %970 = vmatprep.subr.mxu0 0.0
    %971 = vmatpush1.msra.mxu0 0.0
    %972 = vmatprep.subr.mxu0 0.0
    %973 = vmatpush1.msra.mxu0 0.0
    %974 = vmatprep.subr.mxu0 0.0
    %975 = vmatpush1.msra.mxu0 0.0
    %976 = vmatprep.subr.mxu0 0.0
    %977 = vmatpush1.msra.mxu0 0.0
    %978 = vmatprep.subr.mxu0 0.0
    %979 = vmatpush1.msra.mxu0 0.0
    %980 = vmatprep.subr.mxu0 0.0
    %981 = vmatpush1.msra.mxu0 0.0
    %982 = vmatprep.subr.mxu0 0.0
    %983 = vmatpush1.msra.mxu0 0.0
    %984 = vmatprep.subr.mxu0 0.0
    %985 = vmatpush1.msra.mxu0 0.0
    %986 = vmatprep.subr.mxu0 0.0
    %987 = vmatpush1.msra.mxu0 0.0
    %988 = vmatprep.subr.mxu0 0.0
    %989 = vmatpush1.msra.mxu0 0.0
    %990 = vmatprep.subr.mxu0 0.0
    %991 = vmatpush1.msra.mxu0 0.0
    %992 = vmatprep.subr.mxu0 0.0
    %993 = vmatpush1.msra.mxu0 0.0
    %994 = vmatprep.subr.mxu0 0.0
    %995 = vmatpush1.msra.mxu0 0.0
    %996 = vmatprep.subr.mxu0 0.0
    %997 = vmatpush1.msra.mxu0 0.0
    %998 = vmatprep.subr.mxu0 0.0
    %999 = vmatpush1.msra.mxu0 0.0
    %1000 = vmatprep.subr.mxu0 0.0
    %1001 = vmatpush1.msra.mxu0 0.0
    %1002 = vmatprep.subr.mxu0 0.0
    %1003 = vmatpush1.msra.mxu0 0.0
    %1004 = vmatprep.subr.mxu0 0.0
    %1005 = vmatpush1.msra.mxu0 0.0
    %1006 = vmatprep.subr.mxu0 0.0
    %1007 = vmatpush1.msra.mxu0 0.0
    %1008 = vmatprep.subr.mxu0 0.0
    %1009 = vmatpush1.msra.mxu0 0.0
    %1010 = vmatprep.mubr.f32.mxu0 0.0
    %1011 = vmatmul.mubr.f32.gmra.mrb[0].mxu0 %v944
    %v1012 = vpop.f32.mrb[0].mxu0
    %v1013 = vadd.f32 %v294, %v1012
    %v1014 = vpop.f32.mrb[0].mxu0
    %1015 = vdwg.mxu0
    %1017 = vrot.lane.b32.xlu0 %v936, 48
    %v1018 = vpop.permute.xlu0 %1017
    %v1019 = vsel %vm296, %v1018, 0
    %1021 = vmatprep.subr.mxu0 0.0
    %1022 = vmatpush1.msra.mxu0 %v282
    %1023 = vmatprep.subr.mxu0 0.0
    %1024 = vmatpush1.msra.mxu0 %v283
    %1025 = vmatprep.subr.mxu0 0.0
    %1026 = vmatpush1.msra.mxu0 0.0
    %1027 = vmatprep.subr.mxu0 0.0
    %1028 = vmatpush1.msra.mxu0 0.0
    %1029 = vmatprep.subr.mxu0 0.0
    %1030 = vmatpush1.msra.mxu0 0.0
    %1031 = vmatprep.subr.mxu0 0.0
    %1032 = vmatpush1.msra.mxu0 0.0
    %1033 = vmatprep.subr.mxu0 0.0
    %1034 = vmatpush1.msra.mxu0 0.0
    %1035 = vmatprep.subr.mxu0 0.0
    %1036 = vmatpush1.msra.mxu0 0.0
    %1037 = vmatprep.subr.mxu0 0.0
    %1038 = vmatpush1.msra.mxu0 0.0
    %1039 = vmatprep.subr.mxu0 0.0
    %1040 = vmatpush1.msra.mxu0 0.0
    %1041 = vmatprep.subr.mxu0 0.0
    %1042 = vmatpush1.msra.mxu0 0.0
    %1043 = vmatprep.subr.mxu0 0.0
    %1044 = vmatpush1.msra.mxu0 0.0
    %1045 = vmatprep.subr.mxu0 0.0
    %1046 = vmatpush1.msra.mxu0 0.0
    %1047 = vmatprep.subr.mxu0 0.0
    %1048 = vmatpush1.msra.mxu0 0.0
    %1049 = vmatprep.subr.mxu0 0.0
    %1050 = vmatpush1.msra.mxu0 0.0
    %1051 = vmatprep.subr.mxu0 0.0
    %1052 = vmatpush1.msra.mxu0 0.0
    %1053 = vmatprep.subr.mxu0 0.0
    %1054 = vmatpush1.msra.mxu0 0.0
    %1055 = vmatprep.subr.mxu0 0.0
    %1056 = vmatpush1.msra.mxu0 0.0
    %1057 = vmatprep.subr.mxu0 0.0
    %1058 = vmatpush1.msra.mxu0 0.0
    %1059 = vmatprep.subr.mxu0 0.0
    %1060 = vmatpush1.msra.mxu0 0.0
    %1061 = vmatprep.subr.mxu0 0.0
    %1062 = vmatpush1.msra.mxu0 0.0
    %1063 = vmatprep.subr.mxu0 0.0
    %1064 = vmatpush1.msra.mxu0 0.0
    %1065 = vmatprep.subr.mxu0 0.0
    %1066 = vmatpush1.msra.mxu0 0.0
    %1067 = vmatprep.subr.mxu0 0.0
    %1068 = vmatpush1.msra.mxu0 0.0
    %1069 = vmatprep.subr.mxu0 0.0
    %1070 = vmatpush1.msra.mxu0 0.0
    %1071 = vmatprep.subr.mxu0 0.0
    %1072 = vmatpush1.msra.mxu0 0.0
    %1073 = vmatprep.subr.mxu0 0.0
    %1074 = vmatpush1.msra.mxu0 0.0
    %1075 = vmatprep.subr.mxu0 0.0
    %1076 = vmatpush1.msra.mxu0 0.0
    %1077 = vmatprep.subr.mxu0 0.0
    %1078 = vmatpush1.msra.mxu0 0.0
    %1079 = vmatprep.subr.mxu0 0.0
    %1080 = vmatpush1.msra.mxu0 0.0
    %1081 = vmatprep.subr.mxu0 0.0
    %1082 = vmatpush1.msra.mxu0 0.0
    %1083 = vmatprep.subr.mxu0 0.0
    %1084 = vmatpush1.msra.mxu0 0.0
    %1085 = vmatprep.mubr.f32.mxu0 0.0
    %1086 = vmatmul.mubr.f32.gmra.mrb[0].mxu0 %v1019
    %v1087 = vpop.f32.mrb[0].mxu0
    %v1088 = vadd.f32 %v374, %v1087
    %v1089 = vpop.f32.mrb[0].mxu0
    %1090 = vdwg.mxu0
    %v1091 = vadd.f32 %v938, %v1013
    %v1092 = vxor.u32 %v1091, 2147483648
    %v1093 = vmul.f32 %v1092, 1.442695
    %v1094 = vpow.pop %v1093
    %v1095 = vadd.f32 %v1094, 1.0
    %v1096 = vrcp.pop %v1095
    %v1097 = vmul.f32 1.0, %v1096
    %1099 = vrot.lane.b32.xlu0 %v1013, 96
    %v1100 = vpop.permute.xlu0 %1099
    %v1102 = vmul.f32 %v1097, %v1100
    %1104 = vrot.lane.b32.xlu0 %v1102, 32
    %v1105 = vpop.permute.xlu0 %1104
    %v1107 = vadd.f32 %v938, %v1105
    %v1108 = vtanh.pop %v1107
    %v1109 = vsub.f32 %v904, %v1108
    %1111 = vrot.lane.b32.xlu0 %v1109, 112
    %v1112 = vpop.permute.xlu0 %1111
    %v1114 = vmul.f32 %v1097, %v1112
    %1116 = vrot.lane.b32.xlu0 %v1114, 16
    %v1117 = vpop.permute.xlu0 %1116
    %v1119 = vadd.f32 %v1108, %v1117
    %1121 = vrot.lane.b32.xlu0 %v1088, 48
    %v1122 = vpop.permute.xlu0 %1121
    %v1124 = vadd.f32 %v940, %v1122
    %v1125 = vxor.u32 %v1124, 2147483648
    %v1126 = vmul.f32 %v1125, 1.442695
    %v1127 = vpow.pop %v1126
    %v1128 = vadd.f32 %v1127, 1.0
    %v1129 = vrcp.pop %v1128
    %v1130 = vmul.f32 1.0, %v1129
    %1131 = vrot.lane.b32.xlu0 %v1088, 16
    %v1132 = vpop.permute.xlu0 %1131
    %v1134 = vmul.f32 %v1130, %v1132
    %1136 = vrot.lane.b32.xlu0 %v1134, 32
    %v1137 = vpop.permute.xlu0 %1136
    %v1139 = vadd.f32 %v940, %v1137
    %v1140 = vtanh.pop %v1139
    %v1141 = vsub.f32 %v936, %v1140
    %1143 = vrot.lane.b32.xlu0 %v1141, 112
    %v1144 = vpop.permute.xlu0 %1143
    %v1146 = vmul.f32 %v1130, %v1144
    %1148 = vrot.lane.b32.xlu0 %v1146, 16
    %v1149 = vpop.permute.xlu0 %1148
    %v1151 = vadd.f32 %v1140, %v1149
    %1153 = vrot.lane.b32.xlu0 %v1119, 96
    %v1154 = vpop.permute.xlu0 %1153
    %v1155 = vsel %vm296, %v1154, 0
    %1157 = vmatprep.subr.mxu0 0.0
    %1158 = vmatpush1.msra.mxu0 %v279
    %1159 = vmatprep.subr.mxu0 0.0
    %1160 = vmatpush1.msra.mxu0 %v280
    %1161 = vmatprep.subr.mxu0 0.0
    %1162 = vmatpush1.msra.mxu0 0.0
    %1163 = vmatprep.subr.mxu0 0.0
    %1164 = vmatpush1.msra.mxu0 0.0
    %1165 = vmatprep.subr.mxu0 0.0
    %1166 = vmatpush1.msra.mxu0 0.0
    %1167 = vmatprep.subr.mxu0 0.0
    %1168 = vmatpush1.msra.mxu0 0.0
    %1169 = vmatprep.subr.mxu0 0.0
    %1170 = vmatpush1.msra.mxu0 0.0
    %1171 = vmatprep.subr.mxu0 0.0
    %1172 = vmatpush1.msra.mxu0 0.0
    %1173 = vmatprep.subr.mxu0 0.0
    %1174 = vmatpush1.msra.mxu0 0.0
    %1175 = vmatprep.subr.mxu0 0.0
    %1176 = vmatpush1.msra.mxu0 0.0
    %1177 = vmatprep.subr.mxu0 0.0
    %1178 = vmatpush1.msra.mxu0 0.0
    %1179 = vmatprep.subr.mxu0 0.0
    %1180 = vmatpush1.msra.mxu0 0.0
    %1181 = vmatprep.subr.mxu0 0.0
    %1182 = vmatpush1.msra.mxu0 0.0
    %1183 = vmatprep.subr.mxu0 0.0
    %1184 = vmatpush1.msra.mxu0 0.0
    %1185 = vmatprep.subr.mxu0 0.0
    %1186 = vmatpush1.msra.mxu0 0.0
    %1187 = vmatprep.subr.mxu0 0.0
    %1188 = vmatpush1.msra.mxu0 0.0
    %1189 = vmatprep.subr.mxu0 0.0
    %1190 = vmatpush1.msra.mxu0 0.0
    %1191 = vmatprep.subr.mxu0 0.0
    %1192 = vmatpush1.msra.mxu0 0.0
    %1193 = vmatprep.subr.mxu0 0.0
    %1194 = vmatpush1.msra.mxu0 0.0
    %1195 = vmatprep.subr.mxu0 0.0
    %1196 = vmatpush1.msra.mxu0 0.0
    %1197 = vmatprep.subr.mxu0 0.0
    %1198 = vmatpush1.msra.mxu0 0.0
    %1199 = vmatprep.subr.mxu0 0.0
    %1200 = vmatpush1.msra.mxu0 0.0
    %1201 = vmatprep.subr.mxu0 0.0
    %1202 = vmatpush1.msra.mxu0 0.0
    %1203 = vmatprep.subr.mxu0 0.0
    %1204 = vmatpush1.msra.mxu0 0.0
    %1205 = vmatprep.subr.mxu0 0.0
    %1206 = vmatpush1.msra.mxu0 0.0
    %1207 = vmatprep.subr.mxu0 0.0
    %1208 = vmatpush1.msra.mxu0 0.0
    %1209 = vmatprep.subr.mxu0 0.0
    %1210 = vmatpush1.msra.mxu0 0.0
    %1211 = vmatprep.subr.mxu0 0.0
    %1212 = vmatpush1.msra.mxu0 0.0
    %1213 = vmatprep.subr.mxu0 0.0
    %1214 = vmatpush1.msra.mxu0 0.0
    %1215 = vmatprep.subr.mxu0 0.0
    %1216 = vmatpush1.msra.mxu0 0.0
    %1217 = vmatprep.subr.mxu0 0.0
    %1218 = vmatpush1.msra.mxu0 0.0
    %1219 = vmatprep.subr.mxu0 0.0
    %1220 = vmatpush1.msra.mxu0 0.0
    %1221 = vmatprep.mubr.f32.mxu0 0.0
    %1222 = vmatmul.mubr.f32.gmra.mrb[0].mxu0 %v1155
    %v1223 = vpop.f32.mrb[0].mxu0
    %v1224 = vadd.f32 %v294, %v1223
    %v1225 = vpop.f32.mrb[0].mxu0
    %1226 = vdwg.mxu0
    %1228 = vrot.lane.b32.xlu0 %v1151, 48
    %v1229 = vpop.permute.xlu0 %1228
    %v1230 = vsel %vm296, %v1229, 0
    %1232 = vmatprep.subr.mxu0 0.0
    %1233 = vmatpush1.msra.mxu0 %v282
    %1234 = vmatprep.subr.mxu0 0.0
    %1235 = vmatpush1.msra.mxu0 %v283
    %1236 = vmatprep.subr.mxu0 0.0
    %1237 = vmatpush1.msra.mxu0 0.0
    %1238 = vmatprep.subr.mxu0 0.0
    %1239 = vmatpush1.msra.mxu0 0.0
    %1240 = vmatprep.subr.mxu0 0.0
    %1241 = vmatpush1.msra.mxu0 0.0
    %1242 = vmatprep.subr.mxu0 0.0
    %1243 = vmatpush1.msra.mxu0 0.0
    %1244 = vmatprep.subr.mxu0 0.0
    %1245 = vmatpush1.msra.mxu0 0.0
    %1246 = vmatprep.subr.mxu0 0.0
    %1247 = vmatpush1.msra.mxu0 0.0
    %1248 = vmatprep.subr.mxu0 0.0
    %1249 = vmatpush1.msra.mxu0 0.0
    %1250 = vmatprep.subr.mxu0 0.0
    %1251 = vmatpush1.msra.mxu0 0.0
    %1252 = vmatprep.subr.mxu0 0.0
    %1253 = vmatpush1.msra.mxu0 0.0
    %1254 = vmatprep.subr.mxu0 0.0
    %1255 = vmatpush1.msra.mxu0 0.0
    %1256 = vmatprep.subr.mxu0 0.0
    %1257 = vmatpush1.msra.mxu0 0.0
    %1258 = vmatprep.subr.mxu0 0.0
    %1259 = vmatpush1.msra.mxu0 0.0
    %1260 = vmatprep.subr.mxu0 0.0
    %1261 = vmatpush1.msra.mxu0 0.0
    %1262 = vmatprep.subr.mxu0 0.0
    %1263 = vmatpush1.msra.mxu0 0.0
    %1264 = vmatprep.subr.mxu0 0.0
    %1265 = vmatpush1.msra.mxu0 0.0
    %1266 = vmatprep.subr.mxu0 0.0
    %1267 = vmatpush1.msra.mxu0 0.0
    %1268 = vmatprep.subr.mxu0 0.0
    %1269 = vmatpush1.msra.mxu0 0.0
    %1270 = vmatprep.subr.mxu0 0.0
    %1271 = vmatpush1.msra.mxu0 0.0
    %1272 = vmatprep.subr.mxu0 0.0
    %1273 = vmatpush1.msra.mxu0 0.0
    %1274 = vmatprep.subr.mxu0 0.0
    %1275 = vmatpush1.msra.mxu0 0.0
    %1276 = vmatprep.subr.mxu0 0.0
    %1277 = vmatpush1.msra.mxu0 0.0
    %1278 = vmatprep.subr.mxu0 0.0
    %1279 = vmatpush1.msra.mxu0 0.0
    %1280 = vmatprep.subr.mxu0 0.0
    %1281 = vmatpush1.msra.mxu0 0.0
    %1282 = vmatprep.subr.mxu0 0.0
    %1283 = vmatpush1.msra.mxu0 0.0
    %1284 = vmatprep.subr.mxu0 0.0
    %1285 = vmatpush1.msra.mxu0 0.0
    %1286 = vmatprep.subr.mxu0 0.0
    %1287 = vmatpush1.msra.mxu0 0.0
    %1288 = vmatprep.subr.mxu0 0.0
    %1289 = vmatpush1.msra.mxu0 0.0
    %1290 = vmatprep.subr.mxu0 0.0
    %1291 = vmatpush1.msra.mxu0 0.0
    %1292 = vmatprep.subr.mxu0 0.0
    %1293 = vmatpush1.msra.mxu0 0.0
    %1294 = vmatprep.subr.mxu0 0.0
    %1295 = vmatpush1.msra.mxu0 0.0
    %1296 = vmatprep.mubr.f32.mxu0 0.0
    %1297 = vmatmul.mubr.f32.gmra.mrb[0].mxu0 %v1230
    %v1298 = vpop.f32.mrb[0].mxu0
    %v1299 = vadd.f32 %v374, %v1298
    %v1300 = vpop.f32.mrb[0].mxu0
    %1301 = vdwg.mxu0
    %v1302 = vadd.f32 %v940, %v1224
    %v1303 = vxor.u32 %v1302, 2147483648
    %v1304 = vmul.f32 %v1303, 1.442695
    %v1305 = vpow.pop %v1304
    %v1306 = vadd.f32 %v1305, 1.0
    %v1307 = vrcp.pop %v1306
    %v1308 = vmul.f32 1.0, %v1307
    %1310 = vrot.lane.b32.xlu0 %v1224, 96
    %v1311 = vpop.permute.xlu0 %1310
    %v1313 = vmul.f32 %v1308, %v1311
    %1315 = vrot.lane.b32.xlu0 %v1313, 32
    %v1316 = vpop.permute.xlu0 %1315
    %v1318 = vadd.f32 %v940, %v1316
    %v1319 = vtanh.pop %v1318
    %v1320 = vsub.f32 %v1119, %v1319
    %1322 = vrot.lane.b32.xlu0 %v1320, 112
    %v1323 = vpop.permute.xlu0 %1322
    %v1325 = vmul.f32 %v1308, %v1323
    %1327 = vrot.lane.b32.xlu0 %v1325, 16
    %v1328 = vpop.permute.xlu0 %1327
    %v1330 = vadd.f32 %v1319, %v1328
    %1332 = vrot.lane.b32.xlu0 %v1299, 48
    %v1333 = vpop.permute.xlu0 %1332
    %v1335 = vadd.f32 %v938, %v1333
    %v1336 = vxor.u32 %v1335, 2147483648
    %v1337 = vmul.f32 %v1336, 1.442695
    %v1338 = vpow.pop %v1337
    %v1339 = vadd.f32 %v1338, 1.0
    %v1340 = vrcp.pop %v1339
    %v1341 = vmul.f32 1.0, %v1340
    %1342 = vrot.lane.b32.xlu0 %v1299, 16
    %v1343 = vpop.permute.xlu0 %1342
    %v1345 = vmul.f32 %v1341, %v1343
    %1347 = vrot.lane.b32.xlu0 %v1345, 32
    %v1348 = vpop.permute.xlu0 %1347
    %v1350 = vadd.f32 %v938, %v1348
    %v1351 = vtanh.pop %v1350
    %v1352 = vsub.f32 %v1151, %v1351
    %1354 = vrot.lane.b32.xlu0 %v1352, 112
    %v1355 = vpop.permute.xlu0 %1354
    %v1357 = vmul.f32 %v1341, %v1355
    %1359 = vrot.lane.b32.xlu0 %v1357, 16
    %v1360 = vpop.permute.xlu0 %1359
    %v1362 = vadd.f32 %v1351, %v1360
    %1364 = vrot.lane.b32.xlu0 %v1330, 96
    %v1365 = vpop.permute.xlu0 %1364
    %v1366 = vsel %vm296, %v1365, 0
    %1368 = vmatprep.subr.mxu0 0.0
    %1369 = vmatpush1.msra.mxu0 %v279
    %1370 = vmatprep.subr.mxu0 0.0
    %1371 = vmatpush1.msra.mxu0 %v280
    %1372 = vmatprep.subr.mxu0 0.0
    %1373 = vmatpush1.msra.mxu0 0.0
    %1374 = vmatprep.subr.mxu0 0.0
    %1375 = vmatpush1.msra.mxu0 0.0
    %1376 = vmatprep.subr.mxu0 0.0
    %1377 = vmatpush1.msra.mxu0 0.0
    %1378 = vmatprep.subr.mxu0 0.0
    %1379 = vmatpush1.msra.mxu0 0.0
    %1380 = vmatprep.subr.mxu0 0.0
    %1381 = vmatpush1.msra.mxu0 0.0
    %1382 = vmatprep.subr.mxu0 0.0
    %1383 = vmatpush1.msra.mxu0 0.0
    %1384 = vmatprep.subr.mxu0 0.0
    %1385 = vmatpush1.msra.mxu0 0.0
    %1386 = vmatprep.subr.mxu0 0.0
    %1387 = vmatpush1.msra.mxu0 0.0
    %1388 = vmatprep.subr.mxu0 0.0
    %1389 = vmatpush1.msra.mxu0 0.0
    %1390 = vmatprep.subr.mxu0 0.0
    %1391 = vmatpush1.msra.mxu0 0.0
    %1392 = vmatprep.subr.mxu0 0.0
    %1393 = vmatpush1.msra.mxu0 0.0
    %1394 = vmatprep.subr.mxu0 0.0
    %1395 = vmatpush1.msra.mxu0 0.0
    %1396 = vmatprep.subr.mxu0 0.0
    %1397 = vmatpush1.msra.mxu0 0.0
    %1398 = vmatprep.subr.mxu0 0.0
    %1399 = vmatpush1.msra.mxu0 0.0
    %1400 = vmatprep.subr.mxu0 0.0
    %1401 = vmatpush1.msra.mxu0 0.0
    %1402 = vmatprep.subr.mxu0 0.0
    %1403 = vmatpush1.msra.mxu0 0.0
    %1404 = vmatprep.subr.mxu0 0.0
    %1405 = vmatpush1.msra.mxu0 0.0
    %1406 = vmatprep.subr.mxu0 0.0
    %1407 = vmatpush1.msra.mxu0 0.0
    %1408 = vmatprep.subr.mxu0 0.0
    %1409 = vmatpush1.msra.mxu0 0.0
    %1410 = vmatprep.subr.mxu0 0.0
    %1411 = vmatpush1.msra.mxu0 0.0
    %1412 = vmatprep.subr.mxu0 0.0
    %1413 = vmatpush1.msra.mxu0 0.0
    %1414 = vmatprep.subr.mxu0 0.0
    %1415 = vmatpush1.msra.mxu0 0.0
    %1416 = vmatprep.subr.mxu0 0.0
    %1417 = vmatpush1.msra.mxu0 0.0
    %1418 = vmatprep.subr.mxu0 0.0
    %1419 = vmatpush1.msra.mxu0 0.0
    %1420 = vmatprep.subr.mxu0 0.0
    %1421 = vmatpush1.msra.mxu0 0.0
    %1422 = vmatprep.subr.mxu0 0.0
    %1423 = vmatpush1.msra.mxu0 0.0
    %1424 = vmatprep.subr.mxu0 0.0
    %1425 = vmatpush1.msra.mxu0 0.0
    %1426 = vmatprep.subr.mxu0 0.0
    %1427 = vmatpush1.msra.mxu0 0.0
    %1428 = vmatprep.subr.mxu0 0.0
    %1429 = vmatpush1.msra.mxu0 0.0
    %1430 = vmatprep.subr.mxu0 0.0
    %1431 = vmatpush1.msra.mxu0 0.0
    %1432 = vmatprep.mubr.f32.mxu0 0.0
    %1433 = vmatmul.mubr.f32.gmra.mrb[0].mxu0 %v1366
    %v1434 = vpop.f32.mrb[0].mxu0
    %v1435 = vadd.f32 %v294, %v1434
    %v1436 = vpop.f32.mrb[0].mxu0
    %1437 = vdwg.mxu0
    %1439 = vrot.lane.b32.xlu0 %v1362, 48
    %v1440 = vpop.permute.xlu0 %1439
    %v1441 = vsel %vm296, %v1440, 0
    %1443 = vmatprep.subr.mxu0 0.0
    %1444 = vmatpush1.msra.mxu0 %v282
    %1445 = vmatprep.subr.mxu0 0.0
    %1446 = vmatpush1.msra.mxu0 %v283
    %1447 = vmatprep.subr.mxu0 0.0
    %1448 = vmatpush1.msra.mxu0 0.0
    %1449 = vmatprep.subr.mxu0 0.0
    %1450 = vmatpush1.msra.mxu0 0.0
    %1451 = vmatprep.subr.mxu0 0.0
    %1452 = vmatpush1.msra.mxu0 0.0
    %1453 = vmatprep.subr.mxu0 0.0
    %1454 = vmatpush1.msra.mxu0 0.0
    %1455 = vmatprep.subr.mxu0 0.0
    %1456 = vmatpush1.msra.mxu0 0.0
    %1457 = vmatprep.subr.mxu0 0.0
    %1458 = vmatpush1.msra.mxu0 0.0
    %1459 = vmatprep.subr.mxu0 0.0
    %1460 = vmatpush1.msra.mxu0 0.0
    %1461 = vmatprep.subr.mxu0 0.0
    %1462 = vmatpush1.msra.mxu0 0.0
    %1463 = vmatprep.subr.mxu0 0.0
    %1464 = vmatpush1.msra.mxu0 0.0
    %1465 = vmatprep.subr.mxu0 0.0
    %1466 = vmatpush1.msra.mxu0 0.0
    %1467 = vmatprep.subr.mxu0 0.0
    %1468 = vmatpush1.msra.mxu0 0.0
    %1469 = vmatprep.subr.mxu0 0.0
    %1470 = vmatpush1.msra.mxu0 0.0
    %1471 = vmatprep.subr.mxu0 0.0
    %1472 = vmatpush1.msra.mxu0 0.0
    %1473 = vmatprep.subr.mxu0 0.0
    %1474 = vmatpush1.msra.mxu0 0.0
    %1475 = vmatprep.subr.mxu0 0.0
    %1476 = vmatpush1.msra.mxu0 0.0
    %1477 = vmatprep.subr.mxu0 0.0
    %1478 = vmatpush1.msra.mxu0 0.0
    %1479 = vmatprep.subr.mxu0 0.0
    %1480 = vmatpush1.msra.mxu0 0.0
    %1481 = vmatprep.subr.mxu0 0.0
    %1482 = vmatpush1.msra.mxu0 0.0
    %1483 = vmatprep.subr.mxu0 0.0
    %1484 = vmatpush1.msra.mxu0 0.0
    %1485 = vmatprep.subr.mxu0 0.0
    %1486 = vmatpush1.msra.mxu0 0.0
    %1487 = vmatprep.subr.mxu0 0.0
    %1488 = vmatpush1.msra.mxu0 0.0
    %1489 = vmatprep.subr.mxu0 0.0
    %1490 = vmatpush1.msra.mxu0 0.0
    %1491 = vmatprep.subr.mxu0 0.0
    %1492 = vmatpush1.msra.mxu0 0.0
    %1493 = vmatprep.subr.mxu0 0.0
    %1494 = vmatpush1.msra.mxu0 0.0
    %1495 = vmatprep.subr.mxu0 0.0
    %1496 = vmatpush1.msra.mxu0 0.0
    %1497 = vmatprep.subr.mxu0 0.0
    %1498 = vmatpush1.msra.mxu0 0.0
    %1499 = vmatprep.subr.mxu0 0.0
    %1500 = vmatpush1.msra.mxu0 0.0
    %1501 = vmatprep.subr.mxu0 0.0
    %1502 = vmatpush1.msra.mxu0 0.0
    %1503 = vmatprep.subr.mxu0 0.0
    %1504 = vmatpush1.msra.mxu0 0.0
    %1505 = vmatprep.subr.mxu0 0.0
    %1506 = vmatpush1.msra.mxu0 0.0
    %1507 = vmatprep.mubr.f32.mxu0 0.0
    %1508 = vmatmul.mubr.f32.gmra.mrb[0].mxu0 %v1441
    %v1509 = vpop.f32.mrb[0].mxu0
    %v1510 = vadd.f32 %v374, %v1509
    %v1511 = vpop.f32.mrb[0].mxu0
    %1512 = vdwg.mxu0
    %v1513 = vadd.f32 %v725, %v1435
    %v1514 = vxor.u32 %v1513, 2147483648
    %v1515 = vmul.f32 %v1514, 1.442695
    %v1516 = vpow.pop %v1515
    %v1517 = vadd.f32 %v1516, 1.0
    %v1518 = vrcp.pop %v1517
    %v1519 = vmul.f32 1.0, %v1518
    %1521 = vrot.lane.b32.xlu0 %v1435, 96
    %v1522 = vpop.permute.xlu0 %1521
    %v1524 = vmul.f32 %v1519, %v1522
    %1526 = vrot.lane.b32.xlu0 %v1524, 32
    %v1527 = vpop.permute.xlu0 %1526
    %v1529 = vadd.f32 %v725, %v1527
    %v1530 = vtanh.pop %v1529
    %v1531 = vsub.f32 %v1330, %v1530
    %1533 = vrot.lane.b32.xlu0 %v1531, 112
    %v1534 = vpop.permute.xlu0 %1533
    %v1536 = vmul.f32 %v1519, %v1534
    %1538 = vrot.lane.b32.xlu0 %v1536, 16
    %v1539 = vpop.permute.xlu0 %1538
    %v1541 = vadd.f32 %v1530, %v1539
    %1543 = vrot.lane.b32.xlu0 %v1510, 48
    %v1544 = vpop.permute.xlu0 %1543
    %v1546 = vadd.f32 %v723, %v1544
    %v1547 = vxor.u32 %v1546, 2147483648
    %v1548 = vmul.f32 %v1547, 1.442695
    %v1549 = vpow.pop %v1548
    %v1550 = vadd.f32 %v1549, 1.0
    %v1551 = vrcp.pop %v1550
    %v1552 = vmul.f32 1.0, %v1551
    %1553 = vrot.lane.b32.xlu0 %v1510, 16
    %v1554 = vpop.permute.xlu0 %1553
    %v1556 = vmul.f32 %v1552, %v1554
    %1558 = vrot.lane.b32.xlu0 %v1556, 32
    %v1559 = vpop.permute.xlu0 %1558
    %v1561 = vadd.f32 %v723, %v1559
    %v1562 = vtanh.pop %v1561
    %v1563 = vsub.f32 %v1362, %v1562
    %1565 = vrot.lane.b32.xlu0 %v1563, 112
    %v1566 = vpop.permute.xlu0 %1565
    %v1568 = vmul.f32 %v1552, %v1566
    %1570 = vrot.lane.b32.xlu0 %v1568, 16
    %v1571 = vpop.permute.xlu0 %1570
    %v1573 = vadd.f32 %v1562, %v1571
    %1575 = vrot.lane.b32.xlu0 %v1541, 96
    %v1576 = vpop.permute.xlu0 %1575
    %v1577 = vsel %vm296, %v1576, 0
    %1579 = vmatprep.subr.mxu0 0.0
    %1580 = vmatpush1.msra.mxu0 %v279
    %1581 = vmatprep.subr.mxu0 0.0
    %1582 = vmatpush1.msra.mxu0 %v280
    %1583 = vmatprep.subr.mxu0 0.0
    %1584 = vmatpush1.msra.mxu0 0.0
    %1585 = vmatprep.subr.mxu0 0.0
    %1586 = vmatpush1.msra.mxu0 0.0
    %1587 = vmatprep.subr.mxu0 0.0
    %1588 = vmatpush1.msra.mxu0 0.0
    %1589 = vmatprep.subr.mxu0 0.0
    %1590 = vmatpush1.msra.mxu0 0.0
    %1591 = vmatprep.subr.mxu0 0.0
    %1592 = vmatpush1.msra.mxu0 0.0
    %1593 = vmatprep.subr.mxu0 0.0
    %1594 = vmatpush1.msra.mxu0 0.0
    %1595 = vmatprep.subr.mxu0 0.0
    %1596 = vmatpush1.msra.mxu0 0.0
    %1597 = vmatprep.subr.mxu0 0.0
    %1598 = vmatpush1.msra.mxu0 0.0
    %1599 = vmatprep.subr.mxu0 0.0
    %1600 = vmatpush1.msra.mxu0 0.0
    %1601 = vmatprep.subr.mxu0 0.0
    %1602 = vmatpush1.msra.mxu0 0.0
    %1603 = vmatprep.subr.mxu0 0.0
    %1604 = vmatpush1.msra.mxu0 0.0
    %1605 = vmatprep.subr.mxu0 0.0
    %1606 = vmatpush1.msra.mxu0 0.0
    %1607 = vmatprep.subr.mxu0 0.0
    %1608 = vmatpush1.msra.mxu0 0.0
    %1609 = vmatprep.subr.mxu0 0.0
    %1610 = vmatpush1.msra.mxu0 0.0
    %1611 = vmatprep.subr.mxu0 0.0
    %1612 = vmatpush1.msra.mxu0 0.0
    %1613 = vmatprep.subr.mxu0 0.0
    %1614 = vmatpush1.msra.mxu0 0.0
    %1615 = vmatprep.subr.mxu0 0.0
    %1616 = vmatpush1.msra.mxu0 0.0
    %1617 = vmatprep.subr.mxu0 0.0
    %1618 = vmatpush1.msra.mxu0 0.0
    %1619 = vmatprep.subr.mxu0 0.0
    %1620 = vmatpush1.msra.mxu0 0.0
    %1621 = vmatprep.subr.mxu0 0.0
    %1622 = vmatpush1.msra.mxu0 0.0
    %1623 = vmatprep.subr.mxu0 0.0
    %1624 = vmatpush1.msra.mxu0 0.0
    %1625 = vmatprep.subr.mxu0 0.0
    %1626 = vmatpush1.msra.mxu0 0.0
    %1627 = vmatprep.subr.mxu0 0.0
    %1628 = vmatpush1.msra.mxu0 0.0
    %1629 = vmatprep.subr.mxu0 0.0
    %1630 = vmatpush1.msra.mxu0 0.0
    %1631 = vmatprep.subr.mxu0 0.0
    %1632 = vmatpush1.msra.mxu0 0.0
    %1633 = vmatprep.subr.mxu0 0.0
    %1634 = vmatpush1.msra.mxu0 0.0
    %1635 = vmatprep.subr.mxu0 0.0
    %1636 = vmatpush1.msra.mxu0 0.0
    %1637 = vmatprep.subr.mxu0 0.0
    %1638 = vmatpush1.msra.mxu0 0.0
    %1639 = vmatprep.subr.mxu0 0.0
    %1640 = vmatpush1.msra.mxu0 0.0
    %1641 = vmatprep.subr.mxu0 0.0
    %1642 = vmatpush1.msra.mxu0 0.0
    %1643 = vmatprep.mubr.f32.mxu0 0.0
    %1644 = vmatmul.mubr.f32.gmra.mrb[0].mxu0 %v1577
    %v1645 = vpop.f32.mrb[0].mxu0
    %v1646 = vadd.f32 %v294, %v1645
    %v1647 = vpop.f32.mrb[0].mxu0
    %1648 = vdwg.mxu0
    %1650 = vrot.lane.b32.xlu0 %v1573, 48
    %v1651 = vpop.permute.xlu0 %1650
    %v1652 = vsel %vm296, %v1651, 0
    %1654 = vmatprep.subr.mxu0 0.0
    %1655 = vmatpush1.msra.mxu0 %v282
    %1656 = vmatprep.subr.mxu0 0.0
    %1657 = vmatpush1.msra.mxu0 %v283
    %1658 = vmatprep.subr.mxu0 0.0
    %1659 = vmatpush1.msra.mxu0 0.0
    %1660 = vmatprep.subr.mxu0 0.0
    %1661 = vmatpush1.msra.mxu0 0.0
    %1662 = vmatprep.subr.mxu0 0.0
    %1663 = vmatpush1.msra.mxu0 0.0
    %1664 = vmatprep.subr.mxu0 0.0
    %1665 = vmatpush1.msra.mxu0 0.0
    %1666 = vmatprep.subr.mxu0 0.0
    %1667 = vmatpush1.msra.mxu0 0.0
    %1668 = vmatprep.subr.mxu0 0.0
    %1669 = vmatpush1.msra.mxu0 0.0
    %1670 = vmatprep.subr.mxu0 0.0
    %1671 = vmatpush1.msra.mxu0 0.0
    %1672 = vmatprep.subr.mxu0 0.0
    %1673 = vmatpush1.msra.mxu0 0.0
    %1674 = vmatprep.subr.mxu0 0.0
    %1675 = vmatpush1.msra.mxu0 0.0
    %1676 = vmatprep.subr.mxu0 0.0
    %1677 = vmatpush1.msra.mxu0 0.0
    %1678 = vmatprep.subr.mxu0 0.0
    %1679 = vmatpush1.msra.mxu0 0.0
    %1680 = vmatprep.subr.mxu0 0.0
    %1681 = vmatpush1.msra.mxu0 0.0
    %1682 = vmatprep.subr.mxu0 0.0
    %1683 = vmatpush1.msra.mxu0 0.0
    %1684 = vmatprep.subr.mxu0 0.0
    %1685 = vmatpush1.msra.mxu0 0.0
    %1686 = vmatprep.subr.mxu0 0.0
    %1687 = vmatpush1.msra.mxu0 0.0
    %1688 = vmatprep.subr.mxu0 0.0
    %1689 = vmatpush1.msra.mxu0 0.0
    %1690 = vmatprep.subr.mxu0 0.0
    %1691 = vmatpush1.msra.mxu0 0.0
    %1692 = vmatprep.subr.mxu0 0.0
    %1693 = vmatpush1.msra.mxu0 0.0
    %1694 = vmatprep.subr.mxu0 0.0
    %1695 = vmatpush1.msra.mxu0 0.0
    %1696 = vmatprep.subr.mxu0 0.0
    %1697 = vmatpush1.msra.mxu0 0.0
    %1698 = vmatprep.subr.mxu0 0.0
    %1699 = vmatpush1.msra.mxu0 0.0
    %1700 = vmatprep.subr.mxu0 0.0
    %1701 = vmatpush1.msra.mxu0 0.0
    %1702 = vmatprep.subr.mxu0 0.0
    %1703 = vmatpush1.msra.mxu0 0.0
    %1704 = vmatprep.subr.mxu0 0.0
    %1705 = vmatpush1.msra.mxu0 0.0
    %1706 = vmatprep.subr.mxu0 0.0
    %1707 = vmatpush1.msra.mxu0 0.0
    %1708 = vmatprep.subr.mxu0 0.0
    %1709 = vmatpush1.msra.mxu0 0.0
    %1710 = vmatprep.subr.mxu0 0.0
    %1711 = vmatpush1.msra.mxu0 0.0
    %1712 = vmatprep.subr.mxu0 0.0
    %1713 = vmatpush1.msra.mxu0 0.0
    %1714 = vmatprep.subr.mxu0 0.0
    %1715 = vmatpush1.msra.mxu0 0.0
    %1716 = vmatprep.subr.mxu0 0.0
    %1717 = vmatpush1.msra.mxu0 0.0
    %1718 = vmatprep.mubr.f32.mxu0 0.0
    %1719 = vmatmul.mubr.f32.gmra.mrb[0].mxu0 %v1652
    %v1720 = vpop.f32.mrb[0].mxu0
    %v1721 = vadd.f32 %v374, %v1720
    %v1722 = vpop.f32.mrb[0].mxu0
    %1723 = vdwg.mxu0
    %v1724 = vadd.f32 %v510, %v1646
    %v1725 = vxor.u32 %v1724, 2147483648
    %v1726 = vmul.f32 %v1725, 1.442695
    %v1727 = vpow.pop %v1726
    %v1728 = vadd.f32 %v1727, 1.0
    %v1729 = vrcp.pop %v1728
    %v1730 = vmul.f32 1.0, %v1729
    %1732 = vrot.lane.b32.xlu0 %v1646, 96
    %v1733 = vpop.permute.xlu0 %1732
    %v1735 = vmul.f32 %v1730, %v1733
    %1737 = vrot.lane.b32.xlu0 %v1735, 32
    %v1738 = vpop.permute.xlu0 %1737
    %v1740 = vadd.f32 %v510, %v1738
    %v1741 = vtanh.pop %v1740
    %v1742 = vsub.f32 %v1541, %v1741
    %1744 = vrot.lane.b32.xlu0 %v1742, 112
    %v1745 = vpop.permute.xlu0 %1744
    %v1747 = vmul.f32 %v1730, %v1745
    %1749 = vrot.lane.b32.xlu0 %v1747, 16
    %v1750 = vpop.permute.xlu0 %1749
    %v1752 = vadd.f32 %v1741, %v1750
    %1754 = vrot.lane.b32.xlu0 %v1721, 48
    %v1755 = vpop.permute.xlu0 %1754
    %v1757 = vadd.f32 %v508, %v1755
    %v1758 = vxor.u32 %v1757, 2147483648
    %v1759 = vmul.f32 %v1758, 1.442695
    %v1760 = vpow.pop %v1759
    %v1761 = vadd.f32 %v1760, 1.0
    %v1762 = vrcp.pop %v1761
    %v1763 = vmul.f32 1.0, %v1762
    %1764 = vrot.lane.b32.xlu0 %v1721, 16
    %v1765 = vpop.permute.xlu0 %1764
    %v1767 = vmul.f32 %v1763, %v1765
    %1769 = vrot.lane.b32.xlu0 %v1767, 32
    %v1770 = vpop.permute.xlu0 %1769
    %v1772 = vadd.f32 %v508, %v1770
    %v1773 = vtanh.pop %v1772
    %v1774 = vsub.f32 %v1573, %v1773
    %1776 = vrot.lane.b32.xlu0 %v1774, 112
    %v1777 = vpop.permute.xlu0 %1776
    %v1779 = vmul.f32 %v1763, %v1777
    %1781 = vrot.lane.b32.xlu0 %v1779, 16
    %v1782 = vpop.permute.xlu0 %1781
    %v1784 = vadd.f32 %v1773, %v1782
    %1786 = vrot.lane.b32.xlu0 %v1752, 96
    %v1787 = vpop.permute.xlu0 %1786
    %v1788 = vsel %vm296, %v1787, 0
    %1790 = vmatprep.subr.mxu0 0.0
    %1791 = vmatpush1.msra.mxu0 %v279
    %1792 = vmatprep.subr.mxu0 0.0
    %1793 = vmatpush1.msra.mxu0 %v280
    %1794 = vmatprep.subr.mxu0 0.0
    %1795 = vmatpush1.msra.mxu0 0.0
    %1796 = vmatprep.subr.mxu0 0.0
    %1797 = vmatpush1.msra.mxu0 0.0
    %1798 = vmatprep.subr.mxu0 0.0
    %1799 = vmatpush1.msra.mxu0 0.0
    %1800 = vmatprep.subr.mxu0 0.0
    %1801 = vmatpush1.msra.mxu0 0.0
    %1802 = vmatprep.subr.mxu0 0.0
    %1803 = vmatpush1.msra.mxu0 0.0
    %1804 = vmatprep.subr.mxu0 0.0
    %1805 = vmatpush1.msra.mxu0 0.0
    %1806 = vmatprep.subr.mxu0 0.0
    %1807 = vmatpush1.msra.mxu0 0.0
    %1808 = vmatprep.subr.mxu0 0.0
    %1809 = vmatpush1.msra.mxu0 0.0
    %1810 = vmatprep.subr.mxu0 0.0
    %1811 = vmatpush1.msra.mxu0 0.0
    %1812 = vmatprep.subr.mxu0 0.0
    %1813 = vmatpush1.msra.mxu0 0.0
    %1814 = vmatprep.subr.mxu0 0.0
    %1815 = vmatpush1.msra.mxu0 0.0
    %1816 = vmatprep.subr.mxu0 0.0
    %1817 = vmatpush1.msra.mxu0 0.0
    %1818 = vmatprep.subr.mxu0 0.0
    %1819 = vmatpush1.msra.mxu0 0.0
    %1820 = vmatprep.subr.mxu0 0.0
    %1821 = vmatpush1.msra.mxu0 0.0
    %1822 = vmatprep.subr.mxu0 0.0
    %1823 = vmatpush1.msra.mxu0 0.0
    %1824 = vmatprep.subr.mxu0 0.0
    %1825 = vmatpush1.msra.mxu0 0.0
    %1826 = vmatprep.subr.mxu0 0.0
    %1827 = vmatpush1.msra.mxu0 0.0
    %1828 = vmatprep.subr.mxu0 0.0
    %1829 = vmatpush1.msra.mxu0 0.0
    %1830 = vmatprep.subr.mxu0 0.0
    %1831 = vmatpush1.msra.mxu0 0.0
    %1832 = vmatprep.subr.mxu0 0.0
    %1833 = vmatpush1.msra.mxu0 0.0
    %1834 = vmatprep.subr.mxu0 0.0
    %1835 = vmatpush1.msra.mxu0 0.0
    %1836 = vmatprep.subr.mxu0 0.0
    %1837 = vmatpush1.msra.mxu0 0.0
    %1838 = vmatprep.subr.mxu0 0.0
    %1839 = vmatpush1.msra.mxu0 0.0
    %1840 = vmatprep.subr.mxu0 0.0
    %1841 = vmatpush1.msra.mxu0 0.0
    %1842 = vmatprep.subr.mxu0 0.0
    %1843 = vmatpush1.msra.mxu0 0.0
    %1844 = vmatprep.subr.mxu0 0.0
    %1845 = vmatpush1.msra.mxu0 0.0
    %1846 = vmatprep.subr.mxu0 0.0
    %1847 = vmatpush1.msra.mxu0 0.0
    %1848 = vmatprep.subr.mxu0 0.0
    %1849 = vmatpush1.msra.mxu0 0.0
    %1850 = vmatprep.subr.mxu0 0.0
    %1851 = vmatpush1.msra.mxu0 0.0
    %1852 = vmatprep.subr.mxu0 0.0
    %1853 = vmatpush1.msra.mxu0 0.0
    %1854 = vmatprep.mubr.f32.mxu0 0.0
    %1855 = vmatmul.mubr.f32.gmra.mrb[0].mxu0 %v1788
    %v1856 = vpop.f32.mrb[0].mxu0
    %v1857 = vadd.f32 %v294, %v1856
    %v1858 = vpop.f32.mrb[0].mxu0
    %1859 = vdwg.mxu0
    %1861 = vrot.lane.b32.xlu0 %v1784, 48
    %v1862 = vpop.permute.xlu0 %1861
    %v1863 = vsel %vm296, %v1862, 0
    %1865 = vmatprep.subr.mxu0 0.0
    %1866 = vmatpush1.msra.mxu0 %v282
    %1867 = vmatprep.subr.mxu0 0.0
    %1868 = vmatpush1.msra.mxu0 %v283
    %1869 = vmatprep.subr.mxu0 0.0
    %1870 = vmatpush1.msra.mxu0 0.0
    %1871 = vmatprep.subr.mxu0 0.0
    %1872 = vmatpush1.msra.mxu0 0.0
    %1873 = vmatprep.subr.mxu0 0.0
    %1874 = vmatpush1.msra.mxu0 0.0
    %1875 = vmatprep.subr.mxu0 0.0
    %1876 = vmatpush1.msra.mxu0 0.0
    %1877 = vmatprep.subr.mxu0 0.0
    %1878 = vmatpush1.msra.mxu0 0.0
    %1879 = vmatprep.subr.mxu0 0.0
    %1880 = vmatpush1.msra.mxu0 0.0
    %1881 = vmatprep.subr.mxu0 0.0
    %1882 = vmatpush1.msra.mxu0 0.0
    %1883 = vmatprep.subr.mxu0 0.0
    %1884 = vmatpush1.msra.mxu0 0.0
    %1885 = vmatprep.subr.mxu0 0.0
    %1886 = vmatpush1.msra.mxu0 0.0
    %1887 = vmatprep.subr.mxu0 0.0
    %1888 = vmatpush1.msra.mxu0 0.0
    %1889 = vmatprep.subr.mxu0 0.0
    %1890 = vmatpush1.msra.mxu0 0.0
    %1891 = vmatprep.subr.mxu0 0.0
    %1892 = vmatpush1.msra.mxu0 0.0
    %1893 = vmatprep.subr.mxu0 0.0
    %1894 = vmatpush1.msra.mxu0 0.0
    %1895 = vmatprep.subr.mxu0 0.0
    %1896 = vmatpush1.msra.mxu0 0.0
    %1897 = vmatprep.subr.mxu0 0.0
    %1898 = vmatpush1.msra.mxu0 0.0
    %1899 = vmatprep.subr.mxu0 0.0
    %1900 = vmatpush1.msra.mxu0 0.0
    %1901 = vmatprep.subr.mxu0 0.0
    %1902 = vmatpush1.msra.mxu0 0.0
    %1903 = vmatprep.subr.mxu0 0.0
    %1904 = vmatpush1.msra.mxu0 0.0
    %1905 = vmatprep.subr.mxu0 0.0
    %1906 = vmatpush1.msra.mxu0 0.0
    %1907 = vmatprep.subr.mxu0 0.0
    %1908 = vmatpush1.msra.mxu0 0.0
    %1909 = vmatprep.subr.mxu0 0.0
    %1910 = vmatpush1.msra.mxu0 0.0
    %1911 = vmatprep.subr.mxu0 0.0
    %1912 = vmatpush1.msra.mxu0 0.0
    %1913 = vmatprep.subr.mxu0 0.0
    %1914 = vmatpush1.msra.mxu0 0.0
    %1915 = vmatprep.subr.mxu0 0.0
    %1916 = vmatpush1.msra.mxu0 0.0
    %1917 = vmatprep.subr.mxu0 0.0
    %1918 = vmatpush1.msra.mxu0 0.0
    %1919 = vmatprep.subr.mxu0 0.0
    %1920 = vmatpush1.msra.mxu0 0.0
    %1921 = vmatprep.subr.mxu0 0.0
    %1922 = vmatpush1.msra.mxu0 0.0
    %1923 = vmatprep.subr.mxu0 0.0
    %1924 = vmatpush1.msra.mxu0 0.0
    %1925 = vmatprep.subr.mxu0 0.0
    %1926 = vmatpush1.msra.mxu0 0.0
    %1927 = vmatprep.subr.mxu0 0.0
    %1928 = vmatpush1.msra.mxu0 0.0
    %1929 = vmatprep.mubr.f32.mxu0 0.0
    %1930 = vmatmul.mubr.f32.gmra.mrb[0].mxu0 %v1863
    %v1931 = vpop.f32.mrb[0].mxu0
    %v1932 = vadd.f32 %v374, %v1931
    %v1933 = vpop.f32.mrb[0].mxu0
    %1934 = vdwg.mxu0
    %v1935 = vadd.f32 %v289, %v1857
    %v1936 = vxor.u32 %v1935, 2147483648
    %v1937 = vmul.f32 %v1936, 1.442695
    %v1938 = vpow.pop %v1937
    %v1939 = vadd.f32 %v1938, 1.0
    %v1940 = vrcp.pop %v1939
    %v1941 = vmul.f32 1.0, %v1940
    %1943 = vrot.lane.b32.xlu0 %v1857, 96
    %v1944 = vpop.permute.xlu0 %1943
    %v1946 = vmul.f32 %v1941, %v1944
    %1948 = vrot.lane.b32.xlu0 %v1946, 32
    %v1949 = vpop.permute.xlu0 %1948
    %v1951 = vadd.f32 %v289, %v1949
    %v1952 = vtanh.pop %v1951
    %v1953 = vsub.f32 %v1752, %v1952
    %1955 = vrot.lane.b32.xlu0 %v1953, 112
    %v1956 = vpop.permute.xlu0 %1955
    %v1958 = vmul.f32 %v1941, %v1956
    %1960 = vrot.lane.b32.xlu0 %v1958, 16
    %v1961 = vpop.permute.xlu0 %1960
    %v1963 = vadd.f32 %v1952, %v1961
    %1965 = vrot.lane.b32.xlu0 %v1932, 48
    %v1966 = vpop.permute.xlu0 %1965
    %v1968 = vadd.f32 %v287, %v1966
    %v1969 = vxor.u32 %v1968, 2147483648
    %v1970 = vmul.f32 %v1969, 1.442695
    %v1971 = vpow.pop %v1970
    %v1972 = vadd.f32 %v1971, 1.0
    %v1973 = vrcp.pop %v1972
    %v1974 = vmul.f32 1.0, %v1973
    %1975 = vrot.lane.b32.xlu0 %v1932, 16
    %v1976 = vpop.permute.xlu0 %1975
    %v1978 = vmul.f32 %v1974, %v1976
    %1980 = vrot.lane.b32.xlu0 %v1978, 32
    %v1981 = vpop.permute.xlu0 %1980
    %v1983 = vadd.f32 %v287, %v1981
    %v1984 = vtanh.pop %v1983
    %v1985 = vsub.f32 %v1784, %v1984
    %1987 = vrot.lane.b32.xlu0 %v1985, 112
    %v1988 = vpop.permute.xlu0 %1987
    %v1990 = vmul.f32 %v1974, %v1988
    %1992 = vrot.lane.b32.xlu0 %v1990, 16
    %v1993 = vpop.permute.xlu0 %1992
    %v1995 = vadd.f32 %v1984, %v1993
    %1997 = vrot.lane.b32.xlu0 %v1963, 96
    %v1998 = vpop.permute.xlu0 %1997
    %vm2007 = vcmask 123904
    %2008 = vst.msk [vmem:[#allocation11] sm:$0x3] %vm2007, %v513
    %2009 = vst.msk [vmem:[#allocation11 + $0x2] sm:$0x3] %vm2007, %v728
    %2010 = vst.msk [vmem:[#allocation11 + $0x4] sm:$0x3] %vm2007, %v943
    %2011 = vst.msk [vmem:[#allocation11 + $0x6] sm:$0x3] %vm2007, %v1154
    %2012 = vst.msk [vmem:[#allocation11 + $0x8] sm:$0x3] %vm2007, %v1365
    %2013 = vst.msk [vmem:[#allocation11 + $0xa] sm:$0x3] %vm2007, %v1576
    %2014 = vst.msk [vmem:[#allocation11 + $0xc] sm:$0x3] %vm2007, %v1787
    %2015 = vst.msk [vmem:[#allocation11 + $0xe] sm:$0x3] %vm2007, %v1998
    %2017 = vrot.lane.b32.xlu0 %v1995, 48
    %v2018 = vpop.permute.xlu0 %2017
    %s2027 = scalar_lea.vmem [#allocation11], 16
    %2028 = vst.msk [vmem:[%s2027] sm:$0x3] %vm2007, %v2018
    %2029 = vst.msk [vmem:[%s2027 + $0x2] sm:$0x3] %vm2007, %v1862
    %2030 = vst.msk [vmem:[%s2027 + $0x4] sm:$0x3] %vm2007, %v1651
    %2031 = vst.msk [vmem:[%s2027 + $0x6] sm:$0x3] %vm2007, %v1440
    %2032 = vst.msk [vmem:[%s2027 + $0x8] sm:$0x3] %vm2007, %v1229
    %2033 = vst.msk [vmem:[%s2027 + $0xa] sm:$0x3] %vm2007, %v1018
    %2034 = vst.msk [vmem:[%s2027 + $0xc] sm:$0x3] %vm2007, %v803
    %2035 = vst.msk [vmem:[%s2027 + $0xe] sm:$0x3] %vm2007, %v588
    %v2036 = vld [vmem:[#allocation11] sm:$0x3]
    %v2037 = vld [vmem:[#allocation11 + $0x2] sm:$0x3]
    %v2038 = vld [vmem:[#allocation11 + $0x4] sm:$0x3]
    %v2039 = vld [vmem:[#allocation11 + $0x6] sm:$0x3]
    %v2040 = vld [vmem:[#allocation11 + $0x8] sm:$0x3]
    %v2041 = vld [vmem:[#allocation11 + $0xa] sm:$0x3]
    %v2042 = vld [vmem:[#allocation11 + $0xc] sm:$0x3]
    %v2043 = vld [vmem:[#allocation11 + $0xe] sm:$0x3]
    %v2044 = vld [vmem:[%s2027] sm:$0x3]
    %v2045 = vld [vmem:[%s2027 + $0x2] sm:$0x3]
    %v2046 = vld [vmem:[%s2027 + $0x4] sm:$0x3]
    %v2047 = vld [vmem:[%s2027 + $0x6] sm:$0x3]
    %v2048 = vld [vmem:[%s2027 + $0x8] sm:$0x3]
    %v2049 = vld [vmem:[%s2027 + $0xa] sm:$0x3]
    %v2050 = vld [vmem:[%s2027 + $0xc] sm:$0x3]
    %v2051 = vld [vmem:[%s2027 + $0xe] sm:$0x3]
    %s2052 = scalar_lea.vmem [#allocation6], 32
    %v2053 = vld [vmem:[%s2052] sm:$0xff]
    %v2054 = vld [vmem:[%s2052 + $0x8] sm:$0xff]
    %v2055 = vld [vmem:[%s2052 + $0x10] sm:$0xff]
    %v2056 = vld [vmem:[%s2052 + $0x18] sm:$0xff]
    %v2065 = vcombine.low %v2044, %v2045
    %v2066 = vcombine.low %v2046, %v2047
    %v2068 = vunpack.c.l.s4 1983009808
    %v2069 = vunpack.c.0.s8 %v2068
    %v2070 = vlaneseq
    %v2071 = vshrl.u32 %v2070, 7
    %v2072 = vsub.s32 %v2069, %v2071
    %v2073 = vrot.slane %v2065, %v2072
    %v2075 = vunpack.c.l.s4 1983009808
    %v2076 = vunpack.c.0.s8 %v2075
    %v2077 = vlaneseq
    %v2078 = vshrl.u32 %v2077, 7
    %v2079 = vsub.s32 %v2076, %v2078
    %v2080 = vrot.slane %v2066, %v2079
    %v2081 = vcombine.low %v2073, %v2080
    %v2082 = vcombine.low %v2048, %v2049
    %v2083 = vcombine.low %v2050, %v2051
    %v2085 = vunpack.c.l.s4 1983009808
    %v2086 = vunpack.c.0.s8 %v2085
    %v2087 = vlaneseq
    %v2088 = vshrl.u32 %v2087, 7
    %v2089 = vsub.s32 %v2086, %v2088
    %v2090 = vrot.slane %v2082, %v2089
    %v2092 = vunpack.c.l.s4 1983009808
    %v2093 = vunpack.c.0.s8 %v2092
    %v2094 = vlaneseq
    %v2095 = vshrl.u32 %v2094, 7
    %v2096 = vsub.s32 %v2093, %v2095
    %v2097 = vrot.slane %v2083, %v2096
    %v2098 = vcombine.low %v2090, %v2097
    %v2099 = vsel %vm296, %v2081, 0
    %v2101 = vsel %vm296, %v2098, 0
    %2103 = vmatprep.subr.mxu0 0.0
    %2104 = vmatpush1.msra.mxu0 %v2055
    %2105 = vmatprep.subr.mxu0 0.0
    %2106 = vmatpush1.msra.mxu0 %v2056
    %2107 = vmatprep.subr.mxu0 0.0
    %2108 = vmatpush1.msra.mxu0 0.0
    %2109 = vmatprep.subr.mxu0 0.0
    %2110 = vmatpush1.msra.mxu0 0.0
    %2111 = vmatprep.subr.mxu0 0.0
    %2112 = vmatpush1.msra.mxu0 0.0
    %2113 = vmatprep.subr.mxu0 0.0
    %2114 = vmatpush1.msra.mxu0 0.0
    %2115 = vmatprep.subr.mxu0 0.0
    %2116 = vmatpush1.msra.mxu0 0.0
    %2117 = vmatprep.subr.mxu0 0.0
    %2118 = vmatpush1.msra.mxu0 0.0
    %2119 = vmatprep.subr.mxu0 0.0
    %2120 = vmatpush1.msra.mxu0 0.0
    %2121 = vmatprep.subr.mxu0 0.0
    %2122 = vmatpush1.msra.mxu0 0.0
    %2123 = vmatprep.subr.mxu0 0.0
    %2124 = vmatpush1.msra.mxu0 0.0
    %2125 = vmatprep.subr.mxu0 0.0
    %2126 = vmatpush1.msra.mxu0 0.0
    %2127 = vmatprep.subr.mxu0 0.0
    %2128 = vmatpush1.msra.mxu0 0.0
    %2129 = vmatprep.subr.mxu0 0.0
    %2130 = vmatpush1.msra.mxu0 0.0
    %2131 = vmatprep.subr.mxu0 0.0
    %2132 = vmatpush1.msra.mxu0 0.0
    %2133 = vmatprep.subr.mxu0 0.0
    %2134 = vmatpush1.msra.mxu0 0.0
    %2135 = vmatprep.subr.mxu0 0.0
    %2136 = vmatpush1.msra.mxu0 0.0
    %2137 = vmatprep.subr.mxu0 0.0
    %2138 = vmatpush1.msra.mxu0 0.0
    %2139 = vmatprep.subr.mxu0 0.0
    %2140 = vmatpush1.msra.mxu0 0.0
    %2141 = vmatprep.subr.mxu0 0.0
    %2142 = vmatpush1.msra.mxu0 0.0
    %2143 = vmatprep.subr.mxu0 0.0
    %2144 = vmatpush1.msra.mxu0 0.0
    %2145 = vmatprep.subr.mxu0 0.0
    %2146 = vmatpush1.msra.mxu0 0.0
    %2147 = vmatprep.subr.mxu0 0.0
    %2148 = vmatpush1.msra.mxu0 0.0
    %2149 = vmatprep.subr.mxu0 0.0
    %2150 = vmatpush1.msra.mxu0 0.0
    %2151 = vmatprep.subr.mxu0 0.0
    %2152 = vmatpush1.msra.mxu0 0.0
    %2153 = vmatprep.subr.mxu0 0.0
    %2154 = vmatpush1.msra.mxu0 0.0
    %2155 = vmatprep.subr.mxu0 0.0
    %2156 = vmatpush1.msra.mxu0 0.0
    %2157 = vmatprep.subr.mxu0 0.0
    %2158 = vmatpush1.msra.mxu0 0.0
    %2159 = vmatprep.subr.mxu0 0.0
    %2160 = vmatpush1.msra.mxu0 0.0
    %2161 = vmatprep.subr.mxu0 0.0
    %2162 = vmatpush1.msra.mxu0 0.0
    %2163 = vmatprep.subr.mxu0 0.0
    %2164 = vmatpush1.msra.mxu0 0.0
    %2165 = vmatprep.subr.mxu0 0.0
    %2166 = vmatpush1.msra.mxu0 0.0
    %2167 = vmatprep.mubr.f32.mxu0 0.0
    %2168 = vmatmul.mubr.f32.gmra.mrb[0].mxu0 %v2099
    %v2169 = vpop.f32.mrb[0].mxu0
    %v2170 = vadd.f32 0.0, %v2169
    %v2171 = vpop.f32.mrb[0].mxu0
    %2172 = vmatprep.mubr.f32.mxu0 0.0
    %2173 = vmatmul.mubr.f32.gmra.mrb[0].mxu0 %v2101
    %v2174 = vpop.f32.mrb[0].mxu0
    %v2175 = vadd.f32 0.0, %v2174
    %v2176 = vpop.f32.mrb[0].mxu0
    %2177 = vdwg.mxu0
    %v2186 = vcombine.low %v2036, %v2037
    %v2187 = vcombine.low %v2038, %v2039
    %v2189 = vunpack.c.l.s4 1983009808
    %v2190 = vunpack.c.0.s8 %v2189
    %v2191 = vlaneseq
    %v2192 = vshrl.u32 %v2191, 7
    %v2193 = vsub.s32 %v2190, %v2192
    %v2194 = vrot.slane %v2186, %v2193
    %v2196 = vunpack.c.l.s4 1983009808
    %v2197 = vunpack.c.0.s8 %v2196
    %v2198 = vlaneseq
    %v2199 = vshrl.u32 %v2198, 7
    %v2200 = vsub.s32 %v2197, %v2199
    %v2201 = vrot.slane %v2187, %v2200
    %v2202 = vcombine.low %v2194, %v2201
    %v2203 = vcombine.low %v2040, %v2041
    %v2204 = vcombine.low %v2042, %v2043
    %v2206 = vunpack.c.l.s4 1983009808
    %v2207 = vunpack.c.0.s8 %v2206
    %v2208 = vlaneseq
    %v2209 = vshrl.u32 %v2208, 7
    %v2210 = vsub.s32 %v2207, %v2209
    %v2211 = vrot.slane %v2203, %v2210
    %v2213 = vunpack.c.l.s4 1983009808
    %v2214 = vunpack.c.0.s8 %v2213
    %v2215 = vlaneseq
    %v2216 = vshrl.u32 %v2215, 7
    %v2217 = vsub.s32 %v2214, %v2216
    %v2218 = vrot.slane %v2204, %v2217
    %v2219 = vcombine.low %v2211, %v2218
    %v2220 = vsel %vm296, %v2202, 0
    %v2222 = vsel %vm296, %v2219, 0
    %2224 = vmatprep.subr.mxu0 0.0
    %2225 = vmatpush1.msra.mxu0 %v2053
    %2226 = vmatprep.subr.mxu0 0.0
    %2227 = vmatpush1.msra.mxu0 %v2054
    %2228 = vmatprep.subr.mxu0 0.0
    %2229 = vmatpush1.msra.mxu0 0.0
    %2230 = vmatprep.subr.mxu0 0.0
    %2231 = vmatpush1.msra.mxu0 0.0
    %2232 = vmatprep.subr.mxu0 0.0
    %2233 = vmatpush1.msra.mxu0 0.0
    %2234 = vmatprep.subr.mxu0 0.0
    %2235 = vmatpush1.msra.mxu0 0.0
    %2236 = vmatprep.subr.mxu0 0.0
    %2237 = vmatpush1.msra.mxu0 0.0
    %2238 = vmatprep.subr.mxu0 0.0
    %2239 = vmatpush1.msra.mxu0 0.0
    %2240 = vmatprep.subr.mxu0 0.0
    %2241 = vmatpush1.msra.mxu0 0.0
    %2242 = vmatprep.subr.mxu0 0.0
    %2243 = vmatpush1.msra.mxu0 0.0
    %2244 = vmatprep.subr.mxu0 0.0
    %2245 = vmatpush1.msra.mxu0 0.0
    %2246 = vmatprep.subr.mxu0 0.0
    %2247 = vmatpush1.msra.mxu0 0.0
    %2248 = vmatprep.subr.mxu0 0.0
    %2249 = vmatpush1.msra.mxu0 0.0
    %2250 = vmatprep.subr.mxu0 0.0
    %2251 = vmatpush1.msra.mxu0 0.0
    %2252 = vmatprep.subr.mxu0 0.0
    %2253 = vmatpush1.msra.mxu0 0.0
    %2254 = vmatprep.subr.mxu0 0.0
    %2255 = vmatpush1.msra.mxu0 0.0
    %2256 = vmatprep.subr.mxu0 0.0
    %2257 = vmatpush1.msra.mxu0 0.0
    %2258 = vmatprep.subr.mxu0 0.0
    %2259 = vmatpush1.msra.mxu0 0.0
    %2260 = vmatprep.subr.mxu0 0.0
    %2261 = vmatpush1.msra.mxu0 0.0
    %2262 = vmatprep.subr.mxu0 0.0
    %2263 = vmatpush1.msra.mxu0 0.0
    %2264 = vmatprep.subr.mxu0 0.0
    %2265 = vmatpush1.msra.mxu0 0.0
    %2266 = vmatprep.subr.mxu0 0.0
    %2267 = vmatpush1.msra.mxu0 0.0
    %2268 = vmatprep.subr.mxu0 0.0
    %2269 = vmatpush1.msra.mxu0 0.0
    %2270 = vmatprep.subr.mxu0 0.0
    %2271 = vmatpush1.msra.mxu0 0.0
    %2272 = vmatprep.subr.mxu0 0.0
    %2273 = vmatpush1.msra.mxu0 0.0
    %2274 = vmatprep.subr.mxu0 0.0
    %2275 = vmatpush1.msra.mxu0 0.0
    %2276 = vmatprep.subr.mxu0 0.0
    %2277 = vmatpush1.msra.mxu0 0.0
    %2278 = vmatprep.subr.mxu0 0.0
    %2279 = vmatpush1.msra.mxu0 0.0
    %2280 = vmatprep.subr.mxu0 0.0
    %2281 = vmatpush1.msra.mxu0 0.0
    %2282 = vmatprep.subr.mxu0 0.0
    %2283 = vmatpush1.msra.mxu0 0.0
    %2284 = vmatprep.subr.mxu0 0.0
    %2285 = vmatpush1.msra.mxu0 0.0
    %2286 = vmatprep.subr.mxu0 0.0
    %2287 = vmatpush1.msra.mxu0 0.0
    %2288 = vmatprep.mubr.f32.mxu0 0.0
    %2289 = vmatmul.mubr.f32.gmra.mrb[0].mxu0 %v2220
    %v2290 = vpop.f32.mrb[0].mxu0
    %v2291 = vadd.f32 %v2170, %v2290
    %v2292 = vpop.f32.mrb[0].mxu0
    %2293 = vmatprep.mubr.f32.mxu0 0.0
    %2294 = vmatmul.mubr.f32.gmra.mrb[0].mxu0 %v2222
    %v2295 = vpop.f32.mrb[0].mxu0
    %v2296 = vadd.f32 %v2175, %v2295
    %v2297 = vpop.f32.mrb[0].mxu0
    %2298 = vdwg.mxu0
    %s2299 = scalar_lea.vmem %s2, 1
    %v2300 = vld [vmem:[%s2299] sm:$0x1]
    %v2302 = vlaneseq
    %v2303 = vshrl.u32 %v2302, 7
    %v2304 = vsub.s32 0, %v2303
    %v2305 = vrot.slane %v2300, %v2304
    %v2307 = vadd.f32 %v2291, %v2305
    %v2308 = vadd.f32 %v2296, %v2305
    %v2311 = vcombine.high %v2307, %v2307
    %v2313 = vunpack.c.l.s4 1983009808
    %v2314 = vunpack.c.0.s8 %v2313
    %v2315 = vlaneseq
    %v2316 = vshrl.u32 %v2315, 7
    %v2317 = vsub.s32 %v2314, %v2316
    %v2318 = vrot.slane %v2307, %v2317
    %v2320 = vunpack.c.l.s4 1983009808
    %v2321 = vunpack.c.0.s8 %v2320
    %v2322 = vlaneseq
    %v2323 = vshrl.u32 %v2322, 7
    %v2324 = vsub.s32 %v2321, %v2323
    %v2325 = vrot.slane %v2311, %v2324
    %v2326 = vcombine.high %v2318, %v2318
    %v2327 = vcombine.high %v2325, %v2325
    %v2328 = vcombine.high %v2308, %v2308
    %v2330 = vunpack.c.l.s4 1983009808
    %v2331 = vunpack.c.0.s8 %v2330
    %v2332 = vlaneseq
    %v2333 = vshrl.u32 %v2332, 7
    %v2334 = vsub.s32 %v2331, %v2333
    %v2335 = vrot.slane %v2308, %v2334
    %v2337 = vunpack.c.l.s4 1983009808
    %v2338 = vunpack.c.0.s8 %v2337
    %v2339 = vlaneseq
    %v2340 = vshrl.u32 %v2339, 7
    %v2341 = vsub.s32 %v2338, %v2340
    %v2342 = vrot.slane %v2328, %v2341
    %v2343 = vcombine.high %v2335, %v2335
    %v2344 = vcombine.high %v2342, %v2342
    %2353 = vst.msk [vmem:[#allocation2] sm:$0x3] %vm270, %v2318
    %2354 = vst.msk [vmem:[#allocation2 + $0x2] sm:$0x3] %vm270, %v2326
    %2355 = vst.msk [vmem:[#allocation2 + $0x4] sm:$0x3] %vm270, %v2325
    %2356 = vst.msk [vmem:[#allocation2 + $0x6] sm:$0x3] %vm270, %v2327
    %2357 = vst.msk [vmem:[#allocation2 + $0x8] sm:$0x3] %vm270, %v2335
    %2358 = vst.msk [vmem:[#allocation2 + $0xa] sm:$0x3] %vm270, %v2343
    %2359 = vst.msk [vmem:[#allocation2 + $0xc] sm:$0x3] %vm270, %v2342
    %2360 = vst.msk [vmem:[#allocation2 + $0xe] sm:$0x3] %vm270, %v2344
    %s2361 = scalar_lea.vmem [#allocation8], 32
    %v2362 = vld [vmem:[%s2361] sm:$0xff]
    %v2363 = vld [vmem:[%s2361 + $0x8] sm:$0xff]
    %s2364 = scalar_lea.vmem [#allocation8], 48
    %v2365 = vld [vmem:[%s2364] sm:$0xff]
    %v2366 = vld [vmem:[%s2364 + $0x8] sm:$0xff]
    %s2367 = scalar_lea.vmem %s4, 2
    %v2368 = vld [vmem:[%s2367] sm:$0x1]
    %s2369 = scalar_lea.vmem %s4, 3
    %v2370 = vld [vmem:[%s2369] sm:$0x1]
    %v2371 = vld [vmem:[#allocation2] sm:$0x3]
    %v2372 = vld [vmem:[%s288] sm:$0x3]
    %v2374 = vlaneseq
    %v2375 = vshrl.u32 %v2374, 7
    %v2376 = vsub.s32 0, %v2375
    %v2377 = vrot.slane %v2368, %v2376
    %2379 = vmatprep.subr.mxu0 0.0
    %2380 = vmatpush1.msra.mxu0 %v2362
    %2381 = vmatprep.subr.mxu0 0.0
    %2382 = vmatpush1.msra.mxu0 %v2363
    %2383 = vmatprep.subr.mxu0 0.0
    %2384 = vmatpush1.msra.mxu0 0.0
    %2385 = vmatprep.subr.mxu0 0.0
    %2386 = vmatpush1.msra.mxu0 0.0
    %2387 = vmatprep.subr.mxu0 0.0
    %2388 = vmatpush1.msra.mxu0 0.0
    %2389 = vmatprep.subr.mxu0 0.0
    %2390 = vmatpush1.msra.mxu0 0.0
    %2391 = vmatprep.subr.mxu0 0.0
    %2392 = vmatpush1.msra.mxu0 0.0
    %2393 = vmatprep.subr.mxu0 0.0
    %2394 = vmatpush1.msra.mxu0 0.0
    %2395 = vmatprep.subr.mxu0 0.0
    %2396 = vmatpush1.msra.mxu0 0.0
    %2397 = vmatprep.subr.mxu0 0.0
    %2398 = vmatpush1.msra.mxu0 0.0
    %2399 = vmatprep.subr.mxu0 0.0
    %2400 = vmatpush1.msra.mxu0 0.0
    %2401 = vmatprep.subr.mxu0 0.0
    %2402 = vmatpush1.msra.mxu0 0.0
    %2403 = vmatprep.subr.mxu0 0.0
    %2404 = vmatpush1.msra.mxu0 0.0
    %2405 = vmatprep.subr.mxu0 0.0
    %2406 = vmatpush1.msra.mxu0 0.0
    %2407 = vmatprep.subr.mxu0 0.0
    %2408 = vmatpush1.msra.mxu0 0.0
    %2409 = vmatprep.subr.mxu0 0.0
    %2410 = vmatpush1.msra.mxu0 0.0
    %2411 = vmatprep.subr.mxu0 0.0
    %2412 = vmatpush1.msra.mxu0 0.0
    %2413 = vmatprep.subr.mxu0 0.0
    %2414 = vmatpush1.msra.mxu0 0.0
    %2415 = vmatprep.subr.mxu0 0.0
    %2416 = vmatpush1.msra.mxu0 0.0
    %2417 = vmatprep.subr.mxu0 0.0
    %2418 = vmatpush1.msra.mxu0 0.0
    %2419 = vmatprep.subr.mxu0 0.0
    %2420 = vmatpush1.msra.mxu0 0.0
    %2421 = vmatprep.subr.mxu0 0.0
    %2422 = vmatpush1.msra.mxu0 0.0
    %2423 = vmatprep.subr.mxu0 0.0
    %2424 = vmatpush1.msra.mxu0 0.0
    %2425 = vmatprep.subr.mxu0 0.0
    %2426 = vmatpush1.msra.mxu0 0.0
    %2427 = vmatprep.subr.mxu0 0.0
    %2428 = vmatpush1.msra.mxu0 0.0
    %2429 = vmatprep.subr.mxu0 0.0
    %2430 = vmatpush1.msra.mxu0 0.0
    %2431 = vmatprep.subr.mxu0 0.0
    %2432 = vmatpush1.msra.mxu0 0.0
    %2433 = vmatprep.subr.mxu0 0.0
    %2434 = vmatpush1.msra.mxu0 0.0
    %2435 = vmatprep.subr.mxu0 0.0
    %2436 = vmatpush1.msra.mxu0 0.0
    %2437 = vmatprep.subr.mxu0 0.0
    %2438 = vmatpush1.msra.mxu0 0.0
    %2439 = vmatprep.subr.mxu0 0.0
    %2440 = vmatpush1.msra.mxu0 0.0
    %2441 = vmatprep.subr.mxu0 0.0
    %2442 = vmatpush1.msra.mxu0 0.0
    %2443 = vmatprep.mubr.f32.mxu0 0.0
    %2444 = vmatmul.mubr.f32.gmra.mrb[0].mxu0 %v298
    %v2445 = vpop.f32.mrb[0].mxu0
    %v2446 = vadd.f32 %v2377, %v2445
    %v2447 = vpop.f32.mrb[0].mxu0
    %2448 = vdwg.mxu0
    %v2450 = vlaneseq
    %v2451 = vshrl.u32 %v2450, 7
    %v2452 = vsub.s32 0, %v2451
    %v2453 = vrot.slane %v2370, %v2452
    %2455 = vmatprep.subr.mxu0 0.0
    %2456 = vmatpush1.msra.mxu0 %v2365
    %2457 = vmatprep.subr.mxu0 0.0
    %2458 = vmatpush1.msra.mxu0 %v2366
    %2459 = vmatprep.subr.mxu0 0.0
    %2460 = vmatpush1.msra.mxu0 0.0
    %2461 = vmatprep.subr.mxu0 0.0
    %2462 = vmatpush1.msra.mxu0 0.0
    %2463 = vmatprep.subr.mxu0 0.0
    %2464 = vmatpush1.msra.mxu0 0.0
    %2465 = vmatprep.subr.mxu0 0.0
    %2466 = vmatpush1.msra.mxu0 0.0
    %2467 = vmatprep.subr.mxu0 0.0
    %2468 = vmatpush1.msra.mxu0 0.0
    %2469 = vmatprep.subr.mxu0 0.0
    %2470 = vmatpush1.msra.mxu0 0.0
    %2471 = vmatprep.subr.mxu0 0.0
    %2472 = vmatpush1.msra.mxu0 0.0
    %2473 = vmatprep.subr.mxu0 0.0
    %2474 = vmatpush1.msra.mxu0 0.0
    %2475 = vmatprep.subr.mxu0 0.0
    %2476 = vmatpush1.msra.mxu0 0.0
    %2477 = vmatprep.subr.mxu0 0.0
    %2478 = vmatpush1.msra.mxu0 0.0
    %2479 = vmatprep.subr.mxu0 0.0
    %2480 = vmatpush1.msra.mxu0 0.0
    %2481 = vmatprep.subr.mxu0 0.0
    %2482 = vmatpush1.msra.mxu0 0.0
    %2483 = vmatprep.subr.mxu0 0.0
    %2484 = vmatpush1.msra.mxu0 0.0
    %2485 = vmatprep.subr.mxu0 0.0
    %2486 = vmatpush1.msra.mxu0 0.0
    %2487 = vmatprep.subr.mxu0 0.0
    %2488 = vmatpush1.msra.mxu0 0.0
    %2489 = vmatprep.subr.mxu0 0.0
    %2490 = vmatpush1.msra.mxu0 0.0
    %2491 = vmatprep.subr.mxu0 0.0
    %2492 = vmatpush1.msra.mxu0 0.0
    %2493 = vmatprep.subr.mxu0 0.0
    %2494 = vmatpush1.msra.mxu0 0.0
    %2495 = vmatprep.subr.mxu0 0.0
    %2496 = vmatpush1.msra.mxu0 0.0
    %2497 = vmatprep.subr.mxu0 0.0
    %2498 = vmatpush1.msra.mxu0 0.0
    %2499 = vmatprep.subr.mxu0 0.0
    %2500 = vmatpush1.msra.mxu0 0.0
    %2501 = vmatprep.subr.mxu0 0.0
    %2502 = vmatpush1.msra.mxu0 0.0
    %2503 = vmatprep.subr.mxu0 0.0
    %2504 = vmatpush1.msra.mxu0 0.0
    %2505 = vmatprep.subr.mxu0 0.0
    %2506 = vmatpush1.msra.mxu0 0.0
    %2507 = vmatprep.subr.mxu0 0.0
    %2508 = vmatpush1.msra.mxu0 0.0
    %2509 = vmatprep.subr.mxu0 0.0
    %2510 = vmatpush1.msra.mxu0 0.0
    %2511 = vmatprep.subr.mxu0 0.0
    %2512 = vmatpush1.msra.mxu0 0.0
    %2513 = vmatprep.subr.mxu0 0.0
    %2514 = vmatpush1.msra.mxu0 0.0
    %2515 = vmatprep.subr.mxu0 0.0
    %2516 = vmatpush1.msra.mxu0 0.0
    %2517 = vmatprep.subr.mxu0 0.0
    %2518 = vmatpush1.msra.mxu0 0.0
    %2519 = vmatprep.mubr.f32.mxu0 0.0
    %2520 = vmatmul.mubr.f32.gmra.mrb[0].mxu0 %v298
    %v2521 = vpop.f32.mrb[0].mxu0
    %v2522 = vadd.f32 %v2453, %v2521
    %v2523 = vpop.f32.mrb[0].mxu0
    %2524 = vdwg.mxu0
    %v2525 = vadd.f32 %v2371, %v2446
    %v2526 = vxor.u32 %v2525, 2147483648
    %v2527 = vmul.f32 %v2526, 1.442695
    %v2528 = vpow.pop %v2527
    %v2529 = vadd.f32 %v2528, 1.0
    %v2530 = vrcp.pop %v2529
    %v2531 = vmul.f32 1.0, %v2530
    %2533 = vrot.lane.b32.xlu0 %v2446, 96
    %v2534 = vpop.permute.xlu0 %2533
    %v2536 = vmul.f32 %v2531, %v2534
    %2538 = vrot.lane.b32.xlu0 %v2536, 32
    %v2539 = vpop.permute.xlu0 %2538
    %v2541 = vadd.f32 %v2371, %v2539
    %v2542 = vtanh.pop %v2541
    %v2543 = vsub.f32 0.0, %v2542
    %2545 = vrot.lane.b32.xlu0 %v2543, 112
    %v2546 = vpop.permute.xlu0 %2545
    %v2548 = vmul.f32 %v2531, %v2546
    %2550 = vrot.lane.b32.xlu0 %v2548, 16
    %v2551 = vpop.permute.xlu0 %2550
    %v2553 = vadd.f32 %v2542, %v2551
    %2555 = vrot.lane.b32.xlu0 %v2522, 48
    %v2556 = vpop.permute.xlu0 %2555
    %v2558 = vadd.f32 %v2372, %v2556
    %v2559 = vxor.u32 %v2558, 2147483648
    %v2560 = vmul.f32 %v2559, 1.442695
    %v2561 = vpow.pop %v2560
    %v2562 = vadd.f32 %v2561, 1.0
    %v2563 = vrcp.pop %v2562
    %v2564 = vmul.f32 1.0, %v2563
    %2565 = vrot.lane.b32.xlu0 %v2522, 16
    %v2566 = vpop.permute.xlu0 %2565
    %v2568 = vmul.f32 %v2564, %v2566
    %2570 = vrot.lane.b32.xlu0 %v2568, 32
    %v2571 = vpop.permute.xlu0 %2570
    %v2573 = vadd.f32 %v2372, %v2571
    %v2574 = vtanh.pop %v2573
    %v2575 = vsub.f32 0.0, %v2574
    %2577 = vrot.lane.b32.xlu0 %v2575, 112
    %v2578 = vpop.permute.xlu0 %2577
    %v2580 = vmul.f32 %v2564, %v2578
    %2582 = vrot.lane.b32.xlu0 %v2580, 16
    %v2583 = vpop.permute.xlu0 %2582
    %v2585 = vadd.f32 %v2574, %v2583
    %v2586 = vld [vmem:[%s507] sm:$0x3]
    %v2587 = vld [vmem:[%s509] sm:$0x3]
    %2589 = vrot.lane.b32.xlu0 %v2553, 96
    %v2590 = vpop.permute.xlu0 %2589
    %v2591 = vsel %vm296, %v2590, 0
    %2593 = vmatprep.subr.mxu0 0.0
    %2594 = vmatpush1.msra.mxu0 %v2362
    %2595 = vmatprep.subr.mxu0 0.0
    %2596 = vmatpush1.msra.mxu0 %v2363
    %2597 = vmatprep.subr.mxu0 0.0
    %2598 = vmatpush1.msra.mxu0 0.0
    %2599 = vmatprep.subr.mxu0 0.0
    %2600 = vmatpush1.msra.mxu0 0.0
    %2601 = vmatprep.subr.mxu0 0.0
    %2602 = vmatpush1.msra.mxu0 0.0
    %2603 = vmatprep.subr.mxu0 0.0
    %2604 = vmatpush1.msra.mxu0 0.0
    %2605 = vmatprep.subr.mxu0 0.0
    %2606 = vmatpush1.msra.mxu0 0.0
    %2607 = vmatprep.subr.mxu0 0.0
    %2608 = vmatpush1.msra.mxu0 0.0
    %2609 = vmatprep.subr.mxu0 0.0
    %2610 = vmatpush1.msra.mxu0 0.0
    %2611 = vmatprep.subr.mxu0 0.0
    %2612 = vmatpush1.msra.mxu0 0.0
    %2613 = vmatprep.subr.mxu0 0.0
    %2614 = vmatpush1.msra.mxu0 0.0
    %2615 = vmatprep.subr.mxu0 0.0
    %2616 = vmatpush1.msra.mxu0 0.0
    %2617 = vmatprep.subr.mxu0 0.0
    %2618 = vmatpush1.msra.mxu0 0.0
    %2619 = vmatprep.subr.mxu0 0.0
    %2620 = vmatpush1.msra.mxu0 0.0
    %2621 = vmatprep.subr.mxu0 0.0
    %2622 = vmatpush1.msra.mxu0 0.0
    %2623 = vmatprep.subr.mxu0 0.0
    %2624 = vmatpush1.msra.mxu0 0.0
    %2625 = vmatprep.subr.mxu0 0.0
    %2626 = vmatpush1.msra.mxu0 0.0
    %2627 = vmatprep.subr.mxu0 0.0
    %2628 = vmatpush1.msra.mxu0 0.0
    %2629 = vmatprep.subr.mxu0 0.0
    %2630 = vmatpush1.msra.mxu0 0.0
    %2631 = vmatprep.subr.mxu0 0.0
    %2632 = vmatpush1.msra.mxu0 0.0
    %2633 = vmatprep.subr.mxu0 0.0
    %2634 = vmatpush1.msra.mxu0 0.0
    %2635 = vmatprep.subr.mxu0 0.0
    %2636 = vmatpush1.msra.mxu0 0.0
    %2637 = vmatprep.subr.mxu0 0.0
    %2638 = vmatpush1.msra.mxu0 0.0
    %2639 = vmatprep.subr.mxu0 0.0
    %2640 = vmatpush1.msra.mxu0 0.0
    %2641 = vmatprep.subr.mxu0 0.0
    %2642 = vmatpush1.msra.mxu0 0.0
    %2643 = vmatprep.subr.mxu0 0.0
    %2644 = vmatpush1.msra.mxu0 0.0
    %2645 = vmatprep.subr.mxu0 0.0
    %2646 = vmatpush1.msra.mxu0 0.0
    %2647 = vmatprep.subr.mxu0 0.0
    %2648 = vmatpush1.msra.mxu0 0.0
    %2649 = vmatprep.subr.mxu0 0.0
    %2650 = vmatpush1.msra.mxu0 0.0
    %2651 = vmatprep.subr.mxu0 0.0
    %2652 = vmatpush1.msra.mxu0 0.0
    %2653 = vmatprep.subr.mxu0 0.0
    %2654 = vmatpush1.msra.mxu0 0.0
    %2655 = vmatprep.subr.mxu0 0.0
    %2656 = vmatpush1.msra.mxu0 0.0
    %2657 = vmatprep.mubr.f32.mxu0 0.0
    %2658 = vmatmul.mubr.f32.gmra.mrb[0].mxu0 %v2591
    %v2659 = vpop.f32.mrb[0].mxu0
    %v2660 = vadd.f32 %v2377, %v2659
    %v2661 = vpop.f32.mrb[0].mxu0
    %2662 = vdwg.mxu0
    %2664 = vrot.lane.b32.xlu0 %v2585, 48
    %v2665 = vpop.permute.xlu0 %2664
    %v2666 = vsel %vm296, %v2665, 0
    %2668 = vmatprep.subr.mxu0 0.0
    %2669 = vmatpush1.msra.mxu0 %v2365
    %2670 = vmatprep.subr.mxu0 0.0
    %2671 = vmatpush1.msra.mxu0 %v2366
    %2672 = vmatprep.subr.mxu0 0.0
    %2673 = vmatpush1.msra.mxu0 0.0
    %2674 = vmatprep.subr.mxu0 0.0
    %2675 = vmatpush1.msra.mxu0 0.0
    %2676 = vmatprep.subr.mxu0 0.0
    %2677 = vmatpush1.msra.mxu0 0.0
    %2678 = vmatprep.subr.mxu0 0.0
    %2679 = vmatpush1.msra.mxu0 0.0
    %2680 = vmatprep.subr.mxu0 0.0
    %2681 = vmatpush1.msra.mxu0 0.0
    %2682 = vmatprep.subr.mxu0 0.0
    %2683 = vmatpush1.msra.mxu0 0.0
    %2684 = vmatprep.subr.mxu0 0.0
    %2685 = vmatpush1.msra.mxu0 0.0
    %2686 = vmatprep.subr.mxu0 0.0
    %2687 = vmatpush1.msra.mxu0 0.0
    %2688 = vmatprep.subr.mxu0 0.0
    %2689 = vmatpush1.msra.mxu0 0.0
    %2690 = vmatprep.subr.mxu0 0.0
    %2691 = vmatpush1.msra.mxu0 0.0
    %2692 = vmatprep.subr.mxu0 0.0
    %2693 = vmatpush1.msra.mxu0 0.0
    %2694 = vmatprep.subr.mxu0 0.0
    %2695 = vmatpush1.msra.mxu0 0.0
    %2696 = vmatprep.subr.mxu0 0.0
    %2697 = vmatpush1.msra.mxu0 0.0
    %2698 = vmatprep.subr.mxu0 0.0
    %2699 = vmatpush1.msra.mxu0 0.0
    %2700 = vmatprep.subr.mxu0 0.0
    %2701 = vmatpush1.msra.mxu0 0.0
    %2702 = vmatprep.subr.mxu0 0.0
    %2703 = vmatpush1.msra.mxu0 0.0
    %2704 = vmatprep.subr.mxu0 0.0
    %2705 = vmatpush1.msra.mxu0 0.0
    %2706 = vmatprep.subr.mxu0 0.0
    %2707 = vmatpush1.msra.mxu0 0.0
    %2708 = vmatprep.subr.mxu0 0.0
    %2709 = vmatpush1.msra.mxu0 0.0
    %2710 = vmatprep.subr.mxu0 0.0
    %2711 = vmatpush1.msra.mxu0 0.0
    %2712 = vmatprep.subr.mxu0 0.0
    %2713 = vmatpush1.msra.mxu0 0.0
    %2714 = vmatprep.subr.mxu0 0.0
    %2715 = vmatpush1.msra.mxu0 0.0
    %2716 = vmatprep.subr.mxu0 0.0
    %2717 = vmatpush1.msra.mxu0 0.0
    %2718 = vmatprep.subr.mxu0 0.0
    %2719 = vmatpush1.msra.mxu0 0.0
    %2720 = vmatprep.subr.mxu0 0.0
    %2721 = vmatpush1.msra.mxu0 0.0
    %2722 = vmatprep.subr.mxu0 0.0
    %2723 = vmatpush1.msra.mxu0 0.0
    %2724 = vmatprep.subr.mxu0 0.0
    %2725 = vmatpush1.msra.mxu0 0.0
    %2726 = vmatprep.subr.mxu0 0.0
    %2727 = vmatpush1.msra.mxu0 0.0
    %2728 = vmatprep.subr.mxu0 0.0
    %2729 = vmatpush1.msra.mxu0 0.0
    %2730 = vmatprep.subr.mxu0 0.0
    %2731 = vmatpush1.msra.mxu0 0.0
    %2732 = vmatprep.mubr.f32.mxu0 0.0
    %2733 = vmatmul.mubr.f32.gmra.mrb[0].mxu0 %v2666
    %v2734 = vpop.f32.mrb[0].mxu0
    %v2735 = vadd.f32 %v2453, %v2734
    %v2736 = vpop.f32.mrb[0].mxu0
    %2737 = vdwg.mxu0
    %v2738 = vadd.f32 %v2586, %v2660
    %v2739 = vxor.u32 %v2738, 2147483648
    %v2740 = vmul.f32 %v2739, 1.442695
    %v2741 = vpow.pop %v2740
    %v2742 = vadd.f32 %v2741, 1.0
    %v2743 = vrcp.pop %v2742
    %v2744 = vmul.f32 1.0, %v2743
    %2746 = vrot.lane.b32.xlu0 %v2660, 96
    %v2747 = vpop.permute.xlu0 %2746
    %v2749 = vmul.f32 %v2744, %v2747
    %2751 = vrot.lane.b32.xlu0 %v2749, 32
    %v2752 = vpop.permute.xlu0 %2751
    %v2754 = vadd.f32 %v2586, %v2752
    %v2755 = vtanh.pop %v2754
    %v2756 = vsub.f32 %v2553, %v2755
    %2758 = vrot.lane.b32.xlu0 %v2756, 112
    %v2759 = vpop.permute.xlu0 %2758
    %v2761 = vmul.f32 %v2744, %v2759
    %2763 = vrot.lane.b32.xlu0 %v2761, 16
    %v2764 = vpop.permute.xlu0 %2763
    %v2766 = vadd.f32 %v2755, %v2764
    %2768 = vrot.lane.b32.xlu0 %v2735, 48
    %v2769 = vpop.permute.xlu0 %2768
    %v2771 = vadd.f32 %v2587, %v2769
    %v2772 = vxor.u32 %v2771, 2147483648
    %v2773 = vmul.f32 %v2772, 1.442695
    %v2774 = vpow.pop %v2773
    %v2775 = vadd.f32 %v2774, 1.0
    %v2776 = vrcp.pop %v2775
    %v2777 = vmul.f32 1.0, %v2776
    %2778 = vrot.lane.b32.xlu0 %v2735, 16
    %v2779 = vpop.permute.xlu0 %2778
    %v2781 = vmul.f32 %v2777, %v2779
    %2783 = vrot.lane.b32.xlu0 %v2781, 32
    %v2784 = vpop.permute.xlu0 %2783
    %v2786 = vadd.f32 %v2587, %v2784
    %v2787 = vtanh.pop %v2786
    %v2788 = vsub.f32 %v2585, %v2787
    %2790 = vrot.lane.b32.xlu0 %v2788, 112
    %v2791 = vpop.permute.xlu0 %2790
    %v2793 = vmul.f32 %v2777, %v2791
    %2795 = vrot.lane.b32.xlu0 %v2793, 16
    %v2796 = vpop.permute.xlu0 %2795
    %v2798 = vadd.f32 %v2787, %v2796
    %v2799 = vld [vmem:[%s722] sm:$0x3]
    %v2800 = vld [vmem:[%s724] sm:$0x3]
    %2802 = vrot.lane.b32.xlu0 %v2766, 96
    %v2803 = vpop.permute.xlu0 %2802
    %v2804 = vsel %vm296, %v2803, 0
    %2806 = vmatprep.subr.mxu0 0.0
    %2807 = vmatpush1.msra.mxu0 %v2362
    %2808 = vmatprep.subr.mxu0 0.0
    %2809 = vmatpush1.msra.mxu0 %v2363
    %2810 = vmatprep.subr.mxu0 0.0
    %2811 = vmatpush1.msra.mxu0 0.0
    %2812 = vmatprep.subr.mxu0 0.0
    %2813 = vmatpush1.msra.mxu0 0.0
    %2814 = vmatprep.subr.mxu0 0.0
    %2815 = vmatpush1.msra.mxu0 0.0
    %2816 = vmatprep.subr.mxu0 0.0
    %2817 = vmatpush1.msra.mxu0 0.0
    %2818 = vmatprep.subr.mxu0 0.0
    %2819 = vmatpush1.msra.mxu0 0.0
    %2820 = vmatprep.subr.mxu0 0.0
    %2821 = vmatpush1.msra.mxu0 0.0
    %2822 = vmatprep.subr.mxu0 0.0
    %2823 = vmatpush1.msra.mxu0 0.0
    %2824 = vmatprep.subr.mxu0 0.0
    %2825 = vmatpush1.msra.mxu0 0.0
    %2826 = vmatprep.subr.mxu0 0.0
    %2827 = vmatpush1.msra.mxu0 0.0
    %2828 = vmatprep.subr.mxu0 0.0
    %2829 = vmatpush1.msra.mxu0 0.0
    %2830 = vmatprep.subr.mxu0 0.0
    %2831 = vmatpush1.msra.mxu0 0.0
    %2832 = vmatprep.subr.mxu0 0.0
    %2833 = vmatpush1.msra.mxu0 0.0
    %2834 = vmatprep.subr.mxu0 0.0
    %2835 = vmatpush1.msra.mxu0 0.0
    %2836 = vmatprep.subr.mxu0 0.0
    %2837 = vmatpush1.msra.mxu0 0.0
    %2838 = vmatprep.subr.mxu0 0.0
    %2839 = vmatpush1.msra.mxu0 0.0
    %2840 = vmatprep.subr.mxu0 0.0
    %2841 = vmatpush1.msra.mxu0 0.0
    %2842 = vmatprep.subr.mxu0 0.0
    %2843 = vmatpush1.msra.mxu0 0.0
    %2844 = vmatprep.subr.mxu0 0.0
    %2845 = vmatpush1.msra.mxu0 0.0
    %2846 = vmatprep.subr.mxu0 0.0
    %2847 = vmatpush1.msra.mxu0 0.0
    %2848 = vmatprep.subr.mxu0 0.0
    %2849 = vmatpush1.msra.mxu0 0.0
    %2850 = vmatprep.subr.mxu0 0.0
    %2851 = vmatpush1.msra.mxu0 0.0
    %2852 = vmatprep.subr.mxu0 0.0
    %2853 = vmatpush1.msra.mxu0 0.0
    %2854 = vmatprep.subr.mxu0 0.0
    %2855 = vmatpush1.msra.mxu0 0.0
    %2856 = vmatprep.subr.mxu0 0.0
    %2857 = vmatpush1.msra.mxu0 0.0
    %2858 = vmatprep.subr.mxu0 0.0
    %2859 = vmatpush1.msra.mxu0 0.0
    %2860 = vmatprep.subr.mxu0 0.0
    %2861 = vmatpush1.msra.mxu0 0.0
    %2862 = vmatprep.subr.mxu0 0.0
    %2863 = vmatpush1.msra.mxu0 0.0
    %2864 = vmatprep.subr.mxu0 0.0
    %2865 = vmatpush1.msra.mxu0 0.0
    %2866 = vmatprep.subr.mxu0 0.0
    %2867 = vmatpush1.msra.mxu0 0.0
    %2868 = vmatprep.subr.mxu0 0.0
    %2869 = vmatpush1.msra.mxu0 0.0
    %2870 = vmatprep.mubr.f32.mxu0 0.0
    %2871 = vmatmul.mubr.f32.gmra.mrb[0].mxu0 %v2804
    %v2872 = vpop.f32.mrb[0].mxu0
    %v2873 = vadd.f32 %v2377, %v2872
    %v2874 = vpop.f32.mrb[0].mxu0
    %2875 = vdwg.mxu0
    %2877 = vrot.lane.b32.xlu0 %v2798, 48
    %v2878 = vpop.permute.xlu0 %2877
    %v2879 = vsel %vm296, %v2878, 0
    %2881 = vmatprep.subr.mxu0 0.0
    %2882 = vmatpush1.msra.mxu0 %v2365
    %2883 = vmatprep.subr.mxu0 0.0
    %2884 = vmatpush1.msra.mxu0 %v2366
    %2885 = vmatprep.subr.mxu0 0.0
    %2886 = vmatpush1.msra.mxu0 0.0
    %2887 = vmatprep.subr.mxu0 0.0
    %2888 = vmatpush1.msra.mxu0 0.0
    %2889 = vmatprep.subr.mxu0 0.0
    %2890 = vmatpush1.msra.mxu0 0.0
    %2891 = vmatprep.subr.mxu0 0.0
    %2892 = vmatpush1.msra.mxu0 0.0
    %2893 = vmatprep.subr.mxu0 0.0
    %2894 = vmatpush1.msra.mxu0 0.0
    %2895 = vmatprep.subr.mxu0 0.0
    %2896 = vmatpush1.msra.mxu0 0.0
    %2897 = vmatprep.subr.mxu0 0.0
    %2898 = vmatpush1.msra.mxu0 0.0
    %2899 = vmatprep.subr.mxu0 0.0
    %2900 = vmatpush1.msra.mxu0 0.0
    %2901 = vmatprep.subr.mxu0 0.0
    %2902 = vmatpush1.msra.mxu0 0.0
    %2903 = vmatprep.subr.mxu0 0.0
    %2904 = vmatpush1.msra.mxu0 0.0
    %2905 = vmatprep.subr.mxu0 0.0
    %2906 = vmatpush1.msra.mxu0 0.0
    %2907 = vmatprep.subr.mxu0 0.0
    %2908 = vmatpush1.msra.mxu0 0.0
    %2909 = vmatprep.subr.mxu0 0.0
    %2910 = vmatpush1.msra.mxu0 0.0
    %2911 = vmatprep.subr.mxu0 0.0
    %2912 = vmatpush1.msra.mxu0 0.0
    %2913 = vmatprep.subr.mxu0 0.0
    %2914 = vmatpush1.msra.mxu0 0.0
    %2915 = vmatprep.subr.mxu0 0.0
    %2916 = vmatpush1.msra.mxu0 0.0
    %2917 = vmatprep.subr.mxu0 0.0
    %2918 = vmatpush1.msra.mxu0 0.0
    %2919 = vmatprep.subr.mxu0 0.0
    %2920 = vmatpush1.msra.mxu0 0.0
    %2921 = vmatprep.subr.mxu0 0.0
    %2922 = vmatpush1.msra.mxu0 0.0
    %2923 = vmatprep.subr.mxu0 0.0
    %2924 = vmatpush1.msra.mxu0 0.0
    %2925 = vmatprep.subr.mxu0 0.0
    %2926 = vmatpush1.msra.mxu0 0.0
    %2927 = vmatprep.subr.mxu0 0.0
    %2928 = vmatpush1.msra.mxu0 0.0
    %2929 = vmatprep.subr.mxu0 0.0
    %2930 = vmatpush1.msra.mxu0 0.0
    %2931 = vmatprep.subr.mxu0 0.0
    %2932 = vmatpush1.msra.mxu0 0.0
    %2933 = vmatprep.subr.mxu0 0.0
    %2934 = vmatpush1.msra.mxu0 0.0
    %2935 = vmatprep.subr.mxu0 0.0
    %2936 = vmatpush1.msra.mxu0 0.0
    %2937 = vmatprep.subr.mxu0 0.0
    %2938 = vmatpush1.msra.mxu0 0.0
    %2939 = vmatprep.subr.mxu0 0.0
    %2940 = vmatpush1.msra.mxu0 0.0
    %2941 = vmatprep.subr.mxu0 0.0
    %2942 = vmatpush1.msra.mxu0 0.0
    %2943 = vmatprep.subr.mxu0 0.0
    %2944 = vmatpush1.msra.mxu0 0.0
    %2945 = vmatprep.mubr.f32.mxu0 0.0
    %2946 = vmatmul.mubr.f32.gmra.mrb[0].mxu0 %v2879
    %v2947 = vpop.f32.mrb[0].mxu0
    %v2948 = vadd.f32 %v2453, %v2947
    %v2949 = vpop.f32.mrb[0].mxu0
    %2950 = vdwg.mxu0
    %v2951 = vadd.f32 %v2799, %v2873
    %v2952 = vxor.u32 %v2951, 2147483648
    %v2953 = vmul.f32 %v2952, 1.442695
    %v2954 = vpow.pop %v2953
    %v2955 = vadd.f32 %v2954, 1.0
    %v2956 = vrcp.pop %v2955
    %v2957 = vmul.f32 1.0, %v2956
    %2959 = vrot.lane.b32.xlu0 %v2873, 96
    %v2960 = vpop.permute.xlu0 %2959
    %v2962 = vmul.f32 %v2957, %v2960
    %2964 = vrot.lane.b32.xlu0 %v2962, 32
    %v2965 = vpop.permute.xlu0 %2964
    %v2967 = vadd.f32 %v2799, %v2965
    %v2968 = vtanh.pop %v2967
    %v2969 = vsub.f32 %v2766, %v2968
    %2971 = vrot.lane.b32.xlu0 %v2969, 112
    %v2972 = vpop.permute.xlu0 %2971
    %v2974 = vmul.f32 %v2957, %v2972
    %2976 = vrot.lane.b32.xlu0 %v2974, 16
    %v2977 = vpop.permute.xlu0 %2976
    %v2979 = vadd.f32 %v2968, %v2977
    %2981 = vrot.lane.b32.xlu0 %v2948, 48
    %v2982 = vpop.permute.xlu0 %2981
    %v2984 = vadd.f32 %v2800, %v2982
    %v2985 = vxor.u32 %v2984, 2147483648
    %v2986 = vmul.f32 %v2985, 1.442695
    %v2987 = vpow.pop %v2986
    %v2988 = vadd.f32 %v2987, 1.0
    %v2989 = vrcp.pop %v2988
    %v2990 = vmul.f32 1.0, %v2989
    %2991 = vrot.lane.b32.xlu0 %v2948, 16
    %v2992 = vpop.permute.xlu0 %2991
    %v2994 = vmul.f32 %v2990, %v2992
    %2996 = vrot.lane.b32.xlu0 %v2994, 32
    %v2997 = vpop.permute.xlu0 %2996
    %v2999 = vadd.f32 %v2800, %v2997
    %v3000 = vtanh.pop %v2999
    %v3001 = vsub.f32 %v2798, %v3000
    %3003 = vrot.lane.b32.xlu0 %v3001, 112
    %v3004 = vpop.permute.xlu0 %3003
    %v3006 = vmul.f32 %v2990, %v3004
    %3008 = vrot.lane.b32.xlu0 %v3006, 16
    %v3009 = vpop.permute.xlu0 %3008
    %v3011 = vadd.f32 %v3000, %v3009
    %v3012 = vld [vmem:[%s937] sm:$0x3]
    %v3013 = vld [vmem:[%s939] sm:$0x3]
    %3015 = vrot.lane.b32.xlu0 %v2979, 96
    %v3016 = vpop.permute.xlu0 %3015
    %v3017 = vsel %vm296, %v3016, 0
    %3019 = vmatprep.subr.mxu0 0.0
    %3020 = vmatpush1.msra.mxu0 %v2362
    %3021 = vmatprep.subr.mxu0 0.0
    %3022 = vmatpush1.msra.mxu0 %v2363
    %3023 = vmatprep.subr.mxu0 0.0
    %3024 = vmatpush1.msra.mxu0 0.0
    %3025 = vmatprep.subr.mxu0 0.0
    %3026 = vmatpush1.msra.mxu0 0.0
    %3027 = vmatprep.subr.mxu0 0.0
    %3028 = vmatpush1.msra.mxu0 0.0
    %3029 = vmatprep.subr.mxu0 0.0
    %3030 = vmatpush1.msra.mxu0 0.0
    %3031 = vmatprep.subr.mxu0 0.0
    %3032 = vmatpush1.msra.mxu0 0.0
    %3033 = vmatprep.subr.mxu0 0.0
    %3034 = vmatpush1.msra.mxu0 0.0
    %3035 = vmatprep.subr.mxu0 0.0
    %3036 = vmatpush1.msra.mxu0 0.0
    %3037 = vmatprep.subr.mxu0 0.0
    %3038 = vmatpush1.msra.mxu0 0.0
    %3039 = vmatprep.subr.mxu0 0.0
    %3040 = vmatpush1.msra.mxu0 0.0
    %3041 = vmatprep.subr.mxu0 0.0
    %3042 = vmatpush1.msra.mxu0 0.0
    %3043 = vmatprep.subr.mxu0 0.0
    %3044 = vmatpush1.msra.mxu0 0.0
    %3045 = vmatprep.subr.mxu0 0.0
    %3046 = vmatpush1.msra.mxu0 0.0
    %3047 = vmatprep.subr.mxu0 0.0
    %3048 = vmatpush1.msra.mxu0 0.0
    %3049 = vmatprep.subr.mxu0 0.0
    %3050 = vmatpush1.msra.mxu0 0.0
    %3051 = vmatprep.subr.mxu0 0.0
    %3052 = vmatpush1.msra.mxu0 0.0
    %3053 = vmatprep.subr.mxu0 0.0
    %3054 = vmatpush1.msra.mxu0 0.0
    %3055 = vmatprep.subr.mxu0 0.0
    %3056 = vmatpush1.msra.mxu0 0.0
    %3057 = vmatprep.subr.mxu0 0.0
    %3058 = vmatpush1.msra.mxu0 0.0
    %3059 = vmatprep.subr.mxu0 0.0
    %3060 = vmatpush1.msra.mxu0 0.0
    %3061 = vmatprep.subr.mxu0 0.0
    %3062 = vmatpush1.msra.mxu0 0.0
    %3063 = vmatprep.subr.mxu0 0.0
    %3064 = vmatpush1.msra.mxu0 0.0
    %3065 = vmatprep.subr.mxu0 0.0
    %3066 = vmatpush1.msra.mxu0 0.0
    %3067 = vmatprep.subr.mxu0 0.0
    %3068 = vmatpush1.msra.mxu0 0.0
    %3069 = vmatprep.subr.mxu0 0.0
    %3070 = vmatpush1.msra.mxu0 0.0
    %3071 = vmatprep.subr.mxu0 0.0
    %3072 = vmatpush1.msra.mxu0 0.0
    %3073 = vmatprep.subr.mxu0 0.0
    %3074 = vmatpush1.msra.mxu0 0.0
    %3075 = vmatprep.subr.mxu0 0.0
    %3076 = vmatpush1.msra.mxu0 0.0
    %3077 = vmatprep.subr.mxu0 0.0
    %3078 = vmatpush1.msra.mxu0 0.0
    %3079 = vmatprep.subr.mxu0 0.0
    %3080 = vmatpush1.msra.mxu0 0.0
    %3081 = vmatprep.subr.mxu0 0.0
    %3082 = vmatpush1.msra.mxu0 0.0
    %3083 = vmatprep.mubr.f32.mxu0 0.0
    %3084 = vmatmul.mubr.f32.gmra.mrb[0].mxu0 %v3017
    %v3085 = vpop.f32.mrb[0].mxu0
    %v3086 = vadd.f32 %v2377, %v3085
    %v3087 = vpop.f32.mrb[0].mxu0
    %3088 = vdwg.mxu0
    %3090 = vrot.lane.b32.xlu0 %v3011, 48
    %v3091 = vpop.permute.xlu0 %3090
    %v3092 = vsel %vm296, %v3091, 0
    %3094 = vmatprep.subr.mxu0 0.0
    %3095 = vmatpush1.msra.mxu0 %v2365
    %3096 = vmatprep.subr.mxu0 0.0
    %3097 = vmatpush1.msra.mxu0 %v2366
    %3098 = vmatprep.subr.mxu0 0.0
    %3099 = vmatpush1.msra.mxu0 0.0
    %3100 = vmatprep.subr.mxu0 0.0
    %3101 = vmatpush1.msra.mxu0 0.0
    %3102 = vmatprep.subr.mxu0 0.0
    %3103 = vmatpush1.msra.mxu0 0.0
    %3104 = vmatprep.subr.mxu0 0.0
    %3105 = vmatpush1.msra.mxu0 0.0
    %3106 = vmatprep.subr.mxu0 0.0
    %3107 = vmatpush1.msra.mxu0 0.0
    %3108 = vmatprep.subr.mxu0 0.0
    %3109 = vmatpush1.msra.mxu0 0.0
    %3110 = vmatprep.subr.mxu0 0.0
    %3111 = vmatpush1.msra.mxu0 0.0
    %3112 = vmatprep.subr.mxu0 0.0
    %3113 = vmatpush1.msra.mxu0 0.0
    %3114 = vmatprep.subr.mxu0 0.0
    %3115 = vmatpush1.msra.mxu0 0.0
    %3116 = vmatprep.subr.mxu0 0.0
    %3117 = vmatpush1.msra.mxu0 0.0
    %3118 = vmatprep.subr.mxu0 0.0
    %3119 = vmatpush1.msra.mxu0 0.0
    %3120 = vmatprep.subr.mxu0 0.0
    %3121 = vmatpush1.msra.mxu0 0.0
    %3122 = vmatprep.subr.mxu0 0.0
    %3123 = vmatpush1.msra.mxu0 0.0
    %3124 = vmatprep.subr.mxu0 0.0
    %3125 = vmatpush1.msra.mxu0 0.0
    %3126 = vmatprep.subr.mxu0 0.0
    %3127 = vmatpush1.msra.mxu0 0.0
    %3128 = vmatprep.subr.mxu0 0.0
    %3129 = vmatpush1.msra.mxu0 0.0
    %3130 = vmatprep.subr.mxu0 0.0
    %3131 = vmatpush1.msra.mxu0 0.0
    %3132 = vmatprep.subr.mxu0 0.0
    %3133 = vmatpush1.msra.mxu0 0.0
    %3134 = vmatprep.subr.mxu0 0.0
    %3135 = vmatpush1.msra.mxu0 0.0
    %3136 = vmatprep.subr.mxu0 0.0
    %3137 = vmatpush1.msra.mxu0 0.0
    %3138 = vmatprep.subr.mxu0 0.0
    %3139 = vmatpush1.msra.mxu0 0.0
    %3140 = vmatprep.subr.mxu0 0.0
    %3141 = vmatpush1.msra.mxu0 0.0
    %3142 = vmatprep.subr.mxu0 0.0
    %3143 = vmatpush1.msra.mxu0 0.0
    %3144 = vmatprep.subr.mxu0 0.0
    %3145 = vmatpush1.msra.mxu0 0.0
    %3146 = vmatprep.subr.mxu0 0.0
    %3147 = vmatpush1.msra.mxu0 0.0
    %3148 = vmatprep.subr.mxu0 0.0
    %3149 = vmatpush1.msra.mxu0 0.0
    %3150 = vmatprep.subr.mxu0 0.0
    %3151 = vmatpush1.msra.mxu0 0.0
    %3152 = vmatprep.subr.mxu0 0.0
    %3153 = vmatpush1.msra.mxu0 0.0
    %3154 = vmatprep.subr.mxu0 0.0
    %3155 = vmatpush1.msra.mxu0 0.0
    %3156 = vmatprep.subr.mxu0 0.0
    %3157 = vmatpush1.msra.mxu0 0.0
    %3158 = vmatprep.mubr.f32.mxu0 0.0
    %3159 = vmatmul.mubr.f32.gmra.mrb[0].mxu0 %v3092
    %v3160 = vpop.f32.mrb[0].mxu0
    %v3161 = vadd.f32 %v2453, %v3160
    %v3162 = vpop.f32.mrb[0].mxu0
    %3163 = vdwg.mxu0
    %v3164 = vadd.f32 %v3012, %v3086
    %v3165 = vxor.u32 %v3164, 2147483648
    %v3166 = vmul.f32 %v3165, 1.442695
    %v3167 = vpow.pop %v3166
    %v3168 = vadd.f32 %v3167, 1.0
    %v3169 = vrcp.pop %v3168
    %v3170 = vmul.f32 1.0, %v3169
    %3172 = vrot.lane.b32.xlu0 %v3086, 96
    %v3173 = vpop.permute.xlu0 %3172
    %v3175 = vmul.f32 %v3170, %v3173
    %3177 = vrot.lane.b32.xlu0 %v3175, 32
    %v3178 = vpop.permute.xlu0 %3177
    %v3180 = vadd.f32 %v3012, %v3178
    %v3181 = vtanh.pop %v3180
    %v3182 = vsub.f32 %v2979, %v3181
    %3184 = vrot.lane.b32.xlu0 %v3182, 112
    %v3185 = vpop.permute.xlu0 %3184
    %v3187 = vmul.f32 %v3170, %v3185
    %3189 = vrot.lane.b32.xlu0 %v3187, 16
    %v3190 = vpop.permute.xlu0 %3189
    %v3192 = vadd.f32 %v3181, %v3190
    %3194 = vrot.lane.b32.xlu0 %v3161, 48
    %v3195 = vpop.permute.xlu0 %3194
    %v3197 = vadd.f32 %v3013, %v3195
    %v3198 = vxor.u32 %v3197, 2147483648
    %v3199 = vmul.f32 %v3198, 1.442695
    %v3200 = vpow.pop %v3199
    %v3201 = vadd.f32 %v3200, 1.0
    %v3202 = vrcp.pop %v3201
    %v3203 = vmul.f32 1.0, %v3202
    %3204 = vrot.lane.b32.xlu0 %v3161, 16
    %v3205 = vpop.permute.xlu0 %3204
    %v3207 = vmul.f32 %v3203, %v3205
    %3209 = vrot.lane.b32.xlu0 %v3207, 32
    %v3210 = vpop.permute.xlu0 %3209
    %v3212 = vadd.f32 %v3013, %v3210
    %v3213 = vtanh.pop %v3212
    %v3214 = vsub.f32 %v3011, %v3213
    %3216 = vrot.lane.b32.xlu0 %v3214, 112
    %v3217 = vpop.permute.xlu0 %3216
    %v3219 = vmul.f32 %v3203, %v3217
    %3221 = vrot.lane.b32.xlu0 %v3219, 16
    %v3222 = vpop.permute.xlu0 %3221
    %v3224 = vadd.f32 %v3213, %v3222
    %3226 = vrot.lane.b32.xlu0 %v3192, 96
    %v3227 = vpop.permute.xlu0 %3226
    %v3228 = vsel %vm296, %v3227, 0
    %3230 = vmatprep.subr.mxu0 0.0
    %3231 = vmatpush1.msra.mxu0 %v2362
    %3232 = vmatprep.subr.mxu0 0.0
    %3233 = vmatpush1.msra.mxu0 %v2363
    %3234 = vmatprep.subr.mxu0 0.0
    %3235 = vmatpush1.msra.mxu0 0.0
    %3236 = vmatprep.subr.mxu0 0.0
    %3237 = vmatpush1.msra.mxu0 0.0
    %3238 = vmatprep.subr.mxu0 0.0
    %3239 = vmatpush1.msra.mxu0 0.0
    %3240 = vmatprep.subr.mxu0 0.0
    %3241 = vmatpush1.msra.mxu0 0.0
    %3242 = vmatprep.subr.mxu0 0.0
    %3243 = vmatpush1.msra.mxu0 0.0
    %3244 = vmatprep.subr.mxu0 0.0
    %3245 = vmatpush1.msra.mxu0 0.0
    %3246 = vmatprep.subr.mxu0 0.0
    %3247 = vmatpush1.msra.mxu0 0.0
    %3248 = vmatprep.subr.mxu0 0.0
    %3249 = vmatpush1.msra.mxu0 0.0
    %3250 = vmatprep.subr.mxu0 0.0
    %3251 = vmatpush1.msra.mxu0 0.0
    %3252 = vmatprep.subr.mxu0 0.0
    %3253 = vmatpush1.msra.mxu0 0.0
    %3254 = vmatprep.subr.mxu0 0.0
    %3255 = vmatpush1.msra.mxu0 0.0
    %3256 = vmatprep.subr.mxu0 0.0
    %3257 = vmatpush1.msra.mxu0 0.0
    %3258 = vmatprep.subr.mxu0 0.0
    %3259 = vmatpush1.msra.mxu0 0.0
    %3260 = vmatprep.subr.mxu0 0.0
    %3261 = vmatpush1.msra.mxu0 0.0
    %3262 = vmatprep.subr.mxu0 0.0
    %3263 = vmatpush1.msra.mxu0 0.0
    %3264 = vmatprep.subr.mxu0 0.0
    %3265 = vmatpush1.msra.mxu0 0.0
    %3266 = vmatprep.subr.mxu0 0.0
    %3267 = vmatpush1.msra.mxu0 0.0
    %3268 = vmatprep.subr.mxu0 0.0
    %3269 = vmatpush1.msra.mxu0 0.0
    %3270 = vmatprep.subr.mxu0 0.0
    %3271 = vmatpush1.msra.mxu0 0.0
    %3272 = vmatprep.subr.mxu0 0.0
    %3273 = vmatpush1.msra.mxu0 0.0
    %3274 = vmatprep.subr.mxu0 0.0
    %3275 = vmatpush1.msra.mxu0 0.0
    %3276 = vmatprep.subr.mxu0 0.0
    %3277 = vmatpush1.msra.mxu0 0.0
    %3278 = vmatprep.subr.mxu0 0.0
    %3279 = vmatpush1.msra.mxu0 0.0
    %3280 = vmatprep.subr.mxu0 0.0
    %3281 = vmatpush1.msra.mxu0 0.0
    %3282 = vmatprep.subr.mxu0 0.0
    %3283 = vmatpush1.msra.mxu0 0.0
    %3284 = vmatprep.subr.mxu0 0.0
    %3285 = vmatpush1.msra.mxu0 0.0
    %3286 = vmatprep.subr.mxu0 0.0
    %3287 = vmatpush1.msra.mxu0 0.0
    %3288 = vmatprep.subr.mxu0 0.0
    %3289 = vmatpush1.msra.mxu0 0.0
    %3290 = vmatprep.subr.mxu0 0.0
    %3291 = vmatpush1.msra.mxu0 0.0
    %3292 = vmatprep.subr.mxu0 0.0
    %3293 = vmatpush1.msra.mxu0 0.0
    %3294 = vmatprep.mubr.f32.mxu0 0.0
    %3295 = vmatmul.mubr.f32.gmra.mrb[0].mxu0 %v3228
    %v3296 = vpop.f32.mrb[0].mxu0
    %v3297 = vadd.f32 %v2377, %v3296
    %v3298 = vpop.f32.mrb[0].mxu0
    %3299 = vdwg.mxu0
    %3301 = vrot.lane.b32.xlu0 %v3224, 48
    %v3302 = vpop.permute.xlu0 %3301
    %v3303 = vsel %vm296, %v3302, 0
    %3305 = vmatprep.subr.mxu0 0.0
    %3306 = vmatpush1.msra.mxu0 %v2365
    %3307 = vmatprep.subr.mxu0 0.0
    %3308 = vmatpush1.msra.mxu0 %v2366
    %3309 = vmatprep.subr.mxu0 0.0
    %3310 = vmatpush1.msra.mxu0 0.0
    %3311 = vmatprep.subr.mxu0 0.0
    %3312 = vmatpush1.msra.mxu0 0.0
    %3313 = vmatprep.subr.mxu0 0.0
    %3314 = vmatpush1.msra.mxu0 0.0
    %3315 = vmatprep.subr.mxu0 0.0
    %3316 = vmatpush1.msra.mxu0 0.0
    %3317 = vmatprep.subr.mxu0 0.0
    %3318 = vmatpush1.msra.mxu0 0.0
    %3319 = vmatprep.subr.mxu0 0.0
    %3320 = vmatpush1.msra.mxu0 0.0
    %3321 = vmatprep.subr.mxu0 0.0
    %3322 = vmatpush1.msra.mxu0 0.0
    %3323 = vmatprep.subr.mxu0 0.0
    %3324 = vmatpush1.msra.mxu0 0.0
    %3325 = vmatprep.subr.mxu0 0.0
    %3326 = vmatpush1.msra.mxu0 0.0
    %3327 = vmatprep.subr.mxu0 0.0
    %3328 = vmatpush1.msra.mxu0 0.0
    %3329 = vmatprep.subr.mxu0 0.0
    %3330 = vmatpush1.msra.mxu0 0.0
    %3331 = vmatprep.subr.mxu0 0.0
    %3332 = vmatpush1.msra.mxu0 0.0
    %3333 = vmatprep.subr.mxu0 0.0
    %3334 = vmatpush1.msra.mxu0 0.0
    %3335 = vmatprep.subr.mxu0 0.0
    %3336 = vmatpush1.msra.mxu0 0.0
    %3337 = vmatprep.subr.mxu0 0.0
    %3338 = vmatpush1.msra.mxu0 0.0
    %3339 = vmatprep.subr.mxu0 0.0
    %3340 = vmatpush1.msra.mxu0 0.0
    %3341 = vmatprep.subr.mxu0 0.0
    %3342 = vmatpush1.msra.mxu0 0.0
    %3343 = vmatprep.subr.mxu0 0.0
    %3344 = vmatpush1.msra.mxu0 0.0
    %3345 = vmatprep.subr.mxu0 0.0
    %3346 = vmatpush1.msra.mxu0 0.0
    %3347 = vmatprep.subr.mxu0 0.0
    %3348 = vmatpush1.msra.mxu0 0.0
    %3349 = vmatprep.subr.mxu0 0.0
    %3350 = vmatpush1.msra.mxu0 0.0
    %3351 = vmatprep.subr.mxu0 0.0
    %3352 = vmatpush1.msra.mxu0 0.0
    %3353 = vmatprep.subr.mxu0 0.0
    %3354 = vmatpush1.msra.mxu0 0.0
    %3355 = vmatprep.subr.mxu0 0.0
    %3356 = vmatpush1.msra.mxu0 0.0
    %3357 = vmatprep.subr.mxu0 0.0
    %3358 = vmatpush1.msra.mxu0 0.0
    %3359 = vmatprep.subr.mxu0 0.0
    %3360 = vmatpush1.msra.mxu0 0.0
    %3361 = vmatprep.subr.mxu0 0.0
    %3362 = vmatpush1.msra.mxu0 0.0
    %3363 = vmatprep.subr.mxu0 0.0
    %3364 = vmatpush1.msra.mxu0 0.0
    %3365 = vmatprep.subr.mxu0 0.0
    %3366 = vmatpush1.msra.mxu0 0.0
    %3367 = vmatprep.subr.mxu0 0.0
    %3368 = vmatpush1.msra.mxu0 0.0
    %3369 = vmatprep.mubr.f32.mxu0 0.0
    %3370 = vmatmul.mubr.f32.gmra.mrb[0].mxu0 %v3303
    %v3371 = vpop.f32.mrb[0].mxu0
    %v3372 = vadd.f32 %v2453, %v3371
    %v3373 = vpop.f32.mrb[0].mxu0
    %3374 = vdwg.mxu0
    %v3375 = vadd.f32 %v3013, %v3297
    %v3376 = vxor.u32 %v3375, 2147483648
    %v3377 = vmul.f32 %v3376, 1.442695
    %v3378 = vpow.pop %v3377
    %v3379 = vadd.f32 %v3378, 1.0
    %v3380 = vrcp.pop %v3379
    %v3381 = vmul.f32 1.0, %v3380
    %3383 = vrot.lane.b32.xlu0 %v3297, 96
    %v3384 = vpop.permute.xlu0 %3383
    %v3386 = vmul.f32 %v3381, %v3384
    %3388 = vrot.lane.b32.xlu0 %v3386, 32
    %v3389 = vpop.permute.xlu0 %3388
    %v3391 = vadd.f32 %v3013, %v3389
    %v3392 = vtanh.pop %v3391
    %v3393 = vsub.f32 %v3192, %v3392
    %3395 = vrot.lane.b32.xlu0 %v3393, 112
    %v3396 = vpop.permute.xlu0 %3395
    %v3398 = vmul.f32 %v3381, %v3396
    %3400 = vrot.lane.b32.xlu0 %v3398, 16
    %v3401 = vpop.permute.xlu0 %3400
    %v3403 = vadd.f32 %v3392, %v3401
    %3405 = vrot.lane.b32.xlu0 %v3372, 48
    %v3406 = vpop.permute.xlu0 %3405
    %v3408 = vadd.f32 %v3012, %v3406
    %v3409 = vxor.u32 %v3408, 2147483648
    %v3410 = vmul.f32 %v3409, 1.442695
    %v3411 = vpow.pop %v3410
    %v3412 = vadd.f32 %v3411, 1.0
    %v3413 = vrcp.pop %v3412
    %v3414 = vmul.f32 1.0, %v3413
    %3415 = vrot.lane.b32.xlu0 %v3372, 16
    %v3416 = vpop.permute.xlu0 %3415
    %v3418 = vmul.f32 %v3414, %v3416
    %3420 = vrot.lane.b32.xlu0 %v3418, 32
    %v3421 = vpop.permute.xlu0 %3420
    %v3423 = vadd.f32 %v3012, %v3421
    %v3424 = vtanh.pop %v3423
    %v3425 = vsub.f32 %v3224, %v3424
    %3427 = vrot.lane.b32.xlu0 %v3425, 112
    %v3428 = vpop.permute.xlu0 %3427
    %v3430 = vmul.f32 %v3414, %v3428
    %3432 = vrot.lane.b32.xlu0 %v3430, 16
    %v3433 = vpop.permute.xlu0 %3432
    %v3435 = vadd.f32 %v3424, %v3433
    %3437 = vrot.lane.b32.xlu0 %v3403, 96
    %v3438 = vpop.permute.xlu0 %3437
    %v3439 = vsel %vm296, %v3438, 0
    %3441 = vmatprep.subr.mxu0 0.0
    %3442 = vmatpush1.msra.mxu0 %v2362
    %3443 = vmatprep.subr.mxu0 0.0
    %3444 = vmatpush1.msra.mxu0 %v2363
    %3445 = vmatprep.subr.mxu0 0.0
    %3446 = vmatpush1.msra.mxu0 0.0
    %3447 = vmatprep.subr.mxu0 0.0
    %3448 = vmatpush1.msra.mxu0 0.0
    %3449 = vmatprep.subr.mxu0 0.0
    %3450 = vmatpush1.msra.mxu0 0.0
    %3451 = vmatprep.subr.mxu0 0.0
    %3452 = vmatpush1.msra.mxu0 0.0
    %3453 = vmatprep.subr.mxu0 0.0
    %3454 = vmatpush1.msra.mxu0 0.0
    %3455 = vmatprep.subr.mxu0 0.0
    %3456 = vmatpush1.msra.mxu0 0.0
    %3457 = vmatprep.subr.mxu0 0.0
    %3458 = vmatpush1.msra.mxu0 0.0
    %3459 = vmatprep.subr.mxu0 0.0
    %3460 = vmatpush1.msra.mxu0 0.0
    %3461 = vmatprep.subr.mxu0 0.0
    %3462 = vmatpush1.msra.mxu0 0.0
    %3463 = vmatprep.subr.mxu0 0.0
    %3464 = vmatpush1.msra.mxu0 0.0
    %3465 = vmatprep.subr.mxu0 0.0
    %3466 = vmatpush1.msra.mxu0 0.0
    %3467 = vmatprep.subr.mxu0 0.0
    %3468 = vmatpush1.msra.mxu0 0.0
    %3469 = vmatprep.subr.mxu0 0.0
    %3470 = vmatpush1.msra.mxu0 0.0
    %3471 = vmatprep.subr.mxu0 0.0
    %3472 = vmatpush1.msra.mxu0 0.0
    %3473 = vmatprep.subr.mxu0 0.0
    %3474 = vmatpush1.msra.mxu0 0.0
    %3475 = vmatprep.subr.mxu0 0.0
    %3476 = vmatpush1.msra.mxu0 0.0
    %3477 = vmatprep.subr.mxu0 0.0
    %3478 = vmatpush1.msra.mxu0 0.0
    %3479 = vmatprep.subr.mxu0 0.0
    %3480 = vmatpush1.msra.mxu0 0.0
    %3481 = vmatprep.subr.mxu0 0.0
    %3482 = vmatpush1.msra.mxu0 0.0
    %3483 = vmatprep.subr.mxu0 0.0
    %3484 = vmatpush1.msra.mxu0 0.0
    %3485 = vmatprep.subr.mxu0 0.0
    %3486 = vmatpush1.msra.mxu0 0.0
    %3487 = vmatprep.subr.mxu0 0.0
    %3488 = vmatpush1.msra.mxu0 0.0
    %3489 = vmatprep.subr.mxu0 0.0
    %3490 = vmatpush1.msra.mxu0 0.0
    %3491 = vmatprep.subr.mxu0 0.0
    %3492 = vmatpush1.msra.mxu0 0.0
    %3493 = vmatprep.subr.mxu0 0.0
    %3494 = vmatpush1.msra.mxu0 0.0
    %3495 = vmatprep.subr.mxu0 0.0
    %3496 = vmatpush1.msra.mxu0 0.0
    %3497 = vmatprep.subr.mxu0 0.0
    %3498 = vmatpush1.msra.mxu0 0.0
    %3499 = vmatprep.subr.mxu0 0.0
    %3500 = vmatpush1.msra.mxu0 0.0
    %3501 = vmatprep.subr.mxu0 0.0
    %3502 = vmatpush1.msra.mxu0 0.0
    %3503 = vmatprep.subr.mxu0 0.0
    %3504 = vmatpush1.msra.mxu0 0.0
    %3505 = vmatprep.mubr.f32.mxu0 0.0
    %3506 = vmatmul.mubr.f32.gmra.mrb[0].mxu0 %v3439
    %v3507 = vpop.f32.mrb[0].mxu0
    %v3508 = vadd.f32 %v2377, %v3507
    %v3509 = vpop.f32.mrb[0].mxu0
    %3510 = vdwg.mxu0
    %3512 = vrot.lane.b32.xlu0 %v3435, 48
    %v3513 = vpop.permute.xlu0 %3512
    %v3514 = vsel %vm296, %v3513, 0
    %3516 = vmatprep.subr.mxu0 0.0
    %3517 = vmatpush1.msra.mxu0 %v2365
    %3518 = vmatprep.subr.mxu0 0.0
    %3519 = vmatpush1.msra.mxu0 %v2366
    %3520 = vmatprep.subr.mxu0 0.0
    %3521 = vmatpush1.msra.mxu0 0.0
    %3522 = vmatprep.subr.mxu0 0.0
    %3523 = vmatpush1.msra.mxu0 0.0
    %3524 = vmatprep.subr.mxu0 0.0
    %3525 = vmatpush1.msra.mxu0 0.0
    %3526 = vmatprep.subr.mxu0 0.0
    %3527 = vmatpush1.msra.mxu0 0.0
    %3528 = vmatprep.subr.mxu0 0.0
    %3529 = vmatpush1.msra.mxu0 0.0
    %3530 = vmatprep.subr.mxu0 0.0
    %3531 = vmatpush1.msra.mxu0 0.0
    %3532 = vmatprep.subr.mxu0 0.0
    %3533 = vmatpush1.msra.mxu0 0.0
    %3534 = vmatprep.subr.mxu0 0.0
    %3535 = vmatpush1.msra.mxu0 0.0
    %3536 = vmatprep.subr.mxu0 0.0
    %3537 = vmatpush1.msra.mxu0 0.0
    %3538 = vmatprep.subr.mxu0 0.0
    %3539 = vmatpush1.msra.mxu0 0.0
    %3540 = vmatprep.subr.mxu0 0.0
    %3541 = vmatpush1.msra.mxu0 0.0
    %3542 = vmatprep.subr.mxu0 0.0
    %3543 = vmatpush1.msra.mxu0 0.0
    %3544 = vmatprep.subr.mxu0 0.0
    %3545 = vmatpush1.msra.mxu0 0.0
    %3546 = vmatprep.subr.mxu0 0.0
    %3547 = vmatpush1.msra.mxu0 0.0
    %3548 = vmatprep.subr.mxu0 0.0
    %3549 = vmatpush1.msra.mxu0 0.0
    %3550 = vmatprep.subr.mxu0 0.0
    %3551 = vmatpush1.msra.mxu0 0.0
    %3552 = vmatprep.subr.mxu0 0.0
    %3553 = vmatpush1.msra.mxu0 0.0
    %3554 = vmatprep.subr.mxu0 0.0
    %3555 = vmatpush1.msra.mxu0 0.0
    %3556 = vmatprep.subr.mxu0 0.0
    %3557 = vmatpush1.msra.mxu0 0.0
    %3558 = vmatprep.subr.mxu0 0.0
    %3559 = vmatpush1.msra.mxu0 0.0
    %3560 = vmatprep.subr.mxu0 0.0
    %3561 = vmatpush1.msra.mxu0 0.0
    %3562 = vmatprep.subr.mxu0 0.0
    %3563 = vmatpush1.msra.mxu0 0.0
    %3564 = vmatprep.subr.mxu0 0.0
    %3565 = vmatpush1.msra.mxu0 0.0
    %3566 = vmatprep.subr.mxu0 0.0
    %3567 = vmatpush1.msra.mxu0 0.0
    %3568 = vmatprep.subr.mxu0 0.0
    %3569 = vmatpush1.msra.mxu0 0.0
    %3570 = vmatprep.subr.mxu0 0.0
    %3571 = vmatpush1.msra.mxu0 0.0
    %3572 = vmatprep.subr.mxu0 0.0
    %3573 = vmatpush1.msra.mxu0 0.0
    %3574 = vmatprep.subr.mxu0 0.0
    %3575 = vmatpush1.msra.mxu0 0.0
    %3576 = vmatprep.subr.mxu0 0.0
    %3577 = vmatpush1.msra.mxu0 0.0
    %3578 = vmatprep.subr.mxu0 0.0
    %3579 = vmatpush1.msra.mxu0 0.0
    %3580 = vmatprep.mubr.f32.mxu0 0.0
    %3581 = vmatmul.mubr.f32.gmra.mrb[0].mxu0 %v3514
    %v3582 = vpop.f32.mrb[0].mxu0
    %v3583 = vadd.f32 %v2453, %v3582
    %v3584 = vpop.f32.mrb[0].mxu0
    %3585 = vdwg.mxu0
    %v3586 = vadd.f32 %v2800, %v3508
    %v3587 = vxor.u32 %v3586, 2147483648
    %v3588 = vmul.f32 %v3587, 1.442695
    %v3589 = vpow.pop %v3588
    %v3590 = vadd.f32 %v3589, 1.0
    %v3591 = vrcp.pop %v3590
    %v3592 = vmul.f32 1.0, %v3591
    %3594 = vrot.lane.b32.xlu0 %v3508, 96
    %v3595 = vpop.permute.xlu0 %3594
    %v3597 = vmul.f32 %v3592, %v3595
    %3599 = vrot.lane.b32.xlu0 %v3597, 32
    %v3600 = vpop.permute.xlu0 %3599
    %v3602 = vadd.f32 %v2800, %v3600
    %v3603 = vtanh.pop %v3602
    %v3604 = vsub.f32 %v3403, %v3603
    %3606 = vrot.lane.b32.xlu0 %v3604, 112
    %v3607 = vpop.permute.xlu0 %3606
    %v3609 = vmul.f32 %v3592, %v3607
    %3611 = vrot.lane.b32.xlu0 %v3609, 16
    %v3612 = vpop.permute.xlu0 %3611
    %v3614 = vadd.f32 %v3603, %v3612
    %3616 = vrot.lane.b32.xlu0 %v3583, 48
    %v3617 = vpop.permute.xlu0 %3616
    %v3619 = vadd.f32 %v2799, %v3617
    %v3620 = vxor.u32 %v3619, 2147483648
    %v3621 = vmul.f32 %v3620, 1.442695
    %v3622 = vpow.pop %v3621
    %v3623 = vadd.f32 %v3622, 1.0
    %v3624 = vrcp.pop %v3623
    %v3625 = vmul.f32 1.0, %v3624
    %3626 = vrot.lane.b32.xlu0 %v3583, 16
    %v3627 = vpop.permute.xlu0 %3626
    %v3629 = vmul.f32 %v3625, %v3627
    %3631 = vrot.lane.b32.xlu0 %v3629, 32
    %v3632 = vpop.permute.xlu0 %3631
    %v3634 = vadd.f32 %v2799, %v3632
    %v3635 = vtanh.pop %v3634
    %v3636 = vsub.f32 %v3435, %v3635
    %3638 = vrot.lane.b32.xlu0 %v3636, 112
    %v3639 = vpop.permute.xlu0 %3638
    %v3641 = vmul.f32 %v3625, %v3639
    %3643 = vrot.lane.b32.xlu0 %v3641, 16
    %v3644 = vpop.permute.xlu0 %3643
    %v3646 = vadd.f32 %v3635, %v3644
    %3648 = vrot.lane.b32.xlu0 %v3614, 96
    %v3649 = vpop.permute.xlu0 %3648
    %v3650 = vsel %vm296, %v3649, 0
    %3652 = vmatprep.subr.mxu0 0.0
    %3653 = vmatpush1.msra.mxu0 %v2362
    %3654 = vmatprep.subr.mxu0 0.0
    %3655 = vmatpush1.msra.mxu0 %v2363
    %3656 = vmatprep.subr.mxu0 0.0
    %3657 = vmatpush1.msra.mxu0 0.0
    %3658 = vmatprep.subr.mxu0 0.0
    %3659 = vmatpush1.msra.mxu0 0.0
    %3660 = vmatprep.subr.mxu0 0.0
    %3661 = vmatpush1.msra.mxu0 0.0
    %3662 = vmatprep.subr.mxu0 0.0
    %3663 = vmatpush1.msra.mxu0 0.0
    %3664 = vmatprep.subr.mxu0 0.0
    %3665 = vmatpush1.msra.mxu0 0.0
    %3666 = vmatprep.subr.mxu0 0.0
    %3667 = vmatpush1.msra.mxu0 0.0
    %3668 = vmatprep.subr.mxu0 0.0
    %3669 = vmatpush1.msra.mxu0 0.0
    %3670 = vmatprep.subr.mxu0 0.0
    %3671 = vmatpush1.msra.mxu0 0.0
    %3672 = vmatprep.subr.mxu0 0.0
    %3673 = vmatpush1.msra.mxu0 0.0
    %3674 = vmatprep.subr.mxu0 0.0
    %3675 = vmatpush1.msra.mxu0 0.0
    %3676 = vmatprep.subr.mxu0 0.0
    %3677 = vmatpush1.msra.mxu0 0.0
    %3678 = vmatprep.subr.mxu0 0.0
    %3679 = vmatpush1.msra.mxu0 0.0
    %3680 = vmatprep.subr.mxu0 0.0
    %3681 = vmatpush1.msra.mxu0 0.0
    %3682 = vmatprep.subr.mxu0 0.0
    %3683 = vmatpush1.msra.mxu0 0.0
    %3684 = vmatprep.subr.mxu0 0.0
    %3685 = vmatpush1.msra.mxu0 0.0
    %3686 = vmatprep.subr.mxu0 0.0
    %3687 = vmatpush1.msra.mxu0 0.0
    %3688 = vmatprep.subr.mxu0 0.0
    %3689 = vmatpush1.msra.mxu0 0.0
    %3690 = vmatprep.subr.mxu0 0.0
    %3691 = vmatpush1.msra.mxu0 0.0
    %3692 = vmatprep.subr.mxu0 0.0
    %3693 = vmatpush1.msra.mxu0 0.0
    %3694 = vmatprep.subr.mxu0 0.0
    %3695 = vmatpush1.msra.mxu0 0.0
    %3696 = vmatprep.subr.mxu0 0.0
    %3697 = vmatpush1.msra.mxu0 0.0
    %3698 = vmatprep.subr.mxu0 0.0
    %3699 = vmatpush1.msra.mxu0 0.0
    %3700 = vmatprep.subr.mxu0 0.0
    %3701 = vmatpush1.msra.mxu0 0.0
    %3702 = vmatprep.subr.mxu0 0.0
    %3703 = vmatpush1.msra.mxu0 0.0
    %3704 = vmatprep.subr.mxu0 0.0
    %3705 = vmatpush1.msra.mxu0 0.0
    %3706 = vmatprep.subr.mxu0 0.0
    %3707 = vmatpush1.msra.mxu0 0.0
    %3708 = vmatprep.subr.mxu0 0.0
    %3709 = vmatpush1.msra.mxu0 0.0
    %3710 = vmatprep.subr.mxu0 0.0
    %3711 = vmatpush1.msra.mxu0 0.0
    %3712 = vmatprep.subr.mxu0 0.0
    %3713 = vmatpush1.msra.mxu0 0.0
    %3714 = vmatprep.subr.mxu0 0.0
    %3715 = vmatpush1.msra.mxu0 0.0
    %3716 = vmatprep.mubr.f32.mxu0 0.0
    %3717 = vmatmul.mubr.f32.gmra.mrb[0].mxu0 %v3650
    %v3718 = vpop.f32.mrb[0].mxu0
    %v3719 = vadd.f32 %v2377, %v3718
    %v3720 = vpop.f32.mrb[0].mxu0
    %3721 = vdwg.mxu0
    %3723 = vrot.lane.b32.xlu0 %v3646, 48
    %v3724 = vpop.permute.xlu0 %3723
    %v3725 = vsel %vm296, %v3724, 0
    %3727 = vmatprep.subr.mxu0 0.0
    %3728 = vmatpush1.msra.mxu0 %v2365
    %3729 = vmatprep.subr.mxu0 0.0
    %3730 = vmatpush1.msra.mxu0 %v2366
    %3731 = vmatprep.subr.mxu0 0.0
    %3732 = vmatpush1.msra.mxu0 0.0
    %3733 = vmatprep.subr.mxu0 0.0
    %3734 = vmatpush1.msra.mxu0 0.0
    %3735 = vmatprep.subr.mxu0 0.0
    %3736 = vmatpush1.msra.mxu0 0.0
    %3737 = vmatprep.subr.mxu0 0.0
    %3738 = vmatpush1.msra.mxu0 0.0
    %3739 = vmatprep.subr.mxu0 0.0
    %3740 = vmatpush1.msra.mxu0 0.0
    %3741 = vmatprep.subr.mxu0 0.0
    %3742 = vmatpush1.msra.mxu0 0.0
    %3743 = vmatprep.subr.mxu0 0.0
    %3744 = vmatpush1.msra.mxu0 0.0
    %3745 = vmatprep.subr.mxu0 0.0
    %3746 = vmatpush1.msra.mxu0 0.0
    %3747 = vmatprep.subr.mxu0 0.0
    %3748 = vmatpush1.msra.mxu0 0.0
    %3749 = vmatprep.subr.mxu0 0.0
    %3750 = vmatpush1.msra.mxu0 0.0
    %3751 = vmatprep.subr.mxu0 0.0
    %3752 = vmatpush1.msra.mxu0 0.0
    %3753 = vmatprep.subr.mxu0 0.0
    %3754 = vmatpush1.msra.mxu0 0.0
    %3755 = vmatprep.subr.mxu0 0.0
    %3756 = vmatpush1.msra.mxu0 0.0
    %3757 = vmatprep.subr.mxu0 0.0
    %3758 = vmatpush1.msra.mxu0 0.0
    %3759 = vmatprep.subr.mxu0 0.0
    %3760 = vmatpush1.msra.mxu0 0.0
    %3761 = vmatprep.subr.mxu0 0.0
    %3762 = vmatpush1.msra.mxu0 0.0
    %3763 = vmatprep.subr.mxu0 0.0
    %3764 = vmatpush1.msra.mxu0 0.0
    %3765 = vmatprep.subr.mxu0 0.0
    %3766 = vmatpush1.msra.mxu0 0.0
    %3767 = vmatprep.subr.mxu0 0.0
    %3768 = vmatpush1.msra.mxu0 0.0
    %3769 = vmatprep.subr.mxu0 0.0
    %3770 = vmatpush1.msra.mxu0 0.0
    %3771 = vmatprep.subr.mxu0 0.0
    %3772 = vmatpush1.msra.mxu0 0.0
    %3773 = vmatprep.subr.mxu0 0.0
    %3774 = vmatpush1.msra.mxu0 0.0
    %3775 = vmatprep.subr.mxu0 0.0
    %3776 = vmatpush1.msra.mxu0 0.0
    %3777 = vmatprep.subr.mxu0 0.0
    %3778 = vmatpush1.msra.mxu0 0.0
    %3779 = vmatprep.subr.mxu0 0.0
    %3780 = vmatpush1.msra.mxu0 0.0
    %3781 = vmatprep.subr.mxu0 0.0
    %3782 = vmatpush1.msra.mxu0 0.0
    %3783 = vmatprep.subr.mxu0 0.0
    %3784 = vmatpush1.msra.mxu0 0.0
    %3785 = vmatprep.subr.mxu0 0.0
    %3786 = vmatpush1.msra.mxu0 0.0
    %3787 = vmatprep.subr.mxu0 0.0
    %3788 = vmatpush1.msra.mxu0 0.0
    %3789 = vmatprep.subr.mxu0 0.0
    %3790 = vmatpush1.msra.mxu0 0.0
    %3791 = vmatprep.mubr.f32.mxu0 0.0
    %3792 = vmatmul.mubr.f32.gmra.mrb[0].mxu0 %v3725
    %v3793 = vpop.f32.mrb[0].mxu0
    %v3794 = vadd.f32 %v2453, %v3793
    %v3795 = vpop.f32.mrb[0].mxu0
    %3796 = vdwg.mxu0
    %v3797 = vadd.f32 %v2587, %v3719
    %v3798 = vxor.u32 %v3797, 2147483648
    %v3799 = vmul.f32 %v3798, 1.442695
    %v3800 = vpow.pop %v3799
    %v3801 = vadd.f32 %v3800, 1.0
    %v3802 = vrcp.pop %v3801
    %v3803 = vmul.f32 1.0, %v3802
    %3805 = vrot.lane.b32.xlu0 %v3719, 96
    %v3806 = vpop.permute.xlu0 %3805
    %v3808 = vmul.f32 %v3803, %v3806
    %3810 = vrot.lane.b32.xlu0 %v3808, 32
    %v3811 = vpop.permute.xlu0 %3810
    %v3813 = vadd.f32 %v2587, %v3811
    %v3814 = vtanh.pop %v3813
    %v3815 = vsub.f32 %v3614, %v3814
    %3817 = vrot.lane.b32.xlu0 %v3815, 112
    %v3818 = vpop.permute.xlu0 %3817
    %v3820 = vmul.f32 %v3803, %v3818
    %3822 = vrot.lane.b32.xlu0 %v3820, 16
    %v3823 = vpop.permute.xlu0 %3822
    %v3825 = vadd.f32 %v3814, %v3823
    %3827 = vrot.lane.b32.xlu0 %v3794, 48
    %v3828 = vpop.permute.xlu0 %3827
    %v3830 = vadd.f32 %v2586, %v3828
    %v3831 = vxor.u32 %v3830, 2147483648
    %v3832 = vmul.f32 %v3831, 1.442695
    %v3833 = vpow.pop %v3832
    %v3834 = vadd.f32 %v3833, 1.0
    %v3835 = vrcp.pop %v3834
    %v3836 = vmul.f32 1.0, %v3835
    %3837 = vrot.lane.b32.xlu0 %v3794, 16
    %v3838 = vpop.permute.xlu0 %3837
    %v3840 = vmul.f32 %v3836, %v3838
    %3842 = vrot.lane.b32.xlu0 %v3840, 32
    %v3843 = vpop.permute.xlu0 %3842
    %v3845 = vadd.f32 %v2586, %v3843
    %v3846 = vtanh.pop %v3845
    %v3847 = vsub.f32 %v3646, %v3846
    %3849 = vrot.lane.b32.xlu0 %v3847, 112
    %v3850 = vpop.permute.xlu0 %3849
    %v3852 = vmul.f32 %v3836, %v3850
    %3854 = vrot.lane.b32.xlu0 %v3852, 16
    %v3855 = vpop.permute.xlu0 %3854
    %v3857 = vadd.f32 %v3846, %v3855
    %3859 = vrot.lane.b32.xlu0 %v3825, 96
    %v3860 = vpop.permute.xlu0 %3859
    %v3861 = vsel %vm296, %v3860, 0
    %3863 = vmatprep.subr.mxu0 0.0
    %3864 = vmatpush1.msra.mxu0 %v2362
    %3865 = vmatprep.subr.mxu0 0.0
    %3866 = vmatpush1.msra.mxu0 %v2363
    %3867 = vmatprep.subr.mxu0 0.0
    %3868 = vmatpush1.msra.mxu0 0.0
    %3869 = vmatprep.subr.mxu0 0.0
    %3870 = vmatpush1.msra.mxu0 0.0
    %3871 = vmatprep.subr.mxu0 0.0
    %3872 = vmatpush1.msra.mxu0 0.0
    %3873 = vmatprep.subr.mxu0 0.0
    %3874 = vmatpush1.msra.mxu0 0.0
    %3875 = vmatprep.subr.mxu0 0.0
    %3876 = vmatpush1.msra.mxu0 0.0
    %3877 = vmatprep.subr.mxu0 0.0
    %3878 = vmatpush1.msra.mxu0 0.0
    %3879 = vmatprep.subr.mxu0 0.0
    %3880 = vmatpush1.msra.mxu0 0.0
    %3881 = vmatprep.subr.mxu0 0.0
    %3882 = vmatpush1.msra.mxu0 0.0
    %3883 = vmatprep.subr.mxu0 0.0
    %3884 = vmatpush1.msra.mxu0 0.0
    %3885 = vmatprep.subr.mxu0 0.0
    %3886 = vmatpush1.msra.mxu0 0.0
    %3887 = vmatprep.subr.mxu0 0.0
    %3888 = vmatpush1.msra.mxu0 0.0
    %3889 = vmatprep.subr.mxu0 0.0
    %3890 = vmatpush1.msra.mxu0 0.0
    %3891 = vmatprep.subr.mxu0 0.0
    %3892 = vmatpush1.msra.mxu0 0.0
    %3893 = vmatprep.subr.mxu0 0.0
    %3894 = vmatpush1.msra.mxu0 0.0
    %3895 = vmatprep.subr.mxu0 0.0
    %3896 = vmatpush1.msra.mxu0 0.0
    %3897 = vmatprep.subr.mxu0 0.0
    %3898 = vmatpush1.msra.mxu0 0.0
    %3899 = vmatprep.subr.mxu0 0.0
    %3900 = vmatpush1.msra.mxu0 0.0
    %3901 = vmatprep.subr.mxu0 0.0
    %3902 = vmatpush1.msra.mxu0 0.0
    %3903 = vmatprep.subr.mxu0 0.0
    %3904 = vmatpush1.msra.mxu0 0.0
    %3905 = vmatprep.subr.mxu0 0.0
    %3906 = vmatpush1.msra.mxu0 0.0
    %3907 = vmatprep.subr.mxu0 0.0
    %3908 = vmatpush1.msra.mxu0 0.0
    %3909 = vmatprep.subr.mxu0 0.0
    %3910 = vmatpush1.msra.mxu0 0.0
    %3911 = vmatprep.subr.mxu0 0.0
    %3912 = vmatpush1.msra.mxu0 0.0
    %3913 = vmatprep.subr.mxu0 0.0
    %3914 = vmatpush1.msra.mxu0 0.0
    %3915 = vmatprep.subr.mxu0 0.0
    %3916 = vmatpush1.msra.mxu0 0.0
    %3917 = vmatprep.subr.mxu0 0.0
    %3918 = vmatpush1.msra.mxu0 0.0
    %3919 = vmatprep.subr.mxu0 0.0
    %3920 = vmatpush1.msra.mxu0 0.0
    %3921 = vmatprep.subr.mxu0 0.0
    %3922 = vmatpush1.msra.mxu0 0.0
    %3923 = vmatprep.subr.mxu0 0.0
    %3924 = vmatpush1.msra.mxu0 0.0
    %3925 = vmatprep.subr.mxu0 0.0
    %3926 = vmatpush1.msra.mxu0 0.0
    %3927 = vmatprep.mubr.f32.mxu0 0.0
    %3928 = vmatmul.mubr.f32.gmra.mrb[0].mxu0 %v3861
    %v3929 = vpop.f32.mrb[0].mxu0
    %v3930 = vadd.f32 %v2377, %v3929
    %v3931 = vpop.f32.mrb[0].mxu0
    %3932 = vdwg.mxu0
    %3934 = vrot.lane.b32.xlu0 %v3857, 48
    %v3935 = vpop.permute.xlu0 %3934
    %v3936 = vsel %vm296, %v3935, 0
    %3938 = vmatprep.subr.mxu0 0.0
    %3939 = vmatpush1.msra.mxu0 %v2365
    %3940 = vmatprep.subr.mxu0 0.0
    %3941 = vmatpush1.msra.mxu0 %v2366
    %3942 = vmatprep.subr.mxu0 0.0
    %3943 = vmatpush1.msra.mxu0 0.0
    %3944 = vmatprep.subr.mxu0 0.0
    %3945 = vmatpush1.msra.mxu0 0.0
    %3946 = vmatprep.subr.mxu0 0.0
    %3947 = vmatpush1.msra.mxu0 0.0
    %3948 = vmatprep.subr.mxu0 0.0
    %3949 = vmatpush1.msra.mxu0 0.0
    %3950 = vmatprep.subr.mxu0 0.0
    %3951 = vmatpush1.msra.mxu0 0.0
    %3952 = vmatprep.subr.mxu0 0.0
    %3953 = vmatpush1.msra.mxu0 0.0
    %3954 = vmatprep.subr.mxu0 0.0
    %3955 = vmatpush1.msra.mxu0 0.0
    %3956 = vmatprep.subr.mxu0 0.0
    %3957 = vmatpush1.msra.mxu0 0.0
    %3958 = vmatprep.subr.mxu0 0.0
    %3959 = vmatpush1.msra.mxu0 0.0
    %3960 = vmatprep.subr.mxu0 0.0
    %3961 = vmatpush1.msra.mxu0 0.0
    %3962 = vmatprep.subr.mxu0 0.0
    %3963 = vmatpush1.msra.mxu0 0.0
    %3964 = vmatprep.subr.mxu0 0.0
    %3965 = vmatpush1.msra.mxu0 0.0
    %3966 = vmatprep.subr.mxu0 0.0
    %3967 = vmatpush1.msra.mxu0 0.0
    %3968 = vmatprep.subr.mxu0 0.0
    %3969 = vmatpush1.msra.mxu0 0.0
    %3970 = vmatprep.subr.mxu0 0.0
    %3971 = vmatpush1.msra.mxu0 0.0
    %3972 = vmatprep.subr.mxu0 0.0
    %3973 = vmatpush1.msra.mxu0 0.0
    %3974 = vmatprep.subr.mxu0 0.0
    %3975 = vmatpush1.msra.mxu0 0.0
    %3976 = vmatprep.subr.mxu0 0.0
    %3977 = vmatpush1.msra.mxu0 0.0
    %3978 = vmatprep.subr.mxu0 0.0
    %3979 = vmatpush1.msra.mxu0 0.0
    %3980 = vmatprep.subr.mxu0 0.0
    %3981 = vmatpush1.msra.mxu0 0.0
    %3982 = vmatprep.subr.mxu0 0.0
    %3983 = vmatpush1.msra.mxu0 0.0
    %3984 = vmatprep.subr.mxu0 0.0
    %3985 = vmatpush1.msra.mxu0 0.0
    %3986 = vmatprep.subr.mxu0 0.0
    %3987 = vmatpush1.msra.mxu0 0.0
    %3988 = vmatprep.subr.mxu0 0.0
    %3989 = vmatpush1.msra.mxu0 0.0
    %3990 = vmatprep.subr.mxu0 0.0
    %3991 = vmatpush1.msra.mxu0 0.0
    %3992 = vmatprep.subr.mxu0 0.0
    %3993 = vmatpush1.msra.mxu0 0.0
    %3994 = vmatprep.subr.mxu0 0.0
    %3995 = vmatpush1.msra.mxu0 0.0
    %3996 = vmatprep.subr.mxu0 0.0
    %3997 = vmatpush1.msra.mxu0 0.0
    %3998 = vmatprep.subr.mxu0 0.0
    %3999 = vmatpush1.msra.mxu0 0.0
    %4000 = vmatprep.subr.mxu0 0.0
    %4001 = vmatpush1.msra.mxu0 0.0
    %4002 = vmatprep.mubr.f32.mxu0 0.0
    %4003 = vmatmul.mubr.f32.gmra.mrb[0].mxu0 %v3936
    %v4004 = vpop.f32.mrb[0].mxu0
    %v4005 = vadd.f32 %v2453, %v4004
    %v4006 = vpop.f32.mrb[0].mxu0
    %4007 = vdwg.mxu0
    %v4008 = vadd.f32 %v2372, %v3930
    %v4009 = vxor.u32 %v4008, 2147483648
    %v4010 = vmul.f32 %v4009, 1.442695
    %v4011 = vpow.pop %v4010
    %v4012 = vadd.f32 %v4011, 1.0
    %v4013 = vrcp.pop %v4012
    %v4014 = vmul.f32 1.0, %v4013
    %4016 = vrot.lane.b32.xlu0 %v3930, 96
    %v4017 = vpop.permute.xlu0 %4016
    %v4019 = vmul.f32 %v4014, %v4017
    %4021 = vrot.lane.b32.xlu0 %v4019, 32
    %v4022 = vpop.permute.xlu0 %4021
    %v4024 = vadd.f32 %v2372, %v4022
    %v4025 = vtanh.pop %v4024
    %v4026 = vsub.f32 %v3825, %v4025
    %4028 = vrot.lane.b32.xlu0 %v4026, 112
    %v4029 = vpop.permute.xlu0 %4028
    %v4031 = vmul.f32 %v4014, %v4029
    %4033 = vrot.lane.b32.xlu0 %v4031, 16
    %v4034 = vpop.permute.xlu0 %4033
    %v4036 = vadd.f32 %v4025, %v4034
    %4038 = vrot.lane.b32.xlu0 %v4005, 48
    %v4039 = vpop.permute.xlu0 %4038
    %v4041 = vadd.f32 %v2371, %v4039
    %v4042 = vxor.u32 %v4041, 2147483648
    %v4043 = vmul.f32 %v4042, 1.442695
    %v4044 = vpow.pop %v4043
    %v4045 = vadd.f32 %v4044, 1.0
    %v4046 = vrcp.pop %v4045
    %v4047 = vmul.f32 1.0, %v4046
    %4048 = vrot.lane.b32.xlu0 %v4005, 16
    %v4049 = vpop.permute.xlu0 %4048
    %v4051 = vmul.f32 %v4047, %v4049
    %4053 = vrot.lane.b32.xlu0 %v4051, 32
    %v4054 = vpop.permute.xlu0 %4053
    %v4056 = vadd.f32 %v2371, %v4054
    %v4057 = vtanh.pop %v4056
    %v4058 = vsub.f32 %v3857, %v4057
    %4060 = vrot.lane.b32.xlu0 %v4058, 112
    %v4061 = vpop.permute.xlu0 %4060
    %v4063 = vmul.f32 %v4047, %v4061
    %4065 = vrot.lane.b32.xlu0 %v4063, 16
    %v4066 = vpop.permute.xlu0 %4065
    %v4068 = vadd.f32 %v4057, %v4066
    %4070 = vrot.lane.b32.xlu0 %v4036, 96
    %v4071 = vpop.permute.xlu0 %4070
    %4080 = vst.msk [vmem:[#allocation11] sm:$0x3] %vm2007, %v2590
    %4081 = vst.msk [vmem:[#allocation11 + $0x2] sm:$0x3] %vm2007, %v2803
    %4082 = vst.msk [vmem:[#allocation11 + $0x4] sm:$0x3] %vm2007, %v3016
    %4083 = vst.msk [vmem:[#allocation11 + $0x6] sm:$0x3] %vm2007, %v3227
    %4084 = vst.msk [vmem:[#allocation11 + $0x8] sm:$0x3] %vm2007, %v3438
    %4085 = vst.msk [vmem:[#allocation11 + $0xa] sm:$0x3] %vm2007, %v3649
    %4086 = vst.msk [vmem:[#allocation11 + $0xc] sm:$0x3] %vm2007, %v3860
    %4087 = vst.msk [vmem:[#allocation11 + $0xe] sm:$0x3] %vm2007, %v4071
    %4089 = vrot.lane.b32.xlu0 %v4068, 48
    %v4090 = vpop.permute.xlu0 %4089
    %4099 = vst.msk [vmem:[%s2027] sm:$0x3] %vm2007, %v4090
    %4100 = vst.msk [vmem:[%s2027 + $0x2] sm:$0x3] %vm2007, %v3935
    %4101 = vst.msk [vmem:[%s2027 + $0x4] sm:$0x3] %vm2007, %v3724
    %4102 = vst.msk [vmem:[%s2027 + $0x6] sm:$0x3] %vm2007, %v3513
    %4103 = vst.msk [vmem:[%s2027 + $0x8] sm:$0x3] %vm2007, %v3302
    %4104 = vst.msk [vmem:[%s2027 + $0xa] sm:$0x3] %vm2007, %v3091
    %4105 = vst.msk [vmem:[%s2027 + $0xc] sm:$0x3] %vm2007, %v2878
    %4106 = vst.msk [vmem:[%s2027 + $0xe] sm:$0x3] %vm2007, %v2665
    %v4107 = vld [vmem:[#allocation11] sm:$0x3]
    %v4108 = vld [vmem:[#allocation11 + $0x2] sm:$0x3]
    %v4109 = vld [vmem:[#allocation11 + $0x4] sm:$0x3]
    %v4110 = vld [vmem:[#allocation11 + $0x6] sm:$0x3]
    %v4111 = vld [vmem:[#allocation11 + $0x8] sm:$0x3]
    %v4112 = vld [vmem:[#allocation11 + $0xa] sm:$0x3]
    %v4113 = vld [vmem:[#allocation11 + $0xc] sm:$0x3]
    %v4114 = vld [vmem:[#allocation11 + $0xe] sm:$0x3]
    %v4115 = vld [vmem:[%s2027] sm:$0x3]
    %v4116 = vld [vmem:[%s2027 + $0x2] sm:$0x3]
    %v4117 = vld [vmem:[%s2027 + $0x4] sm:$0x3]
    %v4118 = vld [vmem:[%s2027 + $0x6] sm:$0x3]
    %v4119 = vld [vmem:[%s2027 + $0x8] sm:$0x3]
    %v4120 = vld [vmem:[%s2027 + $0xa] sm:$0x3]
    %v4121 = vld [vmem:[%s2027 + $0xc] sm:$0x3]
    %v4122 = vld [vmem:[%s2027 + $0xe] sm:$0x3]
    %v4123 = vld [vmem:[#allocation9] sm:$0xff]
    %v4124 = vld [vmem:[#allocation9 + $0x8] sm:$0xff]
    %v4125 = vld [vmem:[#allocation9 + $0x10] sm:$0xff]
    %v4126 = vld [vmem:[#allocation9 + $0x18] sm:$0xff]
    %v4135 = vcombine.low %v4115, %v4116
    %v4136 = vcombine.low %v4117, %v4118
    %v4138 = vunpack.c.l.s4 1983009808
    %v4139 = vunpack.c.0.s8 %v4138
    %v4140 = vlaneseq
    %v4141 = vshrl.u32 %v4140, 7
    %v4142 = vsub.s32 %v4139, %v4141
    %v4143 = vrot.slane %v4135, %v4142
    %v4145 = vunpack.c.l.s4 1983009808
    %v4146 = vunpack.c.0.s8 %v4145
    %v4147 = vlaneseq
    %v4148 = vshrl.u32 %v4147, 7
    %v4149 = vsub.s32 %v4146, %v4148
    %v4150 = vrot.slane %v4136, %v4149
    %v4151 = vcombine.low %v4143, %v4150
    %v4152 = vcombine.low %v4119, %v4120
    %v4153 = vcombine.low %v4121, %v4122
    %v4155 = vunpack.c.l.s4 1983009808
    %v4156 = vunpack.c.0.s8 %v4155
    %v4157 = vlaneseq
    %v4158 = vshrl.u32 %v4157, 7
    %v4159 = vsub.s32 %v4156, %v4158
    %v4160 = vrot.slane %v4152, %v4159
    %v4162 = vunpack.c.l.s4 1983009808
    %v4163 = vunpack.c.0.s8 %v4162
    %v4164 = vlaneseq
    %v4165 = vshrl.u32 %v4164, 7
    %v4166 = vsub.s32 %v4163, %v4165
    %v4167 = vrot.slane %v4153, %v4166
    %v4168 = vcombine.low %v4160, %v4167
    %v4169 = vsel %vm296, %v4151, 0
    %v4171 = vsel %vm296, %v4168, 0
    %4173 = vmatprep.subr.mxu0 0.0
    %4174 = vmatpush1.msra.mxu0 %v4125
    %4175 = vmatprep.subr.mxu0 0.0
    %4176 = vmatpush1.msra.mxu0 %v4126
    %4177 = vmatprep.subr.mxu0 0.0
    %4178 = vmatpush1.msra.mxu0 0.0
    %4179 = vmatprep.subr.mxu0 0.0
    %4180 = vmatpush1.msra.mxu0 0.0
    %4181 = vmatprep.subr.mxu0 0.0
    %4182 = vmatpush1.msra.mxu0 0.0
    %4183 = vmatprep.subr.mxu0 0.0
    %4184 = vmatpush1.msra.mxu0 0.0
    %4185 = vmatprep.subr.mxu0 0.0
    %4186 = vmatpush1.msra.mxu0 0.0
    %4187 = vmatprep.subr.mxu0 0.0
    %4188 = vmatpush1.msra.mxu0 0.0
    %4189 = vmatprep.subr.mxu0 0.0
    %4190 = vmatpush1.msra.mxu0 0.0
    %4191 = vmatprep.subr.mxu0 0.0
    %4192 = vmatpush1.msra.mxu0 0.0
    %4193 = vmatprep.subr.mxu0 0.0
    %4194 = vmatpush1.msra.mxu0 0.0
    %4195 = vmatprep.subr.mxu0 0.0
    %4196 = vmatpush1.msra.mxu0 0.0
    %4197 = vmatprep.subr.mxu0 0.0
    %4198 = vmatpush1.msra.mxu0 0.0
    %4199 = vmatprep.subr.mxu0 0.0
    %4200 = vmatpush1.msra.mxu0 0.0
    %4201 = vmatprep.subr.mxu0 0.0
    %4202 = vmatpush1.msra.mxu0 0.0
    %4203 = vmatprep.subr.mxu0 0.0
    %4204 = vmatpush1.msra.mxu0 0.0
    %4205 = vmatprep.subr.mxu0 0.0
    %4206 = vmatpush1.msra.mxu0 0.0
    %4207 = vmatprep.subr.mxu0 0.0
    %4208 = vmatpush1.msra.mxu0 0.0
    %4209 = vmatprep.subr.mxu0 0.0
    %4210 = vmatpush1.msra.mxu0 0.0
    %4211 = vmatprep.subr.mxu0 0.0
    %4212 = vmatpush1.msra.mxu0 0.0
    %4213 = vmatprep.subr.mxu0 0.0
    %4214 = vmatpush1.msra.mxu0 0.0
    %4215 = vmatprep.subr.mxu0 0.0
    %4216 = vmatpush1.msra.mxu0 0.0
    %4217 = vmatprep.subr.mxu0 0.0
    %4218 = vmatpush1.msra.mxu0 0.0
    %4219 = vmatprep.subr.mxu0 0.0
    %4220 = vmatpush1.msra.mxu0 0.0
    %4221 = vmatprep.subr.mxu0 0.0
    %4222 = vmatpush1.msra.mxu0 0.0
    %4223 = vmatprep.subr.mxu0 0.0
    %4224 = vmatpush1.msra.mxu0 0.0
    %4225 = vmatprep.subr.mxu0 0.0
    %4226 = vmatpush1.msra.mxu0 0.0
    %4227 = vmatprep.subr.mxu0 0.0
    %4228 = vmatpush1.msra.mxu0 0.0
    %4229 = vmatprep.subr.mxu0 0.0
    %4230 = vmatpush1.msra.mxu0 0.0
    %4231 = vmatprep.subr.mxu0 0.0
    %4232 = vmatpush1.msra.mxu0 0.0
    %4233 = vmatprep.subr.mxu0 0.0
    %4234 = vmatpush1.msra.mxu0 0.0
    %4235 = vmatprep.subr.mxu0 0.0
    %4236 = vmatpush1.msra.mxu0 0.0
    %4237 = vmatprep.mubr.f32.mxu0 0.0
    %4238 = vmatmul.mubr.f32.gmra.mrb[0].mxu0 %v4169
    %v4239 = vpop.f32.mrb[0].mxu0
    %v4240 = vadd.f32 0.0, %v4239
    %v4241 = vpop.f32.mrb[0].mxu0
    %4242 = vmatprep.mubr.f32.mxu0 0.0
    %4243 = vmatmul.mubr.f32.gmra.mrb[0].mxu0 %v4171
    %v4244 = vpop.f32.mrb[0].mxu0
    %v4245 = vadd.f32 0.0, %v4244
    %v4246 = vpop.f32.mrb[0].mxu0
    %4247 = vdwg.mxu0
    %v4256 = vcombine.low %v4107, %v4108
    %v4257 = vcombine.low %v4109, %v4110
    %v4259 = vunpack.c.l.s4 1983009808
    %v4260 = vunpack.c.0.s8 %v4259
    %v4261 = vlaneseq
    %v4262 = vshrl.u32 %v4261, 7
    %v4263 = vsub.s32 %v4260, %v4262
    %v4264 = vrot.slane %v4256, %v4263
    %v4266 = vunpack.c.l.s4 1983009808
    %v4267 = vunpack.c.0.s8 %v4266
    %v4268 = vlaneseq
    %v4269 = vshrl.u32 %v4268, 7
    %v4270 = vsub.s32 %v4267, %v4269
    %v4271 = vrot.slane %v4257, %v4270
    %v4272 = vcombine.low %v4264, %v4271
    %v4273 = vcombine.low %v4111, %v4112
    %v4274 = vcombine.low %v4113, %v4114
    %v4276 = vunpack.c.l.s4 1983009808
    %v4277 = vunpack.c.0.s8 %v4276
    %v4278 = vlaneseq
    %v4279 = vshrl.u32 %v4278, 7
    %v4280 = vsub.s32 %v4277, %v4279
    %v4281 = vrot.slane %v4273, %v4280
    %v4283 = vunpack.c.l.s4 1983009808
    %v4284 = vunpack.c.0.s8 %v4283
    %v4285 = vlaneseq
    %v4286 = vshrl.u32 %v4285, 7
    %v4287 = vsub.s32 %v4284, %v4286
    %v4288 = vrot.slane %v4274, %v4287
    %v4289 = vcombine.low %v4281, %v4288
    %v4290 = vsel %vm296, %v4272, 0
    %v4292 = vsel %vm296, %v4289, 0
    %4294 = vmatprep.subr.mxu0 0.0
    %4295 = vmatpush1.msra.mxu0 %v4123
    %4296 = vmatprep.subr.mxu0 0.0
    %4297 = vmatpush1.msra.mxu0 %v4124
    %4298 = vmatprep.subr.mxu0 0.0
    %4299 = vmatpush1.msra.mxu0 0.0
    %4300 = vmatprep.subr.mxu0 0.0
    %4301 = vmatpush1.msra.mxu0 0.0
    %4302 = vmatprep.subr.mxu0 0.0
    %4303 = vmatpush1.msra.mxu0 0.0
    %4304 = vmatprep.subr.mxu0 0.0
    %4305 = vmatpush1.msra.mxu0 0.0
    %4306 = vmatprep.subr.mxu0 0.0
    %4307 = vmatpush1.msra.mxu0 0.0
    %4308 = vmatprep.subr.mxu0 0.0
    %4309 = vmatpush1.msra.mxu0 0.0
    %4310 = vmatprep.subr.mxu0 0.0
    %4311 = vmatpush1.msra.mxu0 0.0
    %4312 = vmatprep.subr.mxu0 0.0
    %4313 = vmatpush1.msra.mxu0 0.0
    %4314 = vmatprep.subr.mxu0 0.0
    %4315 = vmatpush1.msra.mxu0 0.0
    %4316 = vmatprep.subr.mxu0 0.0
    %4317 = vmatpush1.msra.mxu0 0.0
    %4318 = vmatprep.subr.mxu0 0.0
    %4319 = vmatpush1.msra.mxu0 0.0
    %4320 = vmatprep.subr.mxu0 0.0
    %4321 = vmatpush1.msra.mxu0 0.0
    %4322 = vmatprep.subr.mxu0 0.0
    %4323 = vmatpush1.msra.mxu0 0.0
    %4324 = vmatprep.subr.mxu0 0.0
    %4325 = vmatpush1.msra.mxu0 0.0
    %4326 = vmatprep.subr.mxu0 0.0
    %4327 = vmatpush1.msra.mxu0 0.0
    %4328 = vmatprep.subr.mxu0 0.0
    %4329 = vmatpush1.msra.mxu0 0.0
    %4330 = vmatprep.subr.mxu0 0.0
    %4331 = vmatpush1.msra.mxu0 0.0
    %4332 = vmatprep.subr.mxu0 0.0
    %4333 = vmatpush1.msra.mxu0 0.0
    %4334 = vmatprep.subr.mxu0 0.0
    %4335 = vmatpush1.msra.mxu0 0.0
    %4336 = vmatprep.subr.mxu0 0.0
    %4337 = vmatpush1.msra.mxu0 0.0
    %4338 = vmatprep.subr.mxu0 0.0
    %4339 = vmatpush1.msra.mxu0 0.0
    %4340 = vmatprep.subr.mxu0 0.0
    %4341 = vmatpush1.msra.mxu0 0.0
    %4342 = vmatprep.subr.mxu0 0.0
    %4343 = vmatpush1.msra.mxu0 0.0
    %4344 = vmatprep.subr.mxu0 0.0
    %4345 = vmatpush1.msra.mxu0 0.0
    %4346 = vmatprep.subr.mxu0 0.0
    %4347 = vmatpush1.msra.mxu0 0.0
    %4348 = vmatprep.subr.mxu0 0.0
    %4349 = vmatpush1.msra.mxu0 0.0
    %4350 = vmatprep.subr.mxu0 0.0
    %4351 = vmatpush1.msra.mxu0 0.0
    %4352 = vmatprep.subr.mxu0 0.0
    %4353 = vmatpush1.msra.mxu0 0.0
    %4354 = vmatprep.subr.mxu0 0.0
    %4355 = vmatpush1.msra.mxu0 0.0
    %4356 = vmatprep.subr.mxu0 0.0
    %4357 = vmatpush1.msra.mxu0 0.0
    %4358 = vmatprep.mubr.f32.mxu0 0.0
    %4359 = vmatmul.mubr.f32.gmra.mrb[0].mxu0 %v4290
    %v4360 = vpop.f32.mrb[0].mxu0
    %v4361 = vadd.f32 %v4240, %v4360
    %v4362 = vpop.f32.mrb[0].mxu0
    %4363 = vmatprep.mubr.f32.mxu0 0.0
    %4364 = vmatmul.mubr.f32.gmra.mrb[0].mxu0 %v4292
    %v4365 = vpop.f32.mrb[0].mxu0
    %v4366 = vadd.f32 %v4245, %v4365
    %v4367 = vpop.f32.mrb[0].mxu0
    %4368 = vdwg.mxu0
    %v4369 = vld [vmem:[%s6] sm:$0x1]
    %v4371 = vlaneseq
    %v4372 = vshrl.u32 %v4371, 7
    %v4373 = vsub.s32 0, %v4372
    %v4374 = vrot.slane %v4369, %v4373
    %v4376 = vadd.f32 %v4361, %v4374
    %v4377 = vadd.f32 %v4366, %v4374
    %v4378 = vmax.f32 %v4376, 0.0
    %v4379 = vmax.f32 %v4377, 0.0
    %v4382 = vcombine.high %v4378, %v4378
    %v4384 = vunpack.c.l.s4 1983009808
    %v4385 = vunpack.c.0.s8 %v4384
    %v4386 = vlaneseq
    %v4387 = vshrl.u32 %v4386, 7
    %v4388 = vsub.s32 %v4385, %v4387
    %v4389 = vrot.slane %v4378, %v4388
    %v4391 = vunpack.c.l.s4 1983009808
    %v4392 = vunpack.c.0.s8 %v4391
    %v4393 = vlaneseq
    %v4394 = vshrl.u32 %v4393, 7
    %v4395 = vsub.s32 %v4392, %v4394
    %v4396 = vrot.slane %v4382, %v4395
    %v4397 = vcombine.high %v4389, %v4389
    %v4398 = vcombine.high %v4396, %v4396
    %v4399 = vcombine.high %v4379, %v4379
    %v4401 = vunpack.c.l.s4 1983009808
    %v4402 = vunpack.c.0.s8 %v4401
    %v4403 = vlaneseq
    %v4404 = vshrl.u32 %v4403, 7
    %v4405 = vsub.s32 %v4402, %v4404
    %v4406 = vrot.slane %v4379, %v4405
    %v4408 = vunpack.c.l.s4 1983009808
    %v4409 = vunpack.c.0.s8 %v4408
    %v4410 = vlaneseq
    %v4411 = vshrl.u32 %v4410, 7
    %v4412 = vsub.s32 %v4409, %v4411
    %v4413 = vrot.slane %v4399, %v4412
    %v4414 = vcombine.high %v4406, %v4406
    %v4415 = vcombine.high %v4413, %v4413
    %vm4424 = vcmask 254976
    %4425 = vst.msk [vmem:[#allocation12] sm:$0x3] %vm4424, %v4389
    %4426 = vst.msk [vmem:[#allocation12 + $0x2] sm:$0x3] %vm4424, %v4397
    %4427 = vst.msk [vmem:[#allocation12 + $0x4] sm:$0x3] %vm4424, %v4396
    %4428 = vst.msk [vmem:[#allocation12 + $0x6] sm:$0x3] %vm4424, %v4398
    %4429 = vst.msk [vmem:[#allocation12 + $0x8] sm:$0x3] %vm4424, %v4406
    %4430 = vst.msk [vmem:[#allocation12 + $0xa] sm:$0x3] %vm4424, %v4414
    %4431 = vst.msk [vmem:[#allocation12 + $0xc] sm:$0x3] %vm4424, %v4413
    %4432 = vst.msk [vmem:[#allocation12 + $0xe] sm:$0x3] %vm4424, %v4415
    // Predicated region
    $region46: #{tpu_custom_call.1} parent=1 // pred_check
      _
    $region47: #{tpu_custom_call.1} parent=1 // pred_check_branch
      %4434 = sbr.rel (0) target = $region49
    $region48: #{tpu_custom_call.1} parent=1 // pred_region
      %s4436 = ssub.s32 512, 512
      %4437 = vsyncadd [#allocation5], %s4436
      %s4438 = sshll.u32 [#allocation11], 4
      %s4439 = int_to_ptr.vmem [resolvable:$true] %s4438
      %4444 = dma.vmem_to_hbm [thread:$0]  %s4439, 512, %s7, [#allocation5], 32, 32, 2
    $region49: #{tpu_custom_call.1} parent=1 // pred_fallthru
      _
    // Predicated region
    $region50: #{tpu_custom_call.1} parent=1 // pred_check
      _
    $region51: #{tpu_custom_call.1} parent=1 // pred_check_branch
      %4446 = sbr.rel (0) target = $region53
    $region52: #{tpu_custom_call.1} parent=1 // pred_region
      %s4448 = ssub.s32 256, 256
      %4449 = vsyncadd [#allocation13], %s4448
      %s4450 = sshll.u32 [#allocation12], 4
      %s4451 = int_to_ptr.vmem [resolvable:$true] %s4450
      %4456 = dma.vmem_to_hbm [thread:$0]  %s4451, 256, %s8, [#allocation13], 32, 32, 2
    $region53: #{tpu_custom_call.1} parent=1 // pred_fallthru
      _
    // Predicated region
    $region54: #{tpu_custom_call.1} parent=1 // pred_check
      _
    $region55: #{tpu_custom_call.1} parent=1 // pred_check_branch
      %4458 = sbr.rel (0) target = $region57
    $region56: #{tpu_custom_call.1} parent=1 // pred_region
      %4459 = dma.done [#allocation5], 512
    $region57: #{tpu_custom_call.1} parent=1 // pred_fallthru
      _
    // Predicated region
    $region58: #{tpu_custom_call.1} parent=1 // pred_check
      _
    $region59: #{tpu_custom_call.1} parent=1 // pred_check_branch
      %4461 = sbr.rel (0) target = $region61
    $region60: #{tpu_custom_call.1} parent=1 // pred_region
      %4462 = dma.done [#allocation13], 256
    $region61: #{tpu_custom_call.1} parent=1 // pred_fallthru
      _
    %4463 = vsyncpa [#allocation4], 1
    %4464 = vsyncpa [#allocation7], 1
    %4465 = vsyncpa [#allocation10], 1
    %4466 = vsyncpa [#allocation5], 1
    %4467 = vsyncpa [#allocation13], 1

</llo_original>
